<compile_context>
chip_gen: v6e
topology: v6e:2x2x1
jax: 0.10.0
libtpu: 0.0.40
codegen_flags: <defaults>
</compile_context>

<pallas_src>
import functools

import jax
import jax.numpy as jnp
from jax import lax
from jax.experimental import pallas as pl
from jax.experimental.pallas import tpu as pltpu

LANE = 128          # TPU vreg lane width
SUBLANE_F32 = 8
SUBLANE_BF16 = 16
_UNROLL = 4         # partial-unroll factor for the serial time loop

_GATE_PERM = (0, 1, 3, 2)   # torch gate blocks [i, f, g, o] -> kernel columns [i, f, o, g]


def _round_up(x, m):
    return (x + m - 1) // m * m


# ----------------------------- Pallas kernel ------------------------------- #

def _lstm_net_kernel(num_layers, seq_len, batch_pad, hidden_pad, x_ref, *args):
    """Fused multi-layer LSTM + final Linear.

    x_ref : (T*Bp, Dp) bf16 time-major flattened input (row index = t*Bp + b)
    args  : [w_ih_l, w_hh_l, b_l] * num_layers, fc_w, fc_b, out_ref,
            gates_scr (T*Bp, 4*Hp) f32, seq_scr (T*Bp, Hp) bf16
    Weights are pre-transposed, gate-permuted to [i|f|o|g] and lane-padded to Hp.
    """
    n, T, Bp, Hp = num_layers, seq_len, batch_pad, hidden_pad
    layer_refs = args[:3 * n]
    fc_w_ref, fc_b_ref = args[3 * n], args[3 * n + 1]
    out_ref = args[3 * n + 2]
    gates_scr = args[3 * n + 3]
    seq_scr = args[3 * n + 4]

    def run_layer(layer_idx, x_flat):
        wih_ref, whh_ref, b_ref = layer_refs[3 * layer_idx:3 * layer_idx + 3]

        # (1) Whole-sequence input->gates projection: ONE bf16 MXU matmul with the
        #     bias folded in (f32 accumulation). Off the serial critical path.
        gates_scr[...] = (
            jnp.dot(x_flat, wih_ref[...], preferred_element_type=jnp.float32)
            + b_ref[...]
        )

        store_seq = layer_idx != n - 1   # last layer only needs h_{T-1}

        def step(t, h, c):
            row = pl.ds(pl.multiple_of(t * Bp, Bp), Bp)
            # Recurrent matmul: bf16 operands (MXU-native), f32 accumulate.
            # W_hh is streamed from VMEM each step; it does NOT fit in vregs.
            g = gates_scr[row, :] + jnp.dot(
                h.astype(jnp.bfloat16), whh_ref[...],
                preferred_element_type=jnp.float32)
            # Gate layout [i | f | o | g]: one wide sigmoid + one tanh per step.
            sig = jax.nn.sigmoid(g[:, :3 * Hp])
            i_g = sig[:, 0 * Hp:1 * Hp]
            f_g = sig[:, 1 * Hp:2 * Hp]
            o_g = sig[:, 2 * Hp:3 * Hp]
            g_g = jnp.tanh(g[:, 3 * Hp:4 * Hp])
            c_new = f_g * c + i_g * g_g
            h_new = o_g * jnp.tanh(c_new)
            if store_seq:
                seq_scr[row, :] = h_new.astype(jnp.bfloat16)
            return h_new, c_new

        h = jnp.zeros((Bp, Hp), jnp.float32)
        c = jnp.zeros((Bp, Hp), jnp.float32)
        # Partially-unrolled fori_loop: bounds live ranges at chunk boundaries
        # (no vreg blow-up) while keeping cross-step scheduling visibility.
        if T % _UNROLL == 0 and T >= _UNROLL:
            def chunk(ci, hc):
                hh, cc = hc
                for u in range(_UNROLL):
                    hh, cc = step(ci * _UNROLL + u, hh, cc)
                return hh, cc
            h, c = lax.fori_loop(0, T // _UNROLL, chunk, (h, c))
        else:
            h, c = lax.fori_loop(0, T, lambda t, hc: step(t, *hc), (h, c))
        return h

    h = run_layer(0, x_ref[...])
    for l in range(1, n):
        # seq_scr is fully consumed by the i2h matmul before any step of layer `l`
        # overwrites it, so the in-place reuse is safe in this structure.
        h = run_layer(l, seq_scr[...])

    # (2) Final Linear fused into the epilogue. Kept f32: one-off matmul off the
    #     critical path, avoids extra bf16 rounding on the output.
    out_ref[...] = (
        jnp.dot(h, fc_w_ref[...], preferred_element_type=jnp.float32)
        + fc_b_ref[...]
    )


# ------------------------------ JAX wrappers -------------------------------- #

def _vmem_limit_bytes(resident_bytes):
    """2x resident (pipelining) + headroom, capped per-generation-safe."""
    want = 2 * resident_bytes + (4 << 20)
    cap = 56 << 20                      # safe ceiling for v7x (64 MiB / TC)
    try:
        phys = int(pltpu.get_tpu_info().vmem_capacity_bytes)
        cap = phys - (phys >> 3)        # leave ~12% slack for Mosaic internals
    except Exception:
        pass
    return int(min(max(want, 16 << 20), cap))


@jax.jit
def lstm_forward(x, layer_params, fc_w_t, fc_b):
    """x: (B, T, D) float32 batch-first. Returns (B, output_dim) float32."""
    B, T, D = x.shape
    n = len(layer_params)
    Hp = layer_params[0][1].shape[0]
    Dp = layer_params[0][0].shape[0]
    O = fc_w_t.shape[1]
    Bp = _round_up(B, SUBLANE_BF16)   # unmasked per-step tiles for f32 and bf16

    # time-major, batch/feature-padded, bf16 (MXU-native) input slab
    xt = jnp.transpose(x, (1, 0, 2))                       # (T, B, D)
    xt = jnp.pad(xt, ((0, 0), (0, Bp - B), (0, Dp - D)))
    x_flat = xt.reshape(T * Bp, Dp).astype(jnp.bfloat16)
    # TODO(synk): for large T*B*D, avoid this wrapper-side reorder with a BlockSpec
    #             over T instead of a flattened slab.

    kernel = functools.partial(_lstm_net_kernel, n, T, Bp, Hp)
    vmem = pl.BlockSpec(memory_space=pltpu.MemorySpace.VMEM)

    inputs = [x_flat]
    for wih_t, whh_t, b in layer_params:
        inputs += [wih_t, whh_t, b]
    inputs += [fc_w_t, fc_b]

    scratch_bytes = (T * Bp * 4 * Hp) * 4 + (T * Bp * Hp) * 2
    resident = sum(int(a.size) * a.dtype.itemsize for a in inputs)
    resident += scratch_bytes + Bp * O * 4

    out = pl.pallas_call(
        kernel,
        out_shape=jax.ShapeDtypeStruct((Bp, O), jnp.float32),
        in_specs=[vmem] * len(inputs),
        out_specs=vmem,
        scratch_shapes=[
            pltpu.VMEM((T * Bp, 4 * Hp), jnp.float32),   # precomputed i2h gates
            pltpu.VMEM((T * Bp, Hp), jnp.bfloat16),      # inter-layer hidden seq
        ],
        compiler_params=pltpu.CompilerParams(
            vmem_limit_bytes=_vmem_limit_bytes(resident)),
    )(*inputs)
    return out[:B]


def _pad_gate_cols(w, H, Hp, dtype):
    """(K, 4H) torch-ordered [i|f|g|o] -> (K, 4Hp) kernel-ordered [i|f|o|g]."""
    K = w.shape[0]
    out = jnp.zeros((K, 4 * Hp), dtype)
    for dst, src in enumerate(_GATE_PERM):
        out = out.at[:, dst * Hp:dst * Hp + H].set(
            w[:, src * H:(src + 1) * H].astype(dtype))
    return out


def prepare_params(raw_params, hidden_dim):
    """Convert PyTorch-layout weights into the padded/transposed/bf16 kernel layout."""
    lstm_layers, fc_w, fc_b = raw_params
    H = hidden_dim
    Hp = _round_up(H, LANE)
    layer_params = []
    for li, (w_ih, w_hh, b_ih, b_hh) in enumerate(lstm_layers):
        d_in = w_ih.shape[1]
        d_in_pad = _round_up(d_in, SUBLANE_F32) if li == 0 else Hp
        wih_t = jnp.zeros((d_in_pad, 4 * Hp), jnp.bfloat16)
        wih_t = wih_t.at[:d_in, :].set(_pad_gate_cols(w_ih.T, H, Hp, jnp.bfloat16))
        whh_t = jnp.zeros((Hp, 4 * Hp), jnp.bfloat16)
        whh_t = whh_t.at[:H, :].set(_pad_gate_cols(w_hh.T, H, Hp, jnp.bfloat16))
        b = _pad_gate_cols((b_ih + b_hh).reshape(1, 4 * H), H, Hp, jnp.float32)
        layer_params.append((wih_t, whh_t, b))
    O = fc_w.shape[0]
    fc_w_t = jnp.zeros((Hp, O), jnp.float32).at[:H, :].set(fc_w.T)
    fc_b_r = fc_b.reshape(1, O)
    return tuple(layer_params), fc_w_t, fc_b_r


def init_params(key, input_dim, hidden_dim, output_dim, layers):
    """Raw PyTorch-layout params with U(-1/sqrt(H), 1/sqrt(H)) init."""
    k = 1.0 / float(hidden_dim) ** 0.5
    lstm_layers = []
    d_in = input_dim
    for _ in range(layers):
        key, k1, k2, k3, k4 = jax.random.split(key, 5)
        w_ih = jax.random.uniform(k1, (4 * hidden_dim, d_in), jnp.float32, -k, k)
        w_hh = jax.random.uniform(k2, (4 * hidden_dim, hidden_dim), jnp.float32, -k, k)
        b_ih = jax.random.uniform(k3, (4 * hidden_dim,), jnp.float32, -k, k)
        b_hh = jax.random.uniform(k4, (4 * hidden_dim,), jnp.float32, -k, k)
        lstm_layers.append((w_ih, w_hh, b_ih, b_hh))
        d_in = hidden_dim
    key, k5, k6 = jax.random.split(key, 3)
    fc_w = jax.random.uniform(k5, (output_dim, hidden_dim), jnp.float32, -k, k)
    fc_b = jax.random.uniform(k6, (output_dim,), jnp.float32, -k, k)
    return tuple(lstm_layers), fc_w, fc_b


def lstm_reference(x, raw_params):
    """Pure-JAX f32 reference matching PyTorch LSTM(+Linear) inference semantics."""
    lstm_layers, fc_w, fc_b = raw_params
    B, T, _ = x.shape
    h_seq = x
    for (w_ih, w_hh, b_ih, b_hh) in lstm_layers:
        H = w_hh.shape[1]
        h = jnp.zeros((B, H), jnp.float32)
        c = jnp.zeros((B, H), jnp.float32)
        outs = []
        for t in range(T):
            g = h_seq[:, t, :] @ w_ih.T + b_ih + h @ w_hh.T + b_hh
            i = jax.nn.sigmoid(g[:, :H])
            f = jax.nn.sigmoid(g[:, H:2 * H])
            gg = jnp.tanh(g[:, 2 * H:3 * H])
            o = jax.nn.sigmoid(g[:, 3 * H:])
            c = f * c + i * gg
            h = o * jnp.tanh(c)
            outs.append(h)
        h_seq = jnp.stack(outs, axis=1)
    return h_seq[:, -1, :] @ fc_w.T + fc_b


if __name__ == "__main__":
    # Small shapes consistent with the module's forward.
    B, T = 2, 8                       # batch, seq_len
    input_dim, hidden_dim = 4, 32
    output_dim, layers = 4, 2

    key = jax.random.PRNGKey(0)
    key, xk = jax.random.split(key)
    x = jax.random.normal(xk, (B, T, input_dim), jnp.float32)

    raw = init_params(key, input_dim, hidden_dim, output_dim, layers)
    layer_params, fc_w_t, fc_b = prepare_params(raw, hidden_dim)

    out = lstm_forward(x, layer_params, fc_w_t, fc_b)
    jax.block_until_ready(out)
    assert out.shape == (B, output_dim)

    ref = lstm_reference(x, raw)
    # bf16 MXU operands (f32 accumulation) -> slightly looser tolerance than pure f32.
    assert jnp.allclose(out, ref, rtol=2e-2, atol=2e-2), \
        float(jnp.max(jnp.abs(out - ref)))

    print("KERNEL_OK")
</pallas_src>

<mosaic_0001>
module attributes {stable_mosaic.version = 11 : i64} {
  func.func @_lstm_net_kernel(%arg0: memref<128x8xbf16, #tpu.memory_space<vmem>>, %arg1: memref<8x512xbf16, #tpu.memory_space<vmem>>, %arg2: memref<128x512xbf16, #tpu.memory_space<vmem>>, %arg3: memref<1x512xf32, #tpu.memory_space<vmem>>, %arg4: memref<128x512xbf16, #tpu.memory_space<vmem>>, %arg5: memref<128x512xbf16, #tpu.memory_space<vmem>>, %arg6: memref<1x512xf32, #tpu.memory_space<vmem>>, %arg7: memref<128x4xf32, #tpu.memory_space<vmem>>, %arg8: memref<1x4xf32, #tpu.memory_space<vmem>>, %arg9: memref<16x4xf32, #tpu.memory_space<vmem>>, %arg10: memref<128x512xf32, #tpu.memory_space<vmem>>, %arg11: memref<128x128xbf16, #tpu.memory_space<vmem>>) attributes {dimension_semantics = [], scalar_prefetch = 0 : i64, scratch_operands = 2 : i64, tpu.core_type = #tpu.core_type<tc>} {
    %c0 = arith.constant 0 : index
    %c0_0 = arith.constant 0 : index
    %0 = vector.load %arg0[%c0, %c0_0] : memref<128x8xbf16, #tpu.memory_space<vmem>>, vector<128x8xbf16>
    %c0_1 = arith.constant 0 : index
    %c0_2 = arith.constant 0 : index
    %1 = vector.load %arg1[%c0_1, %c0_2] : memref<8x512xbf16, #tpu.memory_space<vmem>>, vector<8x512xbf16>
    %cst = arith.constant dense<0.000000e+00> : vector<128x512xf32>
    %2 = tpu.matmul %0, %1, %cst {dimension_numbers = #tpu.dot_dimension_numbers<[1], [0], [0], [1], [0, 0, 1, 1], [], []>} : vector<128x8xbf16>, vector<8x512xbf16>, vector<128x512xf32> -> vector<128x512xf32>
    %c0_3 = arith.constant 0 : index
    %c0_4 = arith.constant 0 : index
    %3 = vector.load %arg3[%c0_3, %c0_4] : memref<1x512xf32, #tpu.memory_space<vmem>>, vector<1x512xf32>
    %4 = vector.broadcast %3 : vector<1x512xf32> to vector<128x512xf32>
    %5 = arith.addf %2, %4 : vector<128x512xf32>
    %c0_5 = arith.constant 0 : index
    %c0_6 = arith.constant 0 : index
    %6 = vector.load %arg10[%c0_5, %c0_6] : memref<128x512xf32, #tpu.memory_space<vmem>>, vector<128x512xf32>
    tpu.vector_store %arg10[%c0_5, %c0_6], %5 {strides = array<i32>} : memref<128x512xf32, #tpu.memory_space<vmem>>, vector<128x512xf32>,
    %cst_7 = arith.constant 0.000000e+00 : f32
    %7 = vector.broadcast %cst_7 : f32 to vector<16x128xf32>
    %cst_8 = arith.constant 0.000000e+00 : f32
    %8 = vector.broadcast %cst_8 : f32 to vector<16x128xf32>
    %c0_i32 = arith.constant 0 : i32
    %c2_i32 = arith.constant 2 : i32
    %9 = arith.addi %c0_i32, %c2_i32 : i32
    %c1_i32 = arith.constant 1 : i32
    %10:2 = scf.for %arg12 = %c0_i32 to %9 step %c1_i32 iter_args(%arg13 = %7, %arg14 = %8) -> (vector<16x128xf32>, vector<16x128xf32>)  : i32 {
      %c4_i32 = arith.constant 4 : i32
      %28 = arith.muli %arg12, %c4_i32 : i32
      %c0_i32_32 = arith.constant 0 : i32
      %29 = arith.addi %28, %c0_i32_32 : i32
      %c16_i32 = arith.constant 16 : i32
      %30 = arith.muli %29, %c16_i32 : i32
      %31 = tpu.assume_multiple %30, 16 : i32
      %32 = arith.index_cast %31 : i32 to index
      %c0_33 = arith.constant 0 : index
      %33 = vector.load %arg10[%32, %c0_33] : memref<128x512xf32, #tpu.memory_space<vmem>>, vector<16x512xf32>
      %34 = arith.truncf %arg13 : vector<16x128xf32> to vector<16x128xbf16>
      %c0_34 = arith.constant 0 : index
      %c0_35 = arith.constant 0 : index
      %35 = vector.load %arg2[%c0_34, %c0_35] : memref<128x512xbf16, #tpu.memory_space<vmem>>, vector<128x512xbf16>
      %cst_36 = arith.constant dense<0.000000e+00> : vector<16x512xf32>
      %36 = tpu.matmul %34, %35, %cst_36 {dimension_numbers = #tpu.dot_dimension_numbers<[1], [0], [0], [1], [0, 0, 1, 1], [], []>} : vector<16x128xbf16>, vector<128x512xbf16>, vector<16x512xf32> -> vector<16x512xf32>
      %37 = arith.addf %33, %36 : vector<16x512xf32>
      %38 = vector.extract_strided_slice %37 {offsets = [0, 0], sizes = [16, 384], strides = [1, 1]} : vector<16x512xf32> to vector<16x384xf32>
      %39 = arith.negf %38 : vector<16x384xf32>
      %40 = math.exp %39 : vector<16x384xf32>
      %cst_37 = arith.constant 1.000000e+00 : f32
      %41 = vector.broadcast %cst_37 : f32 to vector<16x384xf32>
      %42 = arith.addf %41, %40 : vector<16x384xf32>
      %43 = arith.divf %41, %42 : vector<16x384xf32>
      %44 = vector.extract_strided_slice %43 {offsets = [0, 0], sizes = [16, 128], strides = [1, 1]} : vector<16x384xf32> to vector<16x128xf32>
      %45 = vector.extract_strided_slice %43 {offsets = [0, 128], sizes = [16, 128], strides = [1, 1]} : vector<16x384xf32> to vector<16x128xf32>
      %46 = vector.extract_strided_slice %43 {offsets = [0, 256], sizes = [16, 128], strides = [1, 1]} : vector<16x384xf32> to vector<16x128xf32>
      %47 = vector.extract_strided_slice %37 {offsets = [0, 384], sizes = [16, 128], strides = [1, 1]} : vector<16x512xf32> to vector<16x128xf32>
      %48 = math.tanh %47 : vector<16x128xf32>
      %49 = arith.mulf %45, %arg14 : vector<16x128xf32>
      %50 = arith.mulf %44, %48 : vector<16x128xf32>
      %51 = arith.addf %49, %50 : vector<16x128xf32>
      %52 = math.tanh %51 : vector<16x128xf32>
      %53 = arith.mulf %46, %52 : vector<16x128xf32>
      %54 = arith.truncf %53 : vector<16x128xf32> to vector<16x128xbf16>
      %55 = arith.index_cast %31 : i32 to index
      %c0_38 = arith.constant 0 : index
      %56 = vector.load %arg11[%55, %c0_38] : memref<128x128xbf16, #tpu.memory_space<vmem>>, vector<16x128xbf16>
      tpu.vector_store %arg11[%55, %c0_38], %54 {strides = array<i32>} : memref<128x128xbf16, #tpu.memory_space<vmem>>, vector<16x128xbf16>,
      %c4_i32_39 = arith.constant 4 : i32
      %57 = arith.muli %arg12, %c4_i32_39 : i32
      %c1_i32_40 = arith.constant 1 : i32
      %58 = arith.addi %57, %c1_i32_40 : i32
      %c16_i32_41 = arith.constant 16 : i32
      %59 = arith.muli %58, %c16_i32_41 : i32
      %60 = tpu.assume_multiple %59, 16 : i32
      %61 = arith.index_cast %60 : i32 to index
      %c0_42 = arith.constant 0 : index
      %62 = vector.load %arg10[%61, %c0_42] : memref<128x512xf32, #tpu.memory_space<vmem>>, vector<16x512xf32>
      %63 = arith.truncf %53 : vector<16x128xf32> to vector<16x128xbf16>
      %c0_43 = arith.constant 0 : index
      %c0_44 = arith.constant 0 : index
      %64 = vector.load %arg2[%c0_43, %c0_44] : memref<128x512xbf16, #tpu.memory_space<vmem>>, vector<128x512xbf16>
      %cst_45 = arith.constant dense<0.000000e+00> : vector<16x512xf32>
      %65 = tpu.matmul %63, %64, %cst_45 {dimension_numbers = #tpu.dot_dimension_numbers<[1], [0], [0], [1], [0, 0, 1, 1], [], []>} : vector<16x128xbf16>, vector<128x512xbf16>, vector<16x512xf32> -> vector<16x512xf32>
      %66 = arith.addf %62, %65 : vector<16x512xf32>
      %67 = vector.extract_strided_slice %66 {offsets = [0, 0], sizes = [16, 384], strides = [1, 1]} : vector<16x512xf32> to vector<16x384xf32>
      %68 = arith.negf %67 : vector<16x384xf32>
      %69 = math.exp %68 : vector<16x384xf32>
      %cst_46 = arith.constant 1.000000e+00 : f32
      %70 = vector.broadcast %cst_46 : f32 to vector<16x384xf32>
      %71 = arith.addf %70, %69 : vector<16x384xf32>
      %72 = arith.divf %70, %71 : vector<16x384xf32>
      %73 = vector.extract_strided_slice %72 {offsets = [0, 0], sizes = [16, 128], strides = [1, 1]} : vector<16x384xf32> to vector<16x128xf32>
      %74 = vector.extract_strided_slice %72 {offsets = [0, 128], sizes = [16, 128], strides = [1, 1]} : vector<16x384xf32> to vector<16x128xf32>
      %75 = vector.extract_strided_slice %72 {offsets = [0, 256], sizes = [16, 128], strides = [1, 1]} : vector<16x384xf32> to vector<16x128xf32>
      %76 = vector.extract_strided_slice %66 {offsets = [0, 384], sizes = [16, 128], strides = [1, 1]} : vector<16x512xf32> to vector<16x128xf32>
      %77 = math.tanh %76 : vector<16x128xf32>
      %78 = arith.mulf %74, %51 : vector<16x128xf32>
      %79 = arith.mulf %73, %77 : vector<16x128xf32>
      %80 = arith.addf %78, %79 : vector<16x128xf32>
      %81 = math.tanh %80 : vector<16x128xf32>
      %82 = arith.mulf %75, %81 : vector<16x128xf32>
      %83 = arith.truncf %82 : vector<16x128xf32> to vector<16x128xbf16>
      %84 = arith.index_cast %60 : i32 to index
      %c0_47 = arith.constant 0 : index
      %85 = vector.load %arg11[%84, %c0_47] : memref<128x128xbf16, #tpu.memory_space<vmem>>, vector<16x128xbf16>
      tpu.vector_store %arg11[%84, %c0_47], %83 {strides = array<i32>} : memref<128x128xbf16, #tpu.memory_space<vmem>>, vector<16x128xbf16>,
      %c4_i32_48 = arith.constant 4 : i32
      %86 = arith.muli %arg12, %c4_i32_48 : i32
      %c2_i32_49 = arith.constant 2 : i32
      %87 = arith.addi %86, %c2_i32_49 : i32
      %c16_i32_50 = arith.constant 16 : i32
      %88 = arith.muli %87, %c16_i32_50 : i32
      %89 = tpu.assume_multiple %88, 16 : i32
      %90 = arith.index_cast %89 : i32 to index
      %c0_51 = arith.constant 0 : index
      %91 = vector.load %arg10[%90, %c0_51] : memref<128x512xf32, #tpu.memory_space<vmem>>, vector<16x512xf32>
      %92 = arith.truncf %82 : vector<16x128xf32> to vector<16x128xbf16>
      %c0_52 = arith.constant 0 : index
      %c0_53 = arith.constant 0 : index
      %93 = vector.load %arg2[%c0_52, %c0_53] : memref<128x512xbf16, #tpu.memory_space<vmem>>, vector<128x512xbf16>
      %cst_54 = arith.constant dense<0.000000e+00> : vector<16x512xf32>
      %94 = tpu.matmul %92, %93, %cst_54 {dimension_numbers = #tpu.dot_dimension_numbers<[1], [0], [0], [1], [0, 0, 1, 1], [], []>} : vector<16x128xbf16>, vector<128x512xbf16>, vector<16x512xf32> -> vector<16x512xf32>
      %95 = arith.addf %91, %94 : vector<16x512xf32>
      %96 = vector.extract_strided_slice %95 {offsets = [0, 0], sizes = [16, 384], strides = [1, 1]} : vector<16x512xf32> to vector<16x384xf32>
      %97 = arith.negf %96 : vector<16x384xf32>
      %98 = math.exp %97 : vector<16x384xf32>
      %cst_55 = arith.constant 1.000000e+00 : f32
      %99 = vector.broadcast %cst_55 : f32 to vector<16x384xf32>
      %100 = arith.addf %99, %98 : vector<16x384xf32>
      %101 = arith.divf %99, %100 : vector<16x384xf32>
      %102 = vector.extract_strided_slice %101 {offsets = [0, 0], sizes = [16, 128], strides = [1, 1]} : vector<16x384xf32> to vector<16x128xf32>
      %103 = vector.extract_strided_slice %101 {offsets = [0, 128], sizes = [16, 128], strides = [1, 1]} : vector<16x384xf32> to vector<16x128xf32>
      %104 = vector.extract_strided_slice %101 {offsets = [0, 256], sizes = [16, 128], strides = [1, 1]} : vector<16x384xf32> to vector<16x128xf32>
      %105 = vector.extract_strided_slice %95 {offsets = [0, 384], sizes = [16, 128], strides = [1, 1]} : vector<16x512xf32> to vector<16x128xf32>
      %106 = math.tanh %105 : vector<16x128xf32>
      %107 = arith.mulf %103, %80 : vector<16x128xf32>
      %108 = arith.mulf %102, %106 : vector<16x128xf32>
      %109 = arith.addf %107, %108 : vector<16x128xf32>
      %110 = math.tanh %109 : vector<16x128xf32>
      %111 = arith.mulf %104, %110 : vector<16x128xf32>
      %112 = arith.truncf %111 : vector<16x128xf32> to vector<16x128xbf16>
      %113 = arith.index_cast %89 : i32 to index
      %c0_56 = arith.constant 0 : index
      %114 = vector.load %arg11[%113, %c0_56] : memref<128x128xbf16, #tpu.memory_space<vmem>>, vector<16x128xbf16>
      tpu.vector_store %arg11[%113, %c0_56], %112 {strides = array<i32>} : memref<128x128xbf16, #tpu.memory_space<vmem>>, vector<16x128xbf16>,
      %c4_i32_57 = arith.constant 4 : i32
      %115 = arith.muli %arg12, %c4_i32_57 : i32
      %c3_i32 = arith.constant 3 : i32
      %116 = arith.addi %115, %c3_i32 : i32
      %c16_i32_58 = arith.constant 16 : i32
      %117 = arith.muli %116, %c16_i32_58 : i32
      %118 = tpu.assume_multiple %117, 16 : i32
      %119 = arith.index_cast %118 : i32 to index
      %c0_59 = arith.constant 0 : index
      %120 = vector.load %arg10[%119, %c0_59] : memref<128x512xf32, #tpu.memory_space<vmem>>, vector<16x512xf32>
      %121 = arith.truncf %111 : vector<16x128xf32> to vector<16x128xbf16>
      %c0_60 = arith.constant 0 : index
      %c0_61 = arith.constant 0 : index
      %122 = vector.load %arg2[%c0_60, %c0_61] : memref<128x512xbf16, #tpu.memory_space<vmem>>, vector<128x512xbf16>
      %cst_62 = arith.constant dense<0.000000e+00> : vector<16x512xf32>
      %123 = tpu.matmul %121, %122, %cst_62 {dimension_numbers = #tpu.dot_dimension_numbers<[1], [0], [0], [1], [0, 0, 1, 1], [], []>} : vector<16x128xbf16>, vector<128x512xbf16>, vector<16x512xf32> -> vector<16x512xf32>
      %124 = arith.addf %120, %123 : vector<16x512xf32>
      %125 = vector.extract_strided_slice %124 {offsets = [0, 0], sizes = [16, 384], strides = [1, 1]} : vector<16x512xf32> to vector<16x384xf32>
      %126 = arith.negf %125 : vector<16x384xf32>
      %127 = math.exp %126 : vector<16x384xf32>
      %cst_63 = arith.constant 1.000000e+00 : f32
      %128 = vector.broadcast %cst_63 : f32 to vector<16x384xf32>
      %129 = arith.addf %128, %127 : vector<16x384xf32>
      %130 = arith.divf %128, %129 : vector<16x384xf32>
      %131 = vector.extract_strided_slice %130 {offsets = [0, 0], sizes = [16, 128], strides = [1, 1]} : vector<16x384xf32> to vector<16x128xf32>
      %132 = vector.extract_strided_slice %130 {offsets = [0, 128], sizes = [16, 128], strides = [1, 1]} : vector<16x384xf32> to vector<16x128xf32>
      %133 = vector.extract_strided_slice %130 {offsets = [0, 256], sizes = [16, 128], strides = [1, 1]} : vector<16x384xf32> to vector<16x128xf32>
      %134 = vector.extract_strided_slice %124 {offsets = [0, 384], sizes = [16, 128], strides = [1, 1]} : vector<16x512xf32> to vector<16x128xf32>
      %135 = math.tanh %134 : vector<16x128xf32>
      %136 = arith.mulf %132, %109 : vector<16x128xf32>
      %137 = arith.mulf %131, %135 : vector<16x128xf32>
      %138 = arith.addf %136, %137 : vector<16x128xf32>
      %139 = math.tanh %138 : vector<16x128xf32>
      %140 = arith.mulf %133, %139 : vector<16x128xf32>
      %141 = arith.truncf %140 : vector<16x128xf32> to vector<16x128xbf16>
      %142 = arith.index_cast %118 : i32 to index
      %c0_64 = arith.constant 0 : index
      %143 = vector.load %arg11[%142, %c0_64] : memref<128x128xbf16, #tpu.memory_space<vmem>>, vector<16x128xbf16>
      tpu.vector_store %arg11[%142, %c0_64], %141 {strides = array<i32>} : memref<128x128xbf16, #tpu.memory_space<vmem>>, vector<16x128xbf16>,
      scf.yield %140, %138 : vector<16x128xf32>, vector<16x128xf32>
    }
    %c2_i32_9 = arith.constant 2 : i32
    %c0_10 = arith.constant 0 : index
    %c0_11 = arith.constant 0 : index
    %11 = vector.load %arg11[%c0_10, %c0_11] : memref<128x128xbf16, #tpu.memory_space<vmem>>, vector<128x128xbf16>
    %c0_12 = arith.constant 0 : index
    %c0_13 = arith.constant 0 : index
    %12 = vector.load %arg4[%c0_12, %c0_13] : memref<128x512xbf16, #tpu.memory_space<vmem>>, vector<128x512xbf16>
    %cst_14 = arith.constant dense<0.000000e+00> : vector<128x512xf32>
    %13 = tpu.matmul %11, %12, %cst_14 {dimension_numbers = #tpu.dot_dimension_numbers<[1], [0], [0], [1], [0, 0, 1, 1], [], []>} : vector<128x128xbf16>, vector<128x512xbf16>, vector<128x512xf32> -> vector<128x512xf32>
    %c0_15 = arith.constant 0 : index
    %c0_16 = arith.constant 0 : index
    %14 = vector.load %arg6[%c0_15, %c0_16] : memref<1x512xf32, #tpu.memory_space<vmem>>, vector<1x512xf32>
    %15 = vector.broadcast %14 : vector<1x512xf32> to vector<128x512xf32>
    %16 = arith.addf %13, %15 : vector<128x512xf32>
    %c0_17 = arith.constant 0 : index
    %c0_18 = arith.constant 0 : index
    %17 = vector.load %arg10[%c0_17, %c0_18] : memref<128x512xf32, #tpu.memory_space<vmem>>, vector<128x512xf32>
    tpu.vector_store %arg10[%c0_17, %c0_18], %16 {strides = array<i32>} : memref<128x512xf32, #tpu.memory_space<vmem>>, vector<128x512xf32>,
    %cst_19 = arith.constant 0.000000e+00 : f32
    %18 = vector.broadcast %cst_19 : f32 to vector<16x128xf32>
    %cst_20 = arith.constant 0.000000e+00 : f32
    %19 = vector.broadcast %cst_20 : f32 to vector<16x128xf32>
    %c0_i32_21 = arith.constant 0 : i32
    %c2_i32_22 = arith.constant 2 : i32
    %20 = arith.addi %c0_i32_21, %c2_i32_22 : i32
    %c1_i32_23 = arith.constant 1 : i32
    %21:2 = scf.for %arg12 = %c0_i32_21 to %20 step %c1_i32_23 iter_args(%arg13 = %18, %arg14 = %19) -> (vector<16x128xf32>, vector<16x128xf32>)  : i32 {
      %c4_i32 = arith.constant 4 : i32
      %28 = arith.muli %arg12, %c4_i32 : i32
      %c0_i32_32 = arith.constant 0 : i32
      %29 = arith.addi %28, %c0_i32_32 : i32
      %c16_i32 = arith.constant 16 : i32
      %30 = arith.muli %29, %c16_i32 : i32
      %31 = tpu.assume_multiple %30, 16 : i32
      %32 = arith.index_cast %31 : i32 to index
      %c0_33 = arith.constant 0 : index
      %33 = vector.load %arg10[%32, %c0_33] : memref<128x512xf32, #tpu.memory_space<vmem>>, vector<16x512xf32>
      %34 = arith.truncf %arg13 : vector<16x128xf32> to vector<16x128xbf16>
      %c0_34 = arith.constant 0 : index
      %c0_35 = arith.constant 0 : index
      %35 = vector.load %arg5[%c0_34, %c0_35] : memref<128x512xbf16, #tpu.memory_space<vmem>>, vector<128x512xbf16>
      %cst_36 = arith.constant dense<0.000000e+00> : vector<16x512xf32>
      %36 = tpu.matmul %34, %35, %cst_36 {dimension_numbers = #tpu.dot_dimension_numbers<[1], [0], [0], [1], [0, 0, 1, 1], [], []>} : vector<16x128xbf16>, vector<128x512xbf16>, vector<16x512xf32> -> vector<16x512xf32>
      %37 = arith.addf %33, %36 : vector<16x512xf32>
      %38 = vector.extract_strided_slice %37 {offsets = [0, 0], sizes = [16, 384], strides = [1, 1]} : vector<16x512xf32> to vector<16x384xf32>
      %39 = arith.negf %38 : vector<16x384xf32>
      %40 = math.exp %39 : vector<16x384xf32>
      %cst_37 = arith.constant 1.000000e+00 : f32
      %41 = vector.broadcast %cst_37 : f32 to vector<16x384xf32>
      %42 = arith.addf %41, %40 : vector<16x384xf32>
      %43 = arith.divf %41, %42 : vector<16x384xf32>
      %44 = vector.extract_strided_slice %43 {offsets = [0, 0], sizes = [16, 128], strides = [1, 1]} : vector<16x384xf32> to vector<16x128xf32>
      %45 = vector.extract_strided_slice %43 {offsets = [0, 128], sizes = [16, 128], strides = [1, 1]} : vector<16x384xf32> to vector<16x128xf32>
      %46 = vector.extract_strided_slice %43 {offsets = [0, 256], sizes = [16, 128], strides = [1, 1]} : vector<16x384xf32> to vector<16x128xf32>
      %47 = vector.extract_strided_slice %37 {offsets = [0, 384], sizes = [16, 128], strides = [1, 1]} : vector<16x512xf32> to vector<16x128xf32>
      %48 = math.tanh %47 : vector<16x128xf32>
      %49 = arith.mulf %45, %arg14 : vector<16x128xf32>
      %50 = arith.mulf %44, %48 : vector<16x128xf32>
      %51 = arith.addf %49, %50 : vector<16x128xf32>
      %52 = math.tanh %51 : vector<16x128xf32>
      %53 = arith.mulf %46, %52 : vector<16x128xf32>
      %c4_i32_38 = arith.constant 4 : i32
      %54 = arith.muli %arg12, %c4_i32_38 : i32
      %c1_i32_39 = arith.constant 1 : i32
      %55 = arith.addi %54, %c1_i32_39 : i32
      %c16_i32_40 = arith.constant 16 : i32
      %56 = arith.muli %55, %c16_i32_40 : i32
      %57 = tpu.assume_multiple %56, 16 : i32
      %58 = arith.index_cast %57 : i32 to index
      %c0_41 = arith.constant 0 : index
      %59 = vector.load %arg10[%58, %c0_41] : memref<128x512xf32, #tpu.memory_space<vmem>>, vector<16x512xf32>
      %60 = arith.truncf %53 : vector<16x128xf32> to vector<16x128xbf16>
      %c0_42 = arith.constant 0 : index
      %c0_43 = arith.constant 0 : index
      %61 = vector.load %arg5[%c0_42, %c0_43] : memref<128x512xbf16, #tpu.memory_space<vmem>>, vector<128x512xbf16>
      %cst_44 = arith.constant dense<0.000000e+00> : vector<16x512xf32>
      %62 = tpu.matmul %60, %61, %cst_44 {dimension_numbers = #tpu.dot_dimension_numbers<[1], [0], [0], [1], [0, 0, 1, 1], [], []>} : vector<16x128xbf16>, vector<128x512xbf16>, vector<16x512xf32> -> vector<16x512xf32>
      %63 = arith.addf %59, %62 : vector<16x512xf32>
      %64 = vector.extract_strided_slice %63 {offsets = [0, 0], sizes = [16, 384], strides = [1, 1]} : vector<16x512xf32> to vector<16x384xf32>
      %65 = arith.negf %64 : vector<16x384xf32>
      %66 = math.exp %65 : vector<16x384xf32>
      %cst_45 = arith.constant 1.000000e+00 : f32
      %67 = vector.broadcast %cst_45 : f32 to vector<16x384xf32>
      %68 = arith.addf %67, %66 : vector<16x384xf32>
      %69 = arith.divf %67, %68 : vector<16x384xf32>
      %70 = vector.extract_strided_slice %69 {offsets = [0, 0], sizes = [16, 128], strides = [1, 1]} : vector<16x384xf32> to vector<16x128xf32>
      %71 = vector.extract_strided_slice %69 {offsets = [0, 128], sizes = [16, 128], strides = [1, 1]} : vector<16x384xf32> to vector<16x128xf32>
      %72 = vector.extract_strided_slice %69 {offsets = [0, 256], sizes = [16, 128], strides = [1, 1]} : vector<16x384xf32> to vector<16x128xf32>
      %73 = vector.extract_strided_slice %63 {offsets = [0, 384], sizes = [16, 128], strides = [1, 1]} : vector<16x512xf32> to vector<16x128xf32>
      %74 = math.tanh %73 : vector<16x128xf32>
      %75 = arith.mulf %71, %51 : vector<16x128xf32>
      %76 = arith.mulf %70, %74 : vector<16x128xf32>
      %77 = arith.addf %75, %76 : vector<16x128xf32>
      %78 = math.tanh %77 : vector<16x128xf32>
      %79 = arith.mulf %72, %78 : vector<16x128xf32>
      %c4_i32_46 = arith.constant 4 : i32
      %80 = arith.muli %arg12, %c4_i32_46 : i32
      %c2_i32_47 = arith.constant 2 : i32
      %81 = arith.addi %80, %c2_i32_47 : i32
      %c16_i32_48 = arith.constant 16 : i32
      %82 = arith.muli %81, %c16_i32_48 : i32
      %83 = tpu.assume_multiple %82, 16 : i32
      %84 = arith.index_cast %83 : i32 to index
      %c0_49 = arith.constant 0 : index
      %85 = vector.load %arg10[%84, %c0_49] : memref<128x512xf32, #tpu.memory_space<vmem>>, vector<16x512xf32>
      %86 = arith.truncf %79 : vector<16x128xf32> to vector<16x128xbf16>
      %c0_50 = arith.constant 0 : index
      %c0_51 = arith.constant 0 : index
      %87 = vector.load %arg5[%c0_50, %c0_51] : memref<128x512xbf16, #tpu.memory_space<vmem>>, vector<128x512xbf16>
      %cst_52 = arith.constant dense<0.000000e+00> : vector<16x512xf32>
      %88 = tpu.matmul %86, %87, %cst_52 {dimension_numbers = #tpu.dot_dimension_numbers<[1], [0], [0], [1], [0, 0, 1, 1], [], []>} : vector<16x128xbf16>, vector<128x512xbf16>, vector<16x512xf32> -> vector<16x512xf32>
      %89 = arith.addf %85, %88 : vector<16x512xf32>
      %90 = vector.extract_strided_slice %89 {offsets = [0, 0], sizes = [16, 384], strides = [1, 1]} : vector<16x512xf32> to vector<16x384xf32>
      %91 = arith.negf %90 : vector<16x384xf32>
      %92 = math.exp %91 : vector<16x384xf32>
      %cst_53 = arith.constant 1.000000e+00 : f32
      %93 = vector.broadcast %cst_53 : f32 to vector<16x384xf32>
      %94 = arith.addf %93, %92 : vector<16x384xf32>
      %95 = arith.divf %93, %94 : vector<16x384xf32>
      %96 = vector.extract_strided_slice %95 {offsets = [0, 0], sizes = [16, 128], strides = [1, 1]} : vector<16x384xf32> to vector<16x128xf32>
      %97 = vector.extract_strided_slice %95 {offsets = [0, 128], sizes = [16, 128], strides = [1, 1]} : vector<16x384xf32> to vector<16x128xf32>
      %98 = vector.extract_strided_slice %95 {offsets = [0, 256], sizes = [16, 128], strides = [1, 1]} : vector<16x384xf32> to vector<16x128xf32>
      %99 = vector.extract_strided_slice %89 {offsets = [0, 384], sizes = [16, 128], strides = [1, 1]} : vector<16x512xf32> to vector<16x128xf32>
      %100 = math.tanh %99 : vector<16x128xf32>
      %101 = arith.mulf %97, %77 : vector<16x128xf32>
      %102 = arith.mulf %96, %100 : vector<16x128xf32>
      %103 = arith.addf %101, %102 : vector<16x128xf32>
      %104 = math.tanh %103 : vector<16x128xf32>
      %105 = arith.mulf %98, %104 : vector<16x128xf32>
      %c4_i32_54 = arith.constant 4 : i32
      %106 = arith.muli %arg12, %c4_i32_54 : i32
      %c3_i32 = arith.constant 3 : i32
      %107 = arith.addi %106, %c3_i32 : i32
      %c16_i32_55 = arith.constant 16 : i32
      %108 = arith.muli %107, %c16_i32_55 : i32
      %109 = tpu.assume_multiple %108, 16 : i32
      %110 = arith.index_cast %109 : i32 to index
      %c0_56 = arith.constant 0 : index
      %111 = vector.load %arg10[%110, %c0_56] : memref<128x512xf32, #tpu.memory_space<vmem>>, vector<16x512xf32>
      %112 = arith.truncf %105 : vector<16x128xf32> to vector<16x128xbf16>
      %c0_57 = arith.constant 0 : index
      %c0_58 = arith.constant 0 : index
      %113 = vector.load %arg5[%c0_57, %c0_58] : memref<128x512xbf16, #tpu.memory_space<vmem>>, vector<128x512xbf16>
      %cst_59 = arith.constant dense<0.000000e+00> : vector<16x512xf32>
      %114 = tpu.matmul %112, %113, %cst_59 {dimension_numbers = #tpu.dot_dimension_numbers<[1], [0], [0], [1], [0, 0, 1, 1], [], []>} : vector<16x128xbf16>, vector<128x512xbf16>, vector<16x512xf32> -> vector<16x512xf32>
      %115 = arith.addf %111, %114 : vector<16x512xf32>
      %116 = vector.extract_strided_slice %115 {offsets = [0, 0], sizes = [16, 384], strides = [1, 1]} : vector<16x512xf32> to vector<16x384xf32>
      %117 = arith.negf %116 : vector<16x384xf32>
      %118 = math.exp %117 : vector<16x384xf32>
      %cst_60 = arith.constant 1.000000e+00 : f32
      %119 = vector.broadcast %cst_60 : f32 to vector<16x384xf32>
      %120 = arith.addf %119, %118 : vector<16x384xf32>
      %121 = arith.divf %119, %120 : vector<16x384xf32>
      %122 = vector.extract_strided_slice %121 {offsets = [0, 0], sizes = [16, 128], strides = [1, 1]} : vector<16x384xf32> to vector<16x128xf32>
      %123 = vector.extract_strided_slice %121 {offsets = [0, 128], sizes = [16, 128], strides = [1, 1]} : vector<16x384xf32> to vector<16x128xf32>
      %124 = vector.extract_strided_slice %121 {offsets = [0, 256], sizes = [16, 128], strides = [1, 1]} : vector<16x384xf32> to vector<16x128xf32>
      %125 = vector.extract_strided_slice %115 {offsets = [0, 384], sizes = [16, 128], strides = [1, 1]} : vector<16x512xf32> to vector<16x128xf32>
      %126 = math.tanh %125 : vector<16x128xf32>
      %127 = arith.mulf %123, %103 : vector<16x128xf32>
      %128 = arith.mulf %122, %126 : vector<16x128xf32>
      %129 = arith.addf %127, %128 : vector<16x128xf32>
      %130 = math.tanh %129 : vector<16x128xf32>
      %131 = arith.mulf %124, %130 : vector<16x128xf32>
      scf.yield %131, %129 : vector<16x128xf32>, vector<16x128xf32>
    }
    %c2_i32_24 = arith.constant 2 : i32
    %c0_25 = arith.constant 0 : index
    %c0_26 = arith.constant 0 : index
    %22 = vector.load %arg7[%c0_25, %c0_26] : memref<128x4xf32, #tpu.memory_space<vmem>>, vector<128x4xf32>
    %cst_27 = arith.constant dense<0.000000e+00> : vector<16x4xf32>
    %23 = tpu.matmul %21#0, %22, %cst_27 {dimension_numbers = #tpu.dot_dimension_numbers<[1], [0], [0], [1], [0, 0, 1, 1], [], []>} : vector<16x128xf32>, vector<128x4xf32>, vector<16x4xf32> -> vector<16x4xf32>
    %c0_28 = arith.constant 0 : index
    %c0_29 = arith.constant 0 : index
    %24 = vector.load %arg8[%c0_28, %c0_29] : memref<1x4xf32, #tpu.memory_space<vmem>>, vector<1x4xf32>
    %25 = vector.broadcast %24 : vector<1x4xf32> to vector<16x4xf32>
    %26 = arith.addf %23, %25 : vector<16x4xf32>
    %c0_30 = arith.constant 0 : index
    %c0_31 = arith.constant 0 : index
    %27 = vector.load %arg9[%c0_30, %c0_31] : memref<16x4xf32, #tpu.memory_space<vmem>>, vector<16x4xf32>
    tpu.vector_store %arg9[%c0_30, %c0_31], %26 {strides = array<i32>} : memref<16x4xf32, #tpu.memory_space<vmem>>, vector<16x4xf32>,
    return
  }
}

</mosaic_0001>

<llo_original>
// kernel: lstm_forward.1
$region0: #{lstm_forward.1}
  #allocation0 [shape = 'u32[]', space=smem, size = 0x4, offset = 0x4, fixed_abs, tag = 'smem constant byte address 0x4 - core index']
  #allocation1 [shape = 'u32[144,128]{1,0:T(1,128)}', space=vmem, size = 0x12000, scoped, tag = 'internal scratch']
  #allocation2 [shape = 'f32[128,512]{1,0:T(8,128)}', space=vmem, size = 0x40000, scoped, tag = 'scratch operand']
  #allocation3 [shape = 'bf16[128,128]{1,0:T(8,128)(2,1)}', space=vmem, size = 0x8000, scoped, tag = 'scratch operand']
  %s0 = inlined_call_operand.vmem [shape: bf16[128,8], index: 0, kind: input, shape index: {}]
  %s1 = inlined_call_operand.vmem [shape: bf16[8,512], index: 1, kind: input, shape index: {}]
  %s2 = inlined_call_operand.hbm [shape: bf16[128,512], index: 2, kind: input, shape index: {}]
  %s3 = inlined_call_operand.vmem [shape: f32[1,512], index: 3, kind: input, shape index: {}]
  %s4 = inlined_call_operand.hbm [shape: bf16[128,512], index: 4, kind: input, shape index: {}]
  %s5 = inlined_call_operand.hbm [shape: bf16[128,512], index: 5, kind: input, shape index: {}]
  %s6 = inlined_call_operand.vmem [shape: f32[1,512], index: 6, kind: input, shape index: {}]
  %s7 = inlined_call_operand.vmem [shape: f32[128,4], index: 7, kind: input, shape index: {}]
  %s8 = inlined_call_operand.vmem [shape: f32[1,4], index: 8, kind: input, shape index: {}]
  %s9 = inlined_call_operand.vmem [shape: f32[16,4], index: 9, kind: output, shape index: {}]
  %s10 = sld [smem:[#allocation0]]
  $region72: #{lstm_forward.1} parent=0
    _
  %s12 = ssub.s32 1, %s10
  %s13 = scalar_select 0, %s12, %s10
  $region1: #{lstm_forward.1} parent=0
    #allocation4 [shape = 'u8[131072]{0}', space=vmem, size = 0x20000, scoped, tag = 'input window, operand 2, single buffered']
    #allocation5 [shape = 's32[1]{0}', space=sflag, size = 0x4, scoped, tag = 'scoped memory for lstm_forward.1']
    #allocation6 [shape = 'u8[131072]{0}', space=vmem, size = 0x20000, scoped, tag = 'input window, operand 4, single buffered']
    #allocation7 [shape = 's32[1]{0}', space=sflag, size = 0x4, scoped, tag = 'scoped memory for lstm_forward.1']
    #allocation8 [shape = 'u8[131072]{0}', space=vmem, size = 0x20000, scoped, tag = 'input window, operand 5, single buffered']
    %14 = vsyncpa [#allocation5], 0
    %15 = vsyncpa [#allocation7], 0
    // Predicated region
    $region2: #{lstm_forward.1} parent=1 // pred_check
      _
    $region3: #{lstm_forward.1} parent=1 // pred_check_branch
      %17 = sbr.rel (0) target = $region5
    $region4: #{lstm_forward.1} parent=1 // pred_region
      _
    $region5: #{lstm_forward.1} parent=1 // pred_fallthru
      _
    // Predicated region
    $region6: #{lstm_forward.1} parent=1 // pred_check
      _
    $region7: #{lstm_forward.1} parent=1 // pred_check_branch
      %19 = sbr.rel (0) target = $region9
    $region8: #{lstm_forward.1} parent=1 // pred_region
      _
    $region9: #{lstm_forward.1} parent=1 // pred_fallthru
      _
    // Predicated region
    $region10: #{lstm_forward.1} parent=1 // pred_check
      _
    $region11: #{lstm_forward.1} parent=1 // pred_check_branch
      %21 = sbr.rel (0) target = $region13
    $region12: #{lstm_forward.1} parent=1 // pred_region
      %s23 = ssub.s32 4096, 4096
      %24 = vsyncadd [#allocation5], %s23
      %s25 = sshll.u32 [#allocation4], 4
      %s26 = int_to_ptr.vmem [resolvable:$true] %s25
      %31 = dma.hbm_to_vmem [thread:$0]  %s2, 4096, %s26, [#allocation5], 256, 256, 16
    $region13: #{lstm_forward.1} parent=1 // pred_fallthru
      _
    // Predicated region
    $region14: #{lstm_forward.1} parent=1 // pred_check
      _
    $region15: #{lstm_forward.1} parent=1 // pred_check_branch
      %33 = sbr.rel (0) target = $region17
    $region16: #{lstm_forward.1} parent=1 // pred_region
      _
    $region17: #{lstm_forward.1} parent=1 // pred_fallthru
      _
    // Predicated region
    $region18: #{lstm_forward.1} parent=1 // pred_check
      _
    $region19: #{lstm_forward.1} parent=1 // pred_check_branch
      %35 = sbr.rel (0) target = $region21
    $region20: #{lstm_forward.1} parent=1 // pred_region
      %s37 = ssub.s32 4096, 4096
      %38 = vsyncadd [#allocation7], %s37
      %s39 = sshll.u32 [#allocation6], 4
      %s40 = int_to_ptr.vmem [resolvable:$true] %s39
      %45 = dma.hbm_to_vmem [thread:$0]  %s4, 4096, %s40, [#allocation7], 256, 256, 16
    $region21: #{lstm_forward.1} parent=1 // pred_fallthru
      _
    // Predicated region
    $region22: #{lstm_forward.1} parent=1 // pred_check
      _
    $region23: #{lstm_forward.1} parent=1 // pred_check_branch
      %47 = sbr.rel (0) target = $region25
    $region24: #{lstm_forward.1} parent=1 // pred_region
      %s49 = ssub.s32 4096, 4096
      %50 = vsyncadd [#allocation7], %s49
      %s51 = sshll.u32 [#allocation8], 4
      %s52 = int_to_ptr.vmem [resolvable:$true] %s51
      %57 = dma.hbm_to_vmem [thread:$0]  %s5, 4096, %s52, [#allocation7], 256, 256, 16
    $region25: #{lstm_forward.1} parent=1 // pred_fallthru
      _
    // Predicated region
    $region26: #{lstm_forward.1} parent=1 // pred_check
      _
    $region27: #{lstm_forward.1} parent=1 // pred_check_branch
      %59 = sbr.rel (0) target = $region29
    $region28: #{lstm_forward.1} parent=1 // pred_region
      _
    $region29: #{lstm_forward.1} parent=1 // pred_fallthru
      _
    // Predicated region
    $region30: #{lstm_forward.1} parent=1 // pred_check
      _
    $region31: #{lstm_forward.1} parent=1 // pred_check_branch
      %61 = sbr.rel (0) target = $region33
    $region32: #{lstm_forward.1} parent=1 // pred_region
      _
    $region33: #{lstm_forward.1} parent=1 // pred_fallthru
      _
    // Predicated region
    $region34: #{lstm_forward.1} parent=1 // pred_check
      _
    $region35: #{lstm_forward.1} parent=1 // pred_check_branch
      %63 = sbr.rel (0) target = $region37
    $region36: #{lstm_forward.1} parent=1 // pred_region
      _
    $region37: #{lstm_forward.1} parent=1 // pred_fallthru
      _
    // Predicated region
    $region38: #{lstm_forward.1} parent=1 // pred_check
      _
    $region39: #{lstm_forward.1} parent=1 // pred_check_branch
      %65 = sbr.rel (0) target = $region41
    $region40: #{lstm_forward.1} parent=1 // pred_region
      %66 = dma.done [#allocation5], 4096
    $region41: #{lstm_forward.1} parent=1 // pred_fallthru
      _
    // Predicated region
    $region42: #{lstm_forward.1} parent=1 // pred_check
      _
    $region43: #{lstm_forward.1} parent=1 // pred_check_branch
      %68 = sbr.rel (0) target = $region45
    $region44: #{lstm_forward.1} parent=1 // pred_region
      %69 = dma.done [#allocation7], 4096
    $region45: #{lstm_forward.1} parent=1 // pred_fallthru
      _
    // Predicated region
    $region46: #{lstm_forward.1} parent=1 // pred_check
      _
    $region47: #{lstm_forward.1} parent=1 // pred_check_branch
      %71 = sbr.rel (0) target = $region49
    $region48: #{lstm_forward.1} parent=1 // pred_region
      %72 = dma.done [#allocation7], 4096
    $region49: #{lstm_forward.1} parent=1 // pred_fallthru
      _
    %v74 = vld [vmem:[%s0] sm:$0xf]
    %v75 = vld [vmem:[%s0 + $0x4] sm:$0xf]
    %v76 = vld [vmem:[%s0 + $0x8] sm:$0xf]
    %v77 = vld [vmem:[%s0 + $0xc] sm:$0xf]
    %v78 = vld [vmem:[%s0 + $0x10] sm:$0xf]
    %v79 = vld [vmem:[%s0 + $0x14] sm:$0xf]
    %v80 = vld [vmem:[%s0 + $0x18] sm:$0xf]
    %v81 = vld [vmem:[%s0 + $0x1c] sm:$0xf]
    %v82 = vld [vmem:[%s0 + $0x20] sm:$0xf]
    %v83 = vld [vmem:[%s0 + $0x24] sm:$0xf]
    %v84 = vld [vmem:[%s0 + $0x28] sm:$0xf]
    %v85 = vld [vmem:[%s0 + $0x2c] sm:$0xf]
    %v86 = vld [vmem:[%s0 + $0x30] sm:$0xf]
    %v87 = vld [vmem:[%s0 + $0x34] sm:$0xf]
    %v88 = vld [vmem:[%s0 + $0x38] sm:$0xf]
    %v89 = vld [vmem:[%s0 + $0x3c] sm:$0xf]
    %v90 = vld [vmem:[%s1] sm:$0xff]
    %v91 = vld [vmem:[%s1 + $0x8] sm:$0xff]
    %v92 = vld [vmem:[%s3] sm:$0xf]
    %v94 = vlaneseq
    %v95 = vshrl.u32 %v94, 7
    %v96 = vsub.s32 0, %v95
    %v97 = vrot.slane %v92, %v96
    %v98 = vlaneseq
    %v99 = vshrl.u32 %v98, 7
    %v100 = vsub.s32 1, %v99
    %v101 = vrot.slane %v92, %v100
    %v102 = vlaneseq
    %v103 = vshrl.u32 %v102, 7
    %v104 = vsub.s32 2, %v103
    %v105 = vrot.slane %v92, %v104
    %v106 = vlaneseq
    %v107 = vshrl.u32 %v106, 7
    %v108 = vsub.s32 3, %v107
    %v109 = vrot.slane %v92, %v108
    %v130 = vunpack.c.l.b16 %v74
    %v131 = vunpack.c.l.b16 %v75
    %v132 = vunpack.c.l.b16 %v76
    %v133 = vunpack.c.l.b16 %v77
    %v134 = vunpack.c.l.b16 %v78
    %v135 = vunpack.c.l.b16 %v79
    %v136 = vunpack.c.l.b16 %v80
    %v137 = vunpack.c.l.b16 %v81
    %v138 = vunpack.c.l.b16 %v82
    %v139 = vunpack.c.l.b16 %v83
    %v140 = vunpack.c.l.b16 %v84
    %v141 = vunpack.c.l.b16 %v85
    %v142 = vunpack.c.l.b16 %v86
    %v143 = vunpack.c.l.b16 %v87
    %v144 = vunpack.c.l.b16 %v88
    %v145 = vunpack.c.l.b16 %v89
    %v146 = vpack.c.b16 %v131, %v130
    %v147 = vpack.c.b16 %v133, %v132
    %v148 = vpack.c.b16 %v135, %v134
    %v149 = vpack.c.b16 %v137, %v136
    %v150 = vpack.c.b16 %v139, %v138
    %v151 = vpack.c.b16 %v141, %v140
    %v152 = vpack.c.b16 %v143, %v142
    %v153 = vpack.c.b16 %v145, %v144
    %v156 = vunpack.c.l.b16 %v90
    %v157 = vunpack.c.h.b16 %v90
    %v158 = vunpack.c.l.b16 %v91
    %v159 = vunpack.c.h.b16 %v91
    %v160 = vpack.c.b16 %v156, %v156
    %v161 = vpack.c.b16 %v157, %v157
    %v162 = vpack.c.b16 %v158, %v158
    %v163 = vpack.c.b16 %v159, %v159
    %vm164 = vcmask 64512
    %v166 = vsel %vm164, %v146, 0
    %v169 = vsel %vm164, %v147, 0
    %v172 = vsel %vm164, %v148, 0
    %v175 = vsel %vm164, %v149, 0
    %v178 = vsel %vm164, %v150, 0
    %v181 = vsel %vm164, %v151, 0
    %v184 = vsel %vm164, %v152, 0
    %v187 = vsel %vm164, %v153, 0
    %vm189 = vcmask 1043456
    %v191 = vsel %vm189, %v160, 0
    %v194 = vsel %vm189, %v161, 0
    %v197 = vsel %vm189, %v162, 0
    %v200 = vsel %vm189, %v163, 0
    %202 = vmatprep.subr.bf16.mxu0 0
    %203 = vmatpush1.bf16.msra.mxu0 0
    %204 = vmatprep.subr.bf16.mxu0 0
    %205 = vmatpush1.bf16.msra.mxu0 0
    %206 = vmatprep.subr.bf16.mxu0 0
    %207 = vmatpush1.bf16.msra.mxu0 0
    %208 = vmatprep.subr.bf16.mxu0 0
    %209 = vmatpush1.bf16.msra.mxu0 0
    %210 = vmatprep.subr.bf16.mxu0 0
    %211 = vmatpush1.bf16.msra.mxu0 0
    %212 = vmatprep.subr.bf16.mxu0 0
    %213 = vmatpush1.bf16.msra.mxu0 0
    %214 = vmatprep.subr.bf16.mxu0 0
    %215 = vmatpush1.bf16.msra.mxu0 0
    %216 = vmatprep.subr.bf16.mxu0 %v194
    %217 = vmatpush1.bf16.msra.mxu0 %v191
    %218 = vmatprep.subr.bf16.mxu0 0
    %219 = vmatpush2.bf16.msra.mxu0 0
    %220 = vmatprep.subr.bf16.mxu0 0
    %221 = vmatpush2.bf16.msra.mxu0 0
    %222 = vmatprep.subr.bf16.mxu0 0
    %223 = vmatpush2.bf16.msra.mxu0 0
    %224 = vmatprep.subr.bf16.mxu0 0
    %225 = vmatpush2.bf16.msra.mxu0 0
    %226 = vmatprep.subr.bf16.mxu0 0
    %227 = vmatpush2.bf16.msra.mxu0 0
    %228 = vmatprep.subr.bf16.mxu0 0
    %229 = vmatpush2.bf16.msra.mxu0 0
    %230 = vmatprep.subr.bf16.mxu0 0
    %231 = vmatpush2.bf16.msra.mxu0 0
    %232 = vmatprep.subr.bf16.mxu0 0
    %233 = vmatpush2.bf16.msra.mxu0 0
    %234 = vmatprep.mubr.bf16.mxu0 0
    %235 = vmatmul.mubr.bf16.gmra.mxu0 %v166
    %v236 = vpop.f32.mrf.mxu0
    %v237 = vadd.f32 %v97, %v236
    %v238 = vpop.f32.mrf.mxu0
    %v239 = vadd.f32 %v101, %v238
    %v240 = vpop.f32.mrf.mxu0
    %v241 = vadd.f32 %v97, %v240
    %v242 = vpop.f32.mrf.mxu0
    %v243 = vadd.f32 %v101, %v242
    %244 = vmatprep.mubr.bf16.mxu0 0
    %245 = vmatmul.mubr.bf16.gmra.mxu0 %v169
    %v246 = vpop.f32.mrf.mxu0
    %v247 = vadd.f32 %v97, %v246
    %v248 = vpop.f32.mrf.mxu0
    %v249 = vadd.f32 %v101, %v248
    %v250 = vpop.f32.mrf.mxu0
    %v251 = vadd.f32 %v97, %v250
    %v252 = vpop.f32.mrf.mxu0
    %v253 = vadd.f32 %v101, %v252
    %254 = vmatprep.mubr.bf16.mxu0 0
    %255 = vmatmul.mubr.bf16.gmra.mxu0 %v172
    %v256 = vpop.f32.mrf.mxu0
    %v257 = vadd.f32 %v97, %v256
    %v258 = vpop.f32.mrf.mxu0
    %v259 = vadd.f32 %v101, %v258
    %v260 = vpop.f32.mrf.mxu0
    %v261 = vadd.f32 %v97, %v260
    %v262 = vpop.f32.mrf.mxu0
    %v263 = vadd.f32 %v101, %v262
    %264 = vmatprep.mubr.bf16.mxu0 0
    %265 = vmatmul.mubr.bf16.gmra.mxu0 %v175
    %v266 = vpop.f32.mrf.mxu0
    %v267 = vadd.f32 %v97, %v266
    %v268 = vpop.f32.mrf.mxu0
    %v269 = vadd.f32 %v101, %v268
    %v270 = vpop.f32.mrf.mxu0
    %v271 = vadd.f32 %v97, %v270
    %v272 = vpop.f32.mrf.mxu0
    %v273 = vadd.f32 %v101, %v272
    %274 = vmatprep.mubr.bf16.mxu0 0
    %275 = vmatmul.mubr.bf16.gmra.mxu0 %v178
    %v276 = vpop.f32.mrf.mxu0
    %v277 = vadd.f32 %v97, %v276
    %v278 = vpop.f32.mrf.mxu0
    %v279 = vadd.f32 %v101, %v278
    %v280 = vpop.f32.mrf.mxu0
    %v281 = vadd.f32 %v97, %v280
    %v282 = vpop.f32.mrf.mxu0
    %v283 = vadd.f32 %v101, %v282
    %284 = vmatprep.mubr.bf16.mxu0 0
    %285 = vmatmul.mubr.bf16.gmra.mxu0 %v181
    %v286 = vpop.f32.mrf.mxu0
    %v287 = vadd.f32 %v97, %v286
    %v288 = vpop.f32.mrf.mxu0
    %v289 = vadd.f32 %v101, %v288
    %v290 = vpop.f32.mrf.mxu0
    %v291 = vadd.f32 %v97, %v290
    %v292 = vpop.f32.mrf.mxu0
    %v293 = vadd.f32 %v101, %v292
    %294 = vmatprep.mubr.bf16.mxu0 0
    %295 = vmatmul.mubr.bf16.gmra.mxu0 %v184
    %v296 = vpop.f32.mrf.mxu0
    %v297 = vadd.f32 %v97, %v296
    %v298 = vpop.f32.mrf.mxu0
    %v299 = vadd.f32 %v101, %v298
    %v300 = vpop.f32.mrf.mxu0
    %v301 = vadd.f32 %v97, %v300
    %v302 = vpop.f32.mrf.mxu0
    %v303 = vadd.f32 %v101, %v302
    %304 = vmatprep.mubr.bf16.mxu0 0
    %305 = vmatmul.mubr.bf16.gmra.mxu0 %v187
    %v306 = vpop.f32.mrf.mxu0
    %v307 = vadd.f32 %v97, %v306
    %v308 = vpop.f32.mrf.mxu0
    %v309 = vadd.f32 %v101, %v308
    %v310 = vpop.f32.mrf.mxu0
    %v311 = vadd.f32 %v97, %v310
    %v312 = vpop.f32.mrf.mxu0
    %v313 = vadd.f32 %v101, %v312
    %314 = vdwg.mxu0
    %315 = vmatprep.subr.bf16.mxu0 0
    %316 = vmatpush1.bf16.msra.mxu0 0
    %317 = vmatprep.subr.bf16.mxu0 0
    %318 = vmatpush1.bf16.msra.mxu0 0
    %319 = vmatprep.subr.bf16.mxu0 0
    %320 = vmatpush1.bf16.msra.mxu0 0
    %321 = vmatprep.subr.bf16.mxu0 0
    %322 = vmatpush1.bf16.msra.mxu0 0
    %323 = vmatprep.subr.bf16.mxu0 0
    %324 = vmatpush1.bf16.msra.mxu0 0
    %325 = vmatprep.subr.bf16.mxu0 0
    %326 = vmatpush1.bf16.msra.mxu0 0
    %327 = vmatprep.subr.bf16.mxu0 0
    %328 = vmatpush1.bf16.msra.mxu0 0
    %329 = vmatprep.subr.bf16.mxu0 %v200
    %330 = vmatpush1.bf16.msra.mxu0 %v197
    %331 = vmatprep.subr.bf16.mxu0 0
    %332 = vmatpush2.bf16.msra.mxu0 0
    %333 = vmatprep.subr.bf16.mxu0 0
    %334 = vmatpush2.bf16.msra.mxu0 0
    %335 = vmatprep.subr.bf16.mxu0 0
    %336 = vmatpush2.bf16.msra.mxu0 0
    %337 = vmatprep.subr.bf16.mxu0 0
    %338 = vmatpush2.bf16.msra.mxu0 0
    %339 = vmatprep.subr.bf16.mxu0 0
    %340 = vmatpush2.bf16.msra.mxu0 0
    %341 = vmatprep.subr.bf16.mxu0 0
    %342 = vmatpush2.bf16.msra.mxu0 0
    %343 = vmatprep.subr.bf16.mxu0 0
    %344 = vmatpush2.bf16.msra.mxu0 0
    %345 = vmatprep.subr.bf16.mxu0 0
    %346 = vmatpush2.bf16.msra.mxu0 0
    %347 = vmatprep.mubr.bf16.mxu0 0
    %348 = vmatmul.mubr.bf16.gmra.mxu0 %v166
    %v349 = vpop.f32.mrf.mxu0
    %v350 = vadd.f32 %v105, %v349
    %v351 = vpop.f32.mrf.mxu0
    %v352 = vadd.f32 %v109, %v351
    %v353 = vpop.f32.mrf.mxu0
    %v354 = vadd.f32 %v105, %v353
    %v355 = vpop.f32.mrf.mxu0
    %v356 = vadd.f32 %v109, %v355
    %357 = vmatprep.mubr.bf16.mxu0 0
    %358 = vmatmul.mubr.bf16.gmra.mxu0 %v169
    %v359 = vpop.f32.mrf.mxu0
    %v360 = vadd.f32 %v105, %v359
    %v361 = vpop.f32.mrf.mxu0
    %v362 = vadd.f32 %v109, %v361
    %v363 = vpop.f32.mrf.mxu0
    %v364 = vadd.f32 %v105, %v363
    %v365 = vpop.f32.mrf.mxu0
    %v366 = vadd.f32 %v109, %v365
    %367 = vmatprep.mubr.bf16.mxu0 0
    %368 = vmatmul.mubr.bf16.gmra.mxu0 %v172
    %v369 = vpop.f32.mrf.mxu0
    %v370 = vadd.f32 %v105, %v369
    %v371 = vpop.f32.mrf.mxu0
    %v372 = vadd.f32 %v109, %v371
    %v373 = vpop.f32.mrf.mxu0
    %v374 = vadd.f32 %v105, %v373
    %v375 = vpop.f32.mrf.mxu0
    %v376 = vadd.f32 %v109, %v375
    %377 = vmatprep.mubr.bf16.mxu0 0
    %378 = vmatmul.mubr.bf16.gmra.mxu0 %v175
    %v379 = vpop.f32.mrf.mxu0
    %v380 = vadd.f32 %v105, %v379
    %v381 = vpop.f32.mrf.mxu0
    %v382 = vadd.f32 %v109, %v381
    %v383 = vpop.f32.mrf.mxu0
    %v384 = vadd.f32 %v105, %v383
    %v385 = vpop.f32.mrf.mxu0
    %v386 = vadd.f32 %v109, %v385
    %387 = vmatprep.mubr.bf16.mxu0 0
    %388 = vmatmul.mubr.bf16.gmra.mxu0 %v178
    %v389 = vpop.f32.mrf.mxu0
    %v390 = vadd.f32 %v105, %v389
    %v391 = vpop.f32.mrf.mxu0
    %v392 = vadd.f32 %v109, %v391
    %v393 = vpop.f32.mrf.mxu0
    %v394 = vadd.f32 %v105, %v393
    %v395 = vpop.f32.mrf.mxu0
    %v396 = vadd.f32 %v109, %v395
    %397 = vmatprep.mubr.bf16.mxu0 0
    %398 = vmatmul.mubr.bf16.gmra.mxu0 %v181
    %v399 = vpop.f32.mrf.mxu0
    %v400 = vadd.f32 %v105, %v399
    %v401 = vpop.f32.mrf.mxu0
    %v402 = vadd.f32 %v109, %v401
    %v403 = vpop.f32.mrf.mxu0
    %v404 = vadd.f32 %v105, %v403
    %v405 = vpop.f32.mrf.mxu0
    %v406 = vadd.f32 %v109, %v405
    %407 = vmatprep.mubr.bf16.mxu0 0
    %408 = vmatmul.mubr.bf16.gmra.mxu0 %v184
    %v409 = vpop.f32.mrf.mxu0
    %v410 = vadd.f32 %v105, %v409
    %v411 = vpop.f32.mrf.mxu0
    %v412 = vadd.f32 %v109, %v411
    %v413 = vpop.f32.mrf.mxu0
    %v414 = vadd.f32 %v105, %v413
    %v415 = vpop.f32.mrf.mxu0
    %v416 = vadd.f32 %v109, %v415
    %417 = vmatprep.mubr.bf16.mxu0 0
    %418 = vmatmul.mubr.bf16.gmra.mxu0 %v187
    %v419 = vpop.f32.mrf.mxu0
    %v420 = vadd.f32 %v105, %v419
    %v421 = vpop.f32.mrf.mxu0
    %v422 = vadd.f32 %v109, %v421
    %v423 = vpop.f32.mrf.mxu0
    %v424 = vadd.f32 %v105, %v423
    %v425 = vpop.f32.mrf.mxu0
    %v426 = vadd.f32 %v109, %v425
    %427 = vdwg.mxu0
    %428 = vst [vmem:[#allocation2] sm:$0xff] %v237
    %429 = vst [vmem:[#allocation2 + $0x8] sm:$0xff] %v239
    %430 = vst [vmem:[#allocation2 + $0x10] sm:$0xff] %v350
    %431 = vst [vmem:[#allocation2 + $0x18] sm:$0xff] %v352
    %432 = vst [vmem:[#allocation2 + $0x20] sm:$0xff] %v241
    %433 = vst [vmem:[#allocation2 + $0x28] sm:$0xff] %v243
    %434 = vst [vmem:[#allocation2 + $0x30] sm:$0xff] %v354
    %435 = vst [vmem:[#allocation2 + $0x38] sm:$0xff] %v356
    %436 = vst [vmem:[#allocation2 + $0x40] sm:$0xff] %v247
    %437 = vst [vmem:[#allocation2 + $0x48] sm:$0xff] %v249
    %438 = vst [vmem:[#allocation2 + $0x50] sm:$0xff] %v360
    %439 = vst [vmem:[#allocation2 + $0x58] sm:$0xff] %v362
    %440 = vst [vmem:[#allocation2 + $0x60] sm:$0xff] %v251
    %441 = vst [vmem:[#allocation2 + $0x68] sm:$0xff] %v253
    %442 = vst [vmem:[#allocation2 + $0x70] sm:$0xff] %v364
    %443 = vst [vmem:[#allocation2 + $0x78] sm:$0xff] %v366
    %444 = vst [vmem:[#allocation2 + $0x80] sm:$0xff] %v257
    %445 = vst [vmem:[#allocation2 + $0x88] sm:$0xff] %v259
    %446 = vst [vmem:[#allocation2 + $0x90] sm:$0xff] %v370
    %447 = vst [vmem:[#allocation2 + $0x98] sm:$0xff] %v372
    %448 = vst [vmem:[#allocation2 + $0xa0] sm:$0xff] %v261
    %449 = vst [vmem:[#allocation2 + $0xa8] sm:$0xff] %v263
    %450 = vst [vmem:[#allocation2 + $0xb0] sm:$0xff] %v374
    %451 = vst [vmem:[#allocation2 + $0xb8] sm:$0xff] %v376
    %452 = vst [vmem:[#allocation2 + $0xc0] sm:$0xff] %v267
    %453 = vst [vmem:[#allocation2 + $0xc8] sm:$0xff] %v269
    %454 = vst [vmem:[#allocation2 + $0xd0] sm:$0xff] %v380
    %455 = vst [vmem:[#allocation2 + $0xd8] sm:$0xff] %v382
    %456 = vst [vmem:[#allocation2 + $0xe0] sm:$0xff] %v271
    %457 = vst [vmem:[#allocation2 + $0xe8] sm:$0xff] %v273
    %458 = vst [vmem:[#allocation2 + $0xf0] sm:$0xff] %v384
    %459 = vst [vmem:[#allocation2 + $0xf8] sm:$0xff] %v386
    %460 = vst [vmem:[#allocation2 + $0x100] sm:$0xff] %v277
    %461 = vst [vmem:[#allocation2 + $0x108] sm:$0xff] %v279
    %462 = vst [vmem:[#allocation2 + $0x110] sm:$0xff] %v390
    %463 = vst [vmem:[#allocation2 + $0x118] sm:$0xff] %v392
    %464 = vst [vmem:[#allocation2 + $0x120] sm:$0xff] %v281
    %465 = vst [vmem:[#allocation2 + $0x128] sm:$0xff] %v283
    %466 = vst [vmem:[#allocation2 + $0x130] sm:$0xff] %v394
    %467 = vst [vmem:[#allocation2 + $0x138] sm:$0xff] %v396
    %468 = vst [vmem:[#allocation2 + $0x140] sm:$0xff] %v287
    %469 = vst [vmem:[#allocation2 + $0x148] sm:$0xff] %v289
    %470 = vst [vmem:[#allocation2 + $0x150] sm:$0xff] %v400
    %471 = vst [vmem:[#allocation2 + $0x158] sm:$0xff] %v402
    %472 = vst [vmem:[#allocation2 + $0x160] sm:$0xff] %v291
    %473 = vst [vmem:[#allocation2 + $0x168] sm:$0xff] %v293
    %474 = vst [vmem:[#allocation2 + $0x170] sm:$0xff] %v404
    %475 = vst [vmem:[#allocation2 + $0x178] sm:$0xff] %v406
    %476 = vst [vmem:[#allocation2 + $0x180] sm:$0xff] %v297
    %477 = vst [vmem:[#allocation2 + $0x188] sm:$0xff] %v299
    %478 = vst [vmem:[#allocation2 + $0x190] sm:$0xff] %v410
    %479 = vst [vmem:[#allocation2 + $0x198] sm:$0xff] %v412
    %480 = vst [vmem:[#allocation2 + $0x1a0] sm:$0xff] %v301
    %481 = vst [vmem:[#allocation2 + $0x1a8] sm:$0xff] %v303
    %482 = vst [vmem:[#allocation2 + $0x1b0] sm:$0xff] %v414
    %483 = vst [vmem:[#allocation2 + $0x1b8] sm:$0xff] %v416
    %484 = vst [vmem:[#allocation2 + $0x1c0] sm:$0xff] %v307
    %485 = vst [vmem:[#allocation2 + $0x1c8] sm:$0xff] %v309
    %486 = vst [vmem:[#allocation2 + $0x1d0] sm:$0xff] %v420
    %487 = vst [vmem:[#allocation2 + $0x1d8] sm:$0xff] %v422
    %488 = vst [vmem:[#allocation2 + $0x1e0] sm:$0xff] %v311
    %489 = vst [vmem:[#allocation2 + $0x1e8] sm:$0xff] %v313
    %490 = vst [vmem:[#allocation2 + $0x1f0] sm:$0xff] %v424
    %491 = vst [vmem:[#allocation2 + $0x1f8] sm:$0xff] %v426
    loop: start=0, step=1, limit=2
    $region50: #{lstm_forward.1} parent=1 // loop_pre_header
      _
    $region51: #{lstm_forward.1} parent=1 // loop_header
      %s493 = sphi 0, %s497
      %p494 = scmp.ge.s32.totalorder %s493, 2
      %v498 = vphi 0.0, %v1933
      %v499 = vphi 0.0, %v1934
      %v500 = vphi 0.0, %v1929
      %v501 = vphi 0.0, %v1930
    $region52: #{lstm_forward.1} parent=1 // loop_header_branch
      %496 = sbr.rel (%p494) target = $region56
    $region53: #{lstm_forward.1} parent=1 // loop_body
      %s502 = smul.u32 %s493, 64
      %s503 = sshra.s32 %s502, 3
      %s504 = sand.u32 %s502, 7
      %s505 = smul.u32 %s503, 4
      %s506 = smul.addr %s505, 8
      %s507 = scalar_lea.vmem [#allocation2], %s506
      %v508 = vld [vmem:[%s507] sm:$0xff]
      %v509 = vld [vmem:[%s507 + $0x8] sm:$0xff]
      %v510 = vld [vmem:[%s507 + $0x10] sm:$0xff]
      %v511 = vld [vmem:[%s507 + $0x18] sm:$0xff]
      %v512 = vld [vmem:[%s507 + $0x20] sm:$0xff]
      %v513 = vld [vmem:[%s507 + $0x28] sm:$0xff]
      %v514 = vld [vmem:[%s507 + $0x30] sm:$0xff]
      %v515 = vld [vmem:[%s507 + $0x38] sm:$0xff]
      %v516 = vpack.c.bf16 %v499, %v498
      %v517 = vld [vmem:[#allocation4] sm:$0xff]
      %v518 = vld [vmem:[#allocation4 + $0x8] sm:$0xff]
      %v519 = vld [vmem:[#allocation4 + $0x10] sm:$0xff]
      %v520 = vld [vmem:[#allocation4 + $0x18] sm:$0xff]
      %v521 = vld [vmem:[#allocation4 + $0x20] sm:$0xff]
      %v522 = vld [vmem:[#allocation4 + $0x28] sm:$0xff]
      %v523 = vld [vmem:[#allocation4 + $0x30] sm:$0xff]
      %v524 = vld [vmem:[#allocation4 + $0x38] sm:$0xff]
      %v525 = vld [vmem:[#allocation4 + $0x40] sm:$0xff]
      %v526 = vld [vmem:[#allocation4 + $0x48] sm:$0xff]
      %v527 = vld [vmem:[#allocation4 + $0x50] sm:$0xff]
      %v528 = vld [vmem:[#allocation4 + $0x58] sm:$0xff]
      %v529 = vld [vmem:[#allocation4 + $0x60] sm:$0xff]
      %v530 = vld [vmem:[#allocation4 + $0x68] sm:$0xff]
      %v531 = vld [vmem:[#allocation4 + $0x70] sm:$0xff]
      %v532 = vld [vmem:[#allocation4 + $0x78] sm:$0xff]
      %v533 = vld [vmem:[#allocation4 + $0x80] sm:$0xff]
      %v534 = vld [vmem:[#allocation4 + $0x88] sm:$0xff]
      %v535 = vld [vmem:[#allocation4 + $0x90] sm:$0xff]
      %v536 = vld [vmem:[#allocation4 + $0x98] sm:$0xff]
      %v537 = vld [vmem:[#allocation4 + $0xa0] sm:$0xff]
      %v538 = vld [vmem:[#allocation4 + $0xa8] sm:$0xff]
      %v539 = vld [vmem:[#allocation4 + $0xb0] sm:$0xff]
      %v540 = vld [vmem:[#allocation4 + $0xb8] sm:$0xff]
      %v541 = vld [vmem:[#allocation4 + $0xc0] sm:$0xff]
      %v542 = vld [vmem:[#allocation4 + $0xc8] sm:$0xff]
      %v543 = vld [vmem:[#allocation4 + $0xd0] sm:$0xff]
      %v544 = vld [vmem:[#allocation4 + $0xd8] sm:$0xff]
      %v545 = vld [vmem:[#allocation4 + $0xe0] sm:$0xff]
      %v546 = vld [vmem:[#allocation4 + $0xe8] sm:$0xff]
      %v547 = vld [vmem:[#allocation4 + $0xf0] sm:$0xff]
      %v548 = vld [vmem:[#allocation4 + $0xf8] sm:$0xff]
      %v581 = vunpack.c.l.b16 %v517
      %v582 = vunpack.c.h.b16 %v517
      %v583 = vunpack.c.l.b16 %v518
      %v584 = vunpack.c.h.b16 %v518
      %v585 = vunpack.c.l.b16 %v519
      %v586 = vunpack.c.h.b16 %v519
      %v587 = vunpack.c.l.b16 %v520
      %v588 = vunpack.c.h.b16 %v520
      %v589 = vunpack.c.l.b16 %v521
      %v590 = vunpack.c.h.b16 %v521
      %v591 = vunpack.c.l.b16 %v522
      %v592 = vunpack.c.h.b16 %v522
      %v593 = vunpack.c.l.b16 %v523
      %v594 = vunpack.c.h.b16 %v523
      %v595 = vunpack.c.l.b16 %v524
      %v596 = vunpack.c.h.b16 %v524
      %v597 = vunpack.c.l.b16 %v525
      %v598 = vunpack.c.h.b16 %v525
      %v599 = vunpack.c.l.b16 %v526
      %v600 = vunpack.c.h.b16 %v526
      %v601 = vunpack.c.l.b16 %v527
      %v602 = vunpack.c.h.b16 %v527
      %v603 = vunpack.c.l.b16 %v528
      %v604 = vunpack.c.h.b16 %v528
      %v605 = vunpack.c.l.b16 %v529
      %v606 = vunpack.c.h.b16 %v529
      %v607 = vunpack.c.l.b16 %v530
      %v608 = vunpack.c.h.b16 %v530
      %v609 = vunpack.c.l.b16 %v531
      %v610 = vunpack.c.h.b16 %v531
      %v611 = vunpack.c.l.b16 %v532
      %v612 = vunpack.c.h.b16 %v532
      %v613 = vunpack.c.l.b16 %v533
      %v614 = vunpack.c.h.b16 %v533
      %v615 = vunpack.c.l.b16 %v534
      %v616 = vunpack.c.h.b16 %v534
      %v617 = vunpack.c.l.b16 %v535
      %v618 = vunpack.c.h.b16 %v535
      %v619 = vunpack.c.l.b16 %v536
      %v620 = vunpack.c.h.b16 %v536
      %v621 = vunpack.c.l.b16 %v537
      %v622 = vunpack.c.h.b16 %v537
      %v623 = vunpack.c.l.b16 %v538
      %v624 = vunpack.c.h.b16 %v538
      %v625 = vunpack.c.l.b16 %v539
      %v626 = vunpack.c.h.b16 %v539
      %v627 = vunpack.c.l.b16 %v540
      %v628 = vunpack.c.h.b16 %v540
      %v629 = vunpack.c.l.b16 %v541
      %v630 = vunpack.c.h.b16 %v541
      %v631 = vunpack.c.l.b16 %v542
      %v632 = vunpack.c.h.b16 %v542
      %v633 = vunpack.c.l.b16 %v543
      %v634 = vunpack.c.h.b16 %v543
      %v635 = vunpack.c.l.b16 %v544
      %v636 = vunpack.c.h.b16 %v544
      %v637 = vunpack.c.l.b16 %v545
      %v638 = vunpack.c.h.b16 %v545
      %v639 = vunpack.c.l.b16 %v546
      %v640 = vunpack.c.h.b16 %v546
      %v641 = vunpack.c.l.b16 %v547
      %v642 = vunpack.c.h.b16 %v547
      %v643 = vunpack.c.l.b16 %v548
      %v644 = vunpack.c.h.b16 %v548
      %v645 = vpack.c.b16 %v585, %v581
      %v646 = vpack.c.b16 %v586, %v582
      %v647 = vpack.c.b16 %v587, %v583
      %v648 = vpack.c.b16 %v588, %v584
      %v649 = vpack.c.b16 %v593, %v589
      %v650 = vpack.c.b16 %v594, %v590
      %v651 = vpack.c.b16 %v595, %v591
      %v652 = vpack.c.b16 %v596, %v592
      %v653 = vpack.c.b16 %v601, %v597
      %v654 = vpack.c.b16 %v602, %v598
      %v655 = vpack.c.b16 %v603, %v599
      %v656 = vpack.c.b16 %v604, %v600
      %v657 = vpack.c.b16 %v609, %v605
      %v658 = vpack.c.b16 %v610, %v606
      %v659 = vpack.c.b16 %v611, %v607
      %v660 = vpack.c.b16 %v612, %v608
      %v661 = vpack.c.b16 %v617, %v613
      %v662 = vpack.c.b16 %v618, %v614
      %v663 = vpack.c.b16 %v619, %v615
      %v664 = vpack.c.b16 %v620, %v616
      %v665 = vpack.c.b16 %v625, %v621
      %v666 = vpack.c.b16 %v626, %v622
      %v667 = vpack.c.b16 %v627, %v623
      %v668 = vpack.c.b16 %v628, %v624
      %v669 = vpack.c.b16 %v633, %v629
      %v670 = vpack.c.b16 %v634, %v630
      %v671 = vpack.c.b16 %v635, %v631
      %v672 = vpack.c.b16 %v636, %v632
      %v673 = vpack.c.b16 %v641, %v637
      %v674 = vpack.c.b16 %v642, %v638
      %v675 = vpack.c.b16 %v643, %v639
      %v676 = vpack.c.b16 %v644, %v640
      %709 = vmatprep.subr.bf16.mxu0 %v674
      %710 = vmatpush1.bf16.msra.mxu0 %v673
      %711 = vmatprep.subr.bf16.mxu0 %v670
      %712 = vmatpush1.bf16.msra.mxu0 %v669
      %713 = vmatprep.subr.bf16.mxu0 %v666
      %714 = vmatpush1.bf16.msra.mxu0 %v665
      %715 = vmatprep.subr.bf16.mxu0 %v662
      %716 = vmatpush1.bf16.msra.mxu0 %v661
      %717 = vmatprep.subr.bf16.mxu0 %v658
      %718 = vmatpush1.bf16.msra.mxu0 %v657
      %719 = vmatprep.subr.bf16.mxu0 %v654
      %720 = vmatpush1.bf16.msra.mxu0 %v653
      %721 = vmatprep.subr.bf16.mxu0 %v650
      %722 = vmatpush1.bf16.msra.mxu0 %v649
      %723 = vmatprep.subr.bf16.mxu0 %v646
      %724 = vmatpush1.bf16.msra.mxu0 %v645
      %725 = vmatprep.subr.bf16.mxu0 0
      %726 = vmatpush2.bf16.msra.mxu0 0
      %727 = vmatprep.subr.bf16.mxu0 0
      %728 = vmatpush2.bf16.msra.mxu0 0
      %729 = vmatprep.subr.bf16.mxu0 0
      %730 = vmatpush2.bf16.msra.mxu0 0
      %731 = vmatprep.subr.bf16.mxu0 0
      %732 = vmatpush2.bf16.msra.mxu0 0
      %733 = vmatprep.subr.bf16.mxu0 0
      %734 = vmatpush2.bf16.msra.mxu0 0
      %735 = vmatprep.subr.bf16.mxu0 0
      %736 = vmatpush2.bf16.msra.mxu0 0
      %737 = vmatprep.subr.bf16.mxu0 0
      %738 = vmatpush2.bf16.msra.mxu0 0
      %739 = vmatprep.subr.bf16.mxu0 0
      %740 = vmatpush2.bf16.msra.mxu0 0
      %741 = vmatprep.mubr.bf16.mxu0 0
      %742 = vmatmul.mubr.bf16.gmra.mxu0 %v516
      %v743 = vpop.f32.mrf.mxu0
      %v744 = vadd.f32 0.0, %v743
      %v745 = vpop.f32.mrf.mxu0
      %v746 = vadd.f32 0.0, %v745
      %v747 = vpop.f32.mrf.mxu0
      %v748 = vadd.f32 0.0, %v747
      %v749 = vpop.f32.mrf.mxu0
      %v750 = vadd.f32 0.0, %v749
      %751 = vdwg.mxu0
      %752 = vmatprep.subr.bf16.mxu0 %v676
      %753 = vmatpush1.bf16.msra.mxu0 %v675
      %754 = vmatprep.subr.bf16.mxu0 %v672
      %755 = vmatpush1.bf16.msra.mxu0 %v671
      %756 = vmatprep.subr.bf16.mxu0 %v668
      %757 = vmatpush1.bf16.msra.mxu0 %v667
      %758 = vmatprep.subr.bf16.mxu0 %v664
      %759 = vmatpush1.bf16.msra.mxu0 %v663
      %760 = vmatprep.subr.bf16.mxu0 %v660
      %761 = vmatpush1.bf16.msra.mxu0 %v659
      %762 = vmatprep.subr.bf16.mxu0 %v656
      %763 = vmatpush1.bf16.msra.mxu0 %v655
      %764 = vmatprep.subr.bf16.mxu0 %v652
      %765 = vmatpush1.bf16.msra.mxu0 %v651
      %766 = vmatprep.subr.bf16.mxu0 %v648
      %767 = vmatpush1.bf16.msra.mxu0 %v647
      %768 = vmatprep.subr.bf16.mxu0 0
      %769 = vmatpush2.bf16.msra.mxu0 0
      %770 = vmatprep.subr.bf16.mxu0 0
      %771 = vmatpush2.bf16.msra.mxu0 0
      %772 = vmatprep.subr.bf16.mxu0 0
      %773 = vmatpush2.bf16.msra.mxu0 0
      %774 = vmatprep.subr.bf16.mxu0 0
      %775 = vmatpush2.bf16.msra.mxu0 0
      %776 = vmatprep.subr.bf16.mxu0 0
      %777 = vmatpush2.bf16.msra.mxu0 0
      %778 = vmatprep.subr.bf16.mxu0 0
      %779 = vmatpush2.bf16.msra.mxu0 0
      %780 = vmatprep.subr.bf16.mxu0 0
      %781 = vmatpush2.bf16.msra.mxu0 0
      %782 = vmatprep.subr.bf16.mxu0 0
      %783 = vmatpush2.bf16.msra.mxu0 0
      %784 = vmatprep.mubr.bf16.mxu0 0
      %785 = vmatmul.mubr.bf16.gmra.mxu0 %v516
      %v786 = vpop.f32.mrf.mxu0
      %v787 = vadd.f32 0.0, %v786
      %v788 = vpop.f32.mrf.mxu0
      %v789 = vadd.f32 0.0, %v788
      %v790 = vpop.f32.mrf.mxu0
      %v791 = vadd.f32 0.0, %v790
      %v792 = vpop.f32.mrf.mxu0
      %v793 = vadd.f32 0.0, %v792
      %794 = vdwg.mxu0
      %v795 = vadd.f32 %v508, %v744
      %v796 = vadd.f32 %v509, %v746
      %v797 = vadd.f32 %v510, %v787
      %v798 = vadd.f32 %v511, %v789
      %v799 = vadd.f32 %v512, %v748
      %v800 = vadd.f32 %v513, %v750
      %v801 = vadd.f32 %v514, %v791
      %v802 = vadd.f32 %v515, %v793
      %v803 = vxor.u32 %v795, 2147483648
      %v804 = vxor.u32 %v796, 2147483648
      %v805 = vxor.u32 %v797, 2147483648
      %v806 = vxor.u32 %v799, 2147483648
      %v807 = vxor.u32 %v800, 2147483648
      %v808 = vxor.u32 %v801, 2147483648
      %v809 = vmul.f32 %v803, 1.442695
      %v810 = vpow.pop %v809
      %v811 = vmul.f32 %v804, 1.442695
      %v812 = vpow.pop %v811
      %v813 = vmul.f32 %v805, 1.442695
      %v814 = vpow.pop %v813
      %v815 = vmul.f32 %v806, 1.442695
      %v816 = vpow.pop %v815
      %v817 = vmul.f32 %v807, 1.442695
      %v818 = vpow.pop %v817
      %v819 = vmul.f32 %v808, 1.442695
      %v820 = vpow.pop %v819
      %v821 = vadd.f32 %v810, 1.0
      %v822 = vadd.f32 %v812, 1.0
      %v823 = vadd.f32 %v814, 1.0
      %v824 = vadd.f32 %v816, 1.0
      %v825 = vadd.f32 %v818, 1.0
      %v826 = vadd.f32 %v820, 1.0
      %v827 = vrcp.pop %v821
      %v828 = vmul.f32 1.0, %v827
      %v829 = vrcp.pop %v822
      %v830 = vmul.f32 1.0, %v829
      %v831 = vrcp.pop %v823
      %v832 = vmul.f32 1.0, %v831
      %v833 = vrcp.pop %v824
      %v834 = vmul.f32 1.0, %v833
      %v835 = vrcp.pop %v825
      %v836 = vmul.f32 1.0, %v835
      %v837 = vrcp.pop %v826
      %v838 = vmul.f32 1.0, %v837
      %v839 = vtanh.pop %v798
      %v840 = vtanh.pop %v802
      %v841 = vmul.f32 %v830, %v500
      %v842 = vmul.f32 %v836, %v501
      %v843 = vmul.f32 %v828, %v839
      %v844 = vmul.f32 %v834, %v840
      %v845 = vadd.f32 %v841, %v843
      %v846 = vadd.f32 %v842, %v844
      %v847 = vtanh.pop %v845
      %v848 = vtanh.pop %v846
      %v849 = vmul.f32 %v832, %v847
      %v850 = vmul.f32 %v838, %v848
      %v851 = vpack.c.bf16 %v850, %v849
      %v853 = vunpack.c.l.b16 %v851
      %v854 = vunpack.c.h.b16 %v851
      %v855 = vpack.c.b16 %v853, %v853
      %v856 = vpack.c.b16 %v854, %v854
      %s859 = smul.addr %s503, 4
      %s860 = scalar_lea.vmem [#allocation3], %s859
      %861 = vst [vmem:[%s860] sm:$0xf] %v855
      %862 = vst [vmem:[%s860 + $0x4] sm:$0xf] %v856
      %s863 = smul.u32 %s493, 4
      %s864 = sadd.s32 %s863, 1
      %s865 = smul.u32 %s864, 16
      %s866 = sshra.s32 %s865, 3
      %s867 = sand.u32 %s865, 7
      %s868 = smul.u32 %s866, 4
      %s869 = smul.addr %s868, 8
      %s870 = scalar_lea.vmem [#allocation2], %s869
      %v871 = vld [vmem:[%s870] sm:$0xff]
      %v872 = vld [vmem:[%s870 + $0x8] sm:$0xff]
      %v873 = vld [vmem:[%s870 + $0x10] sm:$0xff]
      %v874 = vld [vmem:[%s870 + $0x18] sm:$0xff]
      %v875 = vld [vmem:[%s870 + $0x20] sm:$0xff]
      %v876 = vld [vmem:[%s870 + $0x28] sm:$0xff]
      %v877 = vld [vmem:[%s870 + $0x30] sm:$0xff]
      %v878 = vld [vmem:[%s870 + $0x38] sm:$0xff]
      %v879 = vld [vmem:[#allocation4] sm:$0xff]
      %v880 = vld [vmem:[#allocation4 + $0x8] sm:$0xff]
      %v881 = vld [vmem:[#allocation4 + $0x10] sm:$0xff]
      %v882 = vld [vmem:[#allocation4 + $0x18] sm:$0xff]
      %v883 = vld [vmem:[#allocation4 + $0x20] sm:$0xff]
      %v884 = vld [vmem:[#allocation4 + $0x28] sm:$0xff]
      %v885 = vld [vmem:[#allocation4 + $0x30] sm:$0xff]
      %v886 = vld [vmem:[#allocation4 + $0x38] sm:$0xff]
      %v887 = vld [vmem:[#allocation4 + $0x40] sm:$0xff]
      %v888 = vld [vmem:[#allocation4 + $0x48] sm:$0xff]
      %v889 = vld [vmem:[#allocation4 + $0x50] sm:$0xff]
      %v890 = vld [vmem:[#allocation4 + $0x58] sm:$0xff]
      %v891 = vld [vmem:[#allocation4 + $0x60] sm:$0xff]
      %v892 = vld [vmem:[#allocation4 + $0x68] sm:$0xff]
      %v893 = vld [vmem:[#allocation4 + $0x70] sm:$0xff]
      %v894 = vld [vmem:[#allocation4 + $0x78] sm:$0xff]
      %v895 = vld [vmem:[#allocation4 + $0x80] sm:$0xff]
      %v896 = vld [vmem:[#allocation4 + $0x88] sm:$0xff]
      %v897 = vld [vmem:[#allocation4 + $0x90] sm:$0xff]
      %v898 = vld [vmem:[#allocation4 + $0x98] sm:$0xff]
      %v899 = vld [vmem:[#allocation4 + $0xa0] sm:$0xff]
      %v900 = vld [vmem:[#allocation4 + $0xa8] sm:$0xff]
      %v901 = vld [vmem:[#allocation4 + $0xb0] sm:$0xff]
      %v902 = vld [vmem:[#allocation4 + $0xb8] sm:$0xff]
      %v903 = vld [vmem:[#allocation4 + $0xc0] sm:$0xff]
      %v904 = vld [vmem:[#allocation4 + $0xc8] sm:$0xff]
      %v905 = vld [vmem:[#allocation4 + $0xd0] sm:$0xff]
      %v906 = vld [vmem:[#allocation4 + $0xd8] sm:$0xff]
      %v907 = vld [vmem:[#allocation4 + $0xe0] sm:$0xff]
      %v908 = vld [vmem:[#allocation4 + $0xe8] sm:$0xff]
      %v909 = vld [vmem:[#allocation4 + $0xf0] sm:$0xff]
      %v910 = vld [vmem:[#allocation4 + $0xf8] sm:$0xff]
      %v943 = vunpack.c.l.b16 %v879
      %v944 = vunpack.c.h.b16 %v879
      %v945 = vunpack.c.l.b16 %v880
      %v946 = vunpack.c.h.b16 %v880
      %v947 = vunpack.c.l.b16 %v881
      %v948 = vunpack.c.h.b16 %v881
      %v949 = vunpack.c.l.b16 %v882
      %v950 = vunpack.c.h.b16 %v882
      %v951 = vunpack.c.l.b16 %v883
      %v952 = vunpack.c.h.b16 %v883
      %v953 = vunpack.c.l.b16 %v884
      %v954 = vunpack.c.h.b16 %v884
      %v955 = vunpack.c.l.b16 %v885
      %v956 = vunpack.c.h.b16 %v885
      %v957 = vunpack.c.l.b16 %v886
      %v958 = vunpack.c.h.b16 %v886
      %v959 = vunpack.c.l.b16 %v887
      %v960 = vunpack.c.h.b16 %v887
      %v961 = vunpack.c.l.b16 %v888
      %v962 = vunpack.c.h.b16 %v888
      %v963 = vunpack.c.l.b16 %v889
      %v964 = vunpack.c.h.b16 %v889
      %v965 = vunpack.c.l.b16 %v890
      %v966 = vunpack.c.h.b16 %v890
      %v967 = vunpack.c.l.b16 %v891
      %v968 = vunpack.c.h.b16 %v891
      %v969 = vunpack.c.l.b16 %v892
      %v970 = vunpack.c.h.b16 %v892
      %v971 = vunpack.c.l.b16 %v893
      %v972 = vunpack.c.h.b16 %v893
      %v973 = vunpack.c.l.b16 %v894
      %v974 = vunpack.c.h.b16 %v894
      %v975 = vunpack.c.l.b16 %v895
      %v976 = vunpack.c.h.b16 %v895
      %v977 = vunpack.c.l.b16 %v896
      %v978 = vunpack.c.h.b16 %v896
      %v979 = vunpack.c.l.b16 %v897
      %v980 = vunpack.c.h.b16 %v897
      %v981 = vunpack.c.l.b16 %v898
      %v982 = vunpack.c.h.b16 %v898
      %v983 = vunpack.c.l.b16 %v899
      %v984 = vunpack.c.h.b16 %v899
      %v985 = vunpack.c.l.b16 %v900
      %v986 = vunpack.c.h.b16 %v900
      %v987 = vunpack.c.l.b16 %v901
      %v988 = vunpack.c.h.b16 %v901
      %v989 = vunpack.c.l.b16 %v902
      %v990 = vunpack.c.h.b16 %v902
      %v991 = vunpack.c.l.b16 %v903
      %v992 = vunpack.c.h.b16 %v903
      %v993 = vunpack.c.l.b16 %v904
      %v994 = vunpack.c.h.b16 %v904
      %v995 = vunpack.c.l.b16 %v905
      %v996 = vunpack.c.h.b16 %v905
      %v997 = vunpack.c.l.b16 %v906
      %v998 = vunpack.c.h.b16 %v906
      %v999 = vunpack.c.l.b16 %v907
      %v1000 = vunpack.c.h.b16 %v907
      %v1001 = vunpack.c.l.b16 %v908
      %v1002 = vunpack.c.h.b16 %v908
      %v1003 = vunpack.c.l.b16 %v909
      %v1004 = vunpack.c.h.b16 %v909
      %v1005 = vunpack.c.l.b16 %v910
      %v1006 = vunpack.c.h.b16 %v910
      %v1007 = vpack.c.b16 %v947, %v943
      %v1008 = vpack.c.b16 %v948, %v944
      %v1009 = vpack.c.b16 %v949, %v945
      %v1010 = vpack.c.b16 %v950, %v946
      %v1011 = vpack.c.b16 %v955, %v951
      %v1012 = vpack.c.b16 %v956, %v952
      %v1013 = vpack.c.b16 %v957, %v953
      %v1014 = vpack.c.b16 %v958, %v954
      %v1015 = vpack.c.b16 %v963, %v959
      %v1016 = vpack.c.b16 %v964, %v960
      %v1017 = vpack.c.b16 %v965, %v961
      %v1018 = vpack.c.b16 %v966, %v962
      %v1019 = vpack.c.b16 %v971, %v967
      %v1020 = vpack.c.b16 %v972, %v968
      %v1021 = vpack.c.b16 %v973, %v969
      %v1022 = vpack.c.b16 %v974, %v970
      %v1023 = vpack.c.b16 %v979, %v975
      %v1024 = vpack.c.b16 %v980, %v976
      %v1025 = vpack.c.b16 %v981, %v977
      %v1026 = vpack.c.b16 %v982, %v978
      %v1027 = vpack.c.b16 %v987, %v983
      %v1028 = vpack.c.b16 %v988, %v984
      %v1029 = vpack.c.b16 %v989, %v985
      %v1030 = vpack.c.b16 %v990, %v986
      %v1031 = vpack.c.b16 %v995, %v991
      %v1032 = vpack.c.b16 %v996, %v992
      %v1033 = vpack.c.b16 %v997, %v993
      %v1034 = vpack.c.b16 %v998, %v994
      %v1035 = vpack.c.b16 %v1003, %v999
      %v1036 = vpack.c.b16 %v1004, %v1000
      %v1037 = vpack.c.b16 %v1005, %v1001
      %v1038 = vpack.c.b16 %v1006, %v1002
      %1071 = vmatprep.subr.bf16.mxu0 %v1036
      %1072 = vmatpush1.bf16.msra.mxu0 %v1035
      %1073 = vmatprep.subr.bf16.mxu0 %v1032
      %1074 = vmatpush1.bf16.msra.mxu0 %v1031
      %1075 = vmatprep.subr.bf16.mxu0 %v1028
      %1076 = vmatpush1.bf16.msra.mxu0 %v1027
      %1077 = vmatprep.subr.bf16.mxu0 %v1024
      %1078 = vmatpush1.bf16.msra.mxu0 %v1023
      %1079 = vmatprep.subr.bf16.mxu0 %v1020
      %1080 = vmatpush1.bf16.msra.mxu0 %v1019
      %1081 = vmatprep.subr.bf16.mxu0 %v1016
      %1082 = vmatpush1.bf16.msra.mxu0 %v1015
      %1083 = vmatprep.subr.bf16.mxu0 %v1012
      %1084 = vmatpush1.bf16.msra.mxu0 %v1011
      %1085 = vmatprep.subr.bf16.mxu0 %v1008
      %1086 = vmatpush1.bf16.msra.mxu0 %v1007
      %1087 = vmatprep.subr.bf16.mxu0 0
      %1088 = vmatpush2.bf16.msra.mxu0 0
      %1089 = vmatprep.subr.bf16.mxu0 0
      %1090 = vmatpush2.bf16.msra.mxu0 0
      %1091 = vmatprep.subr.bf16.mxu0 0
      %1092 = vmatpush2.bf16.msra.mxu0 0
      %1093 = vmatprep.subr.bf16.mxu0 0
      %1094 = vmatpush2.bf16.msra.mxu0 0
      %1095 = vmatprep.subr.bf16.mxu0 0
      %1096 = vmatpush2.bf16.msra.mxu0 0
      %1097 = vmatprep.subr.bf16.mxu0 0
      %1098 = vmatpush2.bf16.msra.mxu0 0
      %1099 = vmatprep.subr.bf16.mxu0 0
      %1100 = vmatpush2.bf16.msra.mxu0 0
      %1101 = vmatprep.subr.bf16.mxu0 0
      %1102 = vmatpush2.bf16.msra.mxu0 0
      %1103 = vmatprep.mubr.bf16.mxu0 0
      %1104 = vmatmul.mubr.bf16.gmra.mxu0 %v851
      %v1105 = vpop.f32.mrf.mxu0
      %v1106 = vadd.f32 0.0, %v1105
      %v1107 = vpop.f32.mrf.mxu0
      %v1108 = vadd.f32 0.0, %v1107
      %v1109 = vpop.f32.mrf.mxu0
      %v1110 = vadd.f32 0.0, %v1109
      %v1111 = vpop.f32.mrf.mxu0
      %v1112 = vadd.f32 0.0, %v1111
      %1113 = vdwg.mxu0
      %1114 = vmatprep.subr.bf16.mxu0 %v1038
      %1115 = vmatpush1.bf16.msra.mxu0 %v1037
      %1116 = vmatprep.subr.bf16.mxu0 %v1034
      %1117 = vmatpush1.bf16.msra.mxu0 %v1033
      %1118 = vmatprep.subr.bf16.mxu0 %v1030
      %1119 = vmatpush1.bf16.msra.mxu0 %v1029
      %1120 = vmatprep.subr.bf16.mxu0 %v1026
      %1121 = vmatpush1.bf16.msra.mxu0 %v1025
      %1122 = vmatprep.subr.bf16.mxu0 %v1022
      %1123 = vmatpush1.bf16.msra.mxu0 %v1021
      %1124 = vmatprep.subr.bf16.mxu0 %v1018
      %1125 = vmatpush1.bf16.msra.mxu0 %v1017
      %1126 = vmatprep.subr.bf16.mxu0 %v1014
      %1127 = vmatpush1.bf16.msra.mxu0 %v1013
      %1128 = vmatprep.subr.bf16.mxu0 %v1010
      %1129 = vmatpush1.bf16.msra.mxu0 %v1009
      %1130 = vmatprep.subr.bf16.mxu0 0
      %1131 = vmatpush2.bf16.msra.mxu0 0
      %1132 = vmatprep.subr.bf16.mxu0 0
      %1133 = vmatpush2.bf16.msra.mxu0 0
      %1134 = vmatprep.subr.bf16.mxu0 0
      %1135 = vmatpush2.bf16.msra.mxu0 0
      %1136 = vmatprep.subr.bf16.mxu0 0
      %1137 = vmatpush2.bf16.msra.mxu0 0
      %1138 = vmatprep.subr.bf16.mxu0 0
      %1139 = vmatpush2.bf16.msra.mxu0 0
      %1140 = vmatprep.subr.bf16.mxu0 0
      %1141 = vmatpush2.bf16.msra.mxu0 0
      %1142 = vmatprep.subr.bf16.mxu0 0
      %1143 = vmatpush2.bf16.msra.mxu0 0
      %1144 = vmatprep.subr.bf16.mxu0 0
      %1145 = vmatpush2.bf16.msra.mxu0 0
      %1146 = vmatprep.mubr.bf16.mxu0 0
      %1147 = vmatmul.mubr.bf16.gmra.mxu0 %v851
      %v1148 = vpop.f32.mrf.mxu0
      %v1149 = vadd.f32 0.0, %v1148
      %v1150 = vpop.f32.mrf.mxu0
      %v1151 = vadd.f32 0.0, %v1150
      %v1152 = vpop.f32.mrf.mxu0
      %v1153 = vadd.f32 0.0, %v1152
      %v1154 = vpop.f32.mrf.mxu0
      %v1155 = vadd.f32 0.0, %v1154
      %1156 = vdwg.mxu0
      %v1157 = vadd.f32 %v871, %v1106
      %v1158 = vadd.f32 %v872, %v1108
      %v1159 = vadd.f32 %v873, %v1149
      %v1160 = vadd.f32 %v874, %v1151
      %v1161 = vadd.f32 %v875, %v1110
      %v1162 = vadd.f32 %v876, %v1112
      %v1163 = vadd.f32 %v877, %v1153
      %v1164 = vadd.f32 %v878, %v1155
      %v1165 = vxor.u32 %v1157, 2147483648
      %v1166 = vxor.u32 %v1158, 2147483648
      %v1167 = vxor.u32 %v1159, 2147483648
      %v1168 = vxor.u32 %v1161, 2147483648
      %v1169 = vxor.u32 %v1162, 2147483648
      %v1170 = vxor.u32 %v1163, 2147483648
      %v1171 = vmul.f32 %v1165, 1.442695
      %v1172 = vpow.pop %v1171
      %v1173 = vmul.f32 %v1166, 1.442695
      %v1174 = vpow.pop %v1173
      %v1175 = vmul.f32 %v1167, 1.442695
      %v1176 = vpow.pop %v1175
      %v1177 = vmul.f32 %v1168, 1.442695
      %v1178 = vpow.pop %v1177
      %v1179 = vmul.f32 %v1169, 1.442695
      %v1180 = vpow.pop %v1179
      %v1181 = vmul.f32 %v1170, 1.442695
      %v1182 = vpow.pop %v1181
      %v1183 = vadd.f32 %v1172, 1.0
      %v1184 = vadd.f32 %v1174, 1.0
      %v1185 = vadd.f32 %v1176, 1.0
      %v1186 = vadd.f32 %v1178, 1.0
      %v1187 = vadd.f32 %v1180, 1.0
      %v1188 = vadd.f32 %v1182, 1.0
      %v1189 = vrcp.pop %v1183
      %v1190 = vmul.f32 1.0, %v1189
      %v1191 = vrcp.pop %v1184
      %v1192 = vmul.f32 1.0, %v1191
      %v1193 = vrcp.pop %v1185
      %v1194 = vmul.f32 1.0, %v1193
      %v1195 = vrcp.pop %v1186
      %v1196 = vmul.f32 1.0, %v1195
      %v1197 = vrcp.pop %v1187
      %v1198 = vmul.f32 1.0, %v1197
      %v1199 = vrcp.pop %v1188
      %v1200 = vmul.f32 1.0, %v1199
      %v1201 = vtanh.pop %v1160
      %v1202 = vtanh.pop %v1164
      %v1203 = vmul.f32 %v1192, %v845
      %v1204 = vmul.f32 %v1198, %v846
      %v1205 = vmul.f32 %v1190, %v1201
      %v1206 = vmul.f32 %v1196, %v1202
      %v1207 = vadd.f32 %v1203, %v1205
      %v1208 = vadd.f32 %v1204, %v1206
      %v1209 = vtanh.pop %v1207
      %v1210 = vtanh.pop %v1208
      %v1211 = vmul.f32 %v1194, %v1209
      %v1212 = vmul.f32 %v1200, %v1210
      %v1213 = vpack.c.bf16 %v1212, %v1211
      %v1215 = vunpack.c.l.b16 %v1213
      %v1216 = vunpack.c.h.b16 %v1213
      %v1217 = vpack.c.b16 %v1215, %v1215
      %v1218 = vpack.c.b16 %v1216, %v1216
      %s1221 = smul.addr %s866, 4
      %s1222 = scalar_lea.vmem [#allocation3], %s1221
      %1223 = vst [vmem:[%s1222] sm:$0xf] %v1217
      %1224 = vst [vmem:[%s1222 + $0x4] sm:$0xf] %v1218
      %s1225 = sadd.s32 %s863, 2
      %s1226 = smul.u32 %s1225, 16
      %s1227 = sshra.s32 %s1226, 3
      %s1228 = sand.u32 %s1226, 7
      %s1229 = smul.u32 %s1227, 4
      %s1230 = smul.addr %s1229, 8
      %s1231 = scalar_lea.vmem [#allocation2], %s1230
      %v1232 = vld [vmem:[%s1231] sm:$0xff]
      %v1233 = vld [vmem:[%s1231 + $0x8] sm:$0xff]
      %v1234 = vld [vmem:[%s1231 + $0x10] sm:$0xff]
      %v1235 = vld [vmem:[%s1231 + $0x18] sm:$0xff]
      %v1236 = vld [vmem:[%s1231 + $0x20] sm:$0xff]
      %v1237 = vld [vmem:[%s1231 + $0x28] sm:$0xff]
      %v1238 = vld [vmem:[%s1231 + $0x30] sm:$0xff]
      %v1239 = vld [vmem:[%s1231 + $0x38] sm:$0xff]
      %v1240 = vld [vmem:[#allocation4] sm:$0xff]
      %v1241 = vld [vmem:[#allocation4 + $0x8] sm:$0xff]
      %v1242 = vld [vmem:[#allocation4 + $0x10] sm:$0xff]
      %v1243 = vld [vmem:[#allocation4 + $0x18] sm:$0xff]
      %v1244 = vld [vmem:[#allocation4 + $0x20] sm:$0xff]
      %v1245 = vld [vmem:[#allocation4 + $0x28] sm:$0xff]
      %v1246 = vld [vmem:[#allocation4 + $0x30] sm:$0xff]
      %v1247 = vld [vmem:[#allocation4 + $0x38] sm:$0xff]
      %v1248 = vld [vmem:[#allocation4 + $0x40] sm:$0xff]
      %v1249 = vld [vmem:[#allocation4 + $0x48] sm:$0xff]
      %v1250 = vld [vmem:[#allocation4 + $0x50] sm:$0xff]
      %v1251 = vld [vmem:[#allocation4 + $0x58] sm:$0xff]
      %v1252 = vld [vmem:[#allocation4 + $0x60] sm:$0xff]
      %v1253 = vld [vmem:[#allocation4 + $0x68] sm:$0xff]
      %v1254 = vld [vmem:[#allocation4 + $0x70] sm:$0xff]
      %v1255 = vld [vmem:[#allocation4 + $0x78] sm:$0xff]
      %v1256 = vld [vmem:[#allocation4 + $0x80] sm:$0xff]
      %v1257 = vld [vmem:[#allocation4 + $0x88] sm:$0xff]
      %v1258 = vld [vmem:[#allocation4 + $0x90] sm:$0xff]
      %v1259 = vld [vmem:[#allocation4 + $0x98] sm:$0xff]
      %v1260 = vld [vmem:[#allocation4 + $0xa0] sm:$0xff]
      %v1261 = vld [vmem:[#allocation4 + $0xa8] sm:$0xff]
      %v1262 = vld [vmem:[#allocation4 + $0xb0] sm:$0xff]
      %v1263 = vld [vmem:[#allocation4 + $0xb8] sm:$0xff]
      %v1264 = vld [vmem:[#allocation4 + $0xc0] sm:$0xff]
      %v1265 = vld [vmem:[#allocation4 + $0xc8] sm:$0xff]
      %v1266 = vld [vmem:[#allocation4 + $0xd0] sm:$0xff]
      %v1267 = vld [vmem:[#allocation4 + $0xd8] sm:$0xff]
      %v1268 = vld [vmem:[#allocation4 + $0xe0] sm:$0xff]
      %v1269 = vld [vmem:[#allocation4 + $0xe8] sm:$0xff]
      %v1270 = vld [vmem:[#allocation4 + $0xf0] sm:$0xff]
      %v1271 = vld [vmem:[#allocation4 + $0xf8] sm:$0xff]
      %v1304 = vunpack.c.l.b16 %v1240
      %v1305 = vunpack.c.h.b16 %v1240
      %v1306 = vunpack.c.l.b16 %v1241
      %v1307 = vunpack.c.h.b16 %v1241
      %v1308 = vunpack.c.l.b16 %v1242
      %v1309 = vunpack.c.h.b16 %v1242
      %v1310 = vunpack.c.l.b16 %v1243
      %v1311 = vunpack.c.h.b16 %v1243
      %v1312 = vunpack.c.l.b16 %v1244
      %v1313 = vunpack.c.h.b16 %v1244
      %v1314 = vunpack.c.l.b16 %v1245
      %v1315 = vunpack.c.h.b16 %v1245
      %v1316 = vunpack.c.l.b16 %v1246
      %v1317 = vunpack.c.h.b16 %v1246
      %v1318 = vunpack.c.l.b16 %v1247
      %v1319 = vunpack.c.h.b16 %v1247
      %v1320 = vunpack.c.l.b16 %v1248
      %v1321 = vunpack.c.h.b16 %v1248
      %v1322 = vunpack.c.l.b16 %v1249
      %v1323 = vunpack.c.h.b16 %v1249
      %v1324 = vunpack.c.l.b16 %v1250
      %v1325 = vunpack.c.h.b16 %v1250
      %v1326 = vunpack.c.l.b16 %v1251
      %v1327 = vunpack.c.h.b16 %v1251
      %v1328 = vunpack.c.l.b16 %v1252
      %v1329 = vunpack.c.h.b16 %v1252
      %v1330 = vunpack.c.l.b16 %v1253
      %v1331 = vunpack.c.h.b16 %v1253
      %v1332 = vunpack.c.l.b16 %v1254
      %v1333 = vunpack.c.h.b16 %v1254
      %v1334 = vunpack.c.l.b16 %v1255
      %v1335 = vunpack.c.h.b16 %v1255
      %v1336 = vunpack.c.l.b16 %v1256
      %v1337 = vunpack.c.h.b16 %v1256
      %v1338 = vunpack.c.l.b16 %v1257
      %v1339 = vunpack.c.h.b16 %v1257
      %v1340 = vunpack.c.l.b16 %v1258
      %v1341 = vunpack.c.h.b16 %v1258
      %v1342 = vunpack.c.l.b16 %v1259
      %v1343 = vunpack.c.h.b16 %v1259
      %v1344 = vunpack.c.l.b16 %v1260
      %v1345 = vunpack.c.h.b16 %v1260
      %v1346 = vunpack.c.l.b16 %v1261
      %v1347 = vunpack.c.h.b16 %v1261
      %v1348 = vunpack.c.l.b16 %v1262
      %v1349 = vunpack.c.h.b16 %v1262
      %v1350 = vunpack.c.l.b16 %v1263
      %v1351 = vunpack.c.h.b16 %v1263
      %v1352 = vunpack.c.l.b16 %v1264
      %v1353 = vunpack.c.h.b16 %v1264
      %v1354 = vunpack.c.l.b16 %v1265
      %v1355 = vunpack.c.h.b16 %v1265
      %v1356 = vunpack.c.l.b16 %v1266
      %v1357 = vunpack.c.h.b16 %v1266
      %v1358 = vunpack.c.l.b16 %v1267
      %v1359 = vunpack.c.h.b16 %v1267
      %v1360 = vunpack.c.l.b16 %v1268
      %v1361 = vunpack.c.h.b16 %v1268
      %v1362 = vunpack.c.l.b16 %v1269
      %v1363 = vunpack.c.h.b16 %v1269
      %v1364 = vunpack.c.l.b16 %v1270
      %v1365 = vunpack.c.h.b16 %v1270
      %v1366 = vunpack.c.l.b16 %v1271
      %v1367 = vunpack.c.h.b16 %v1271
      %v1368 = vpack.c.b16 %v1308, %v1304
      %v1369 = vpack.c.b16 %v1309, %v1305
      %v1370 = vpack.c.b16 %v1310, %v1306
      %v1371 = vpack.c.b16 %v1311, %v1307
      %v1372 = vpack.c.b16 %v1316, %v1312
      %v1373 = vpack.c.b16 %v1317, %v1313
      %v1374 = vpack.c.b16 %v1318, %v1314
      %v1375 = vpack.c.b16 %v1319, %v1315
      %v1376 = vpack.c.b16 %v1324, %v1320
      %v1377 = vpack.c.b16 %v1325, %v1321
      %v1378 = vpack.c.b16 %v1326, %v1322
      %v1379 = vpack.c.b16 %v1327, %v1323
      %v1380 = vpack.c.b16 %v1332, %v1328
      %v1381 = vpack.c.b16 %v1333, %v1329
      %v1382 = vpack.c.b16 %v1334, %v1330
      %v1383 = vpack.c.b16 %v1335, %v1331
      %v1384 = vpack.c.b16 %v1340, %v1336
      %v1385 = vpack.c.b16 %v1341, %v1337
      %v1386 = vpack.c.b16 %v1342, %v1338
      %v1387 = vpack.c.b16 %v1343, %v1339
      %v1388 = vpack.c.b16 %v1348, %v1344
      %v1389 = vpack.c.b16 %v1349, %v1345
      %v1390 = vpack.c.b16 %v1350, %v1346
      %v1391 = vpack.c.b16 %v1351, %v1347
      %v1392 = vpack.c.b16 %v1356, %v1352
      %v1393 = vpack.c.b16 %v1357, %v1353
      %v1394 = vpack.c.b16 %v1358, %v1354
      %v1395 = vpack.c.b16 %v1359, %v1355
      %v1396 = vpack.c.b16 %v1364, %v1360
      %v1397 = vpack.c.b16 %v1365, %v1361
      %v1398 = vpack.c.b16 %v1366, %v1362
      %v1399 = vpack.c.b16 %v1367, %v1363
      %1432 = vmatprep.subr.bf16.mxu0 %v1397
      %1433 = vmatpush1.bf16.msra.mxu0 %v1396
      %1434 = vmatprep.subr.bf16.mxu0 %v1393
      %1435 = vmatpush1.bf16.msra.mxu0 %v1392
      %1436 = vmatprep.subr.bf16.mxu0 %v1389
      %1437 = vmatpush1.bf16.msra.mxu0 %v1388
      %1438 = vmatprep.subr.bf16.mxu0 %v1385
      %1439 = vmatpush1.bf16.msra.mxu0 %v1384
      %1440 = vmatprep.subr.bf16.mxu0 %v1381
      %1441 = vmatpush1.bf16.msra.mxu0 %v1380
      %1442 = vmatprep.subr.bf16.mxu0 %v1377
      %1443 = vmatpush1.bf16.msra.mxu0 %v1376
      %1444 = vmatprep.subr.bf16.mxu0 %v1373
      %1445 = vmatpush1.bf16.msra.mxu0 %v1372
      %1446 = vmatprep.subr.bf16.mxu0 %v1369
      %1447 = vmatpush1.bf16.msra.mxu0 %v1368
      %1448 = vmatprep.subr.bf16.mxu0 0
      %1449 = vmatpush2.bf16.msra.mxu0 0
      %1450 = vmatprep.subr.bf16.mxu0 0
      %1451 = vmatpush2.bf16.msra.mxu0 0
      %1452 = vmatprep.subr.bf16.mxu0 0
      %1453 = vmatpush2.bf16.msra.mxu0 0
      %1454 = vmatprep.subr.bf16.mxu0 0
      %1455 = vmatpush2.bf16.msra.mxu0 0
      %1456 = vmatprep.subr.bf16.mxu0 0
      %1457 = vmatpush2.bf16.msra.mxu0 0
      %1458 = vmatprep.subr.bf16.mxu0 0
      %1459 = vmatpush2.bf16.msra.mxu0 0
      %1460 = vmatprep.subr.bf16.mxu0 0
      %1461 = vmatpush2.bf16.msra.mxu0 0
      %1462 = vmatprep.subr.bf16.mxu0 0
      %1463 = vmatpush2.bf16.msra.mxu0 0
      %1464 = vmatprep.mubr.bf16.mxu0 0
      %1465 = vmatmul.mubr.bf16.gmra.mxu0 %v1213
      %v1466 = vpop.f32.mrf.mxu0
      %v1467 = vadd.f32 0.0, %v1466
      %v1468 = vpop.f32.mrf.mxu0
      %v1469 = vadd.f32 0.0, %v1468
      %v1470 = vpop.f32.mrf.mxu0
      %v1471 = vadd.f32 0.0, %v1470
      %v1472 = vpop.f32.mrf.mxu0
      %v1473 = vadd.f32 0.0, %v1472
      %1474 = vdwg.mxu0
      %1475 = vmatprep.subr.bf16.mxu0 %v1399
      %1476 = vmatpush1.bf16.msra.mxu0 %v1398
      %1477 = vmatprep.subr.bf16.mxu0 %v1395
      %1478 = vmatpush1.bf16.msra.mxu0 %v1394
      %1479 = vmatprep.subr.bf16.mxu0 %v1391
      %1480 = vmatpush1.bf16.msra.mxu0 %v1390
      %1481 = vmatprep.subr.bf16.mxu0 %v1387
      %1482 = vmatpush1.bf16.msra.mxu0 %v1386
      %1483 = vmatprep.subr.bf16.mxu0 %v1383
      %1484 = vmatpush1.bf16.msra.mxu0 %v1382
      %1485 = vmatprep.subr.bf16.mxu0 %v1379
      %1486 = vmatpush1.bf16.msra.mxu0 %v1378
      %1487 = vmatprep.subr.bf16.mxu0 %v1375
      %1488 = vmatpush1.bf16.msra.mxu0 %v1374
      %1489 = vmatprep.subr.bf16.mxu0 %v1371
      %1490 = vmatpush1.bf16.msra.mxu0 %v1370
      %1491 = vmatprep.subr.bf16.mxu0 0
      %1492 = vmatpush2.bf16.msra.mxu0 0
      %1493 = vmatprep.subr.bf16.mxu0 0
      %1494 = vmatpush2.bf16.msra.mxu0 0
      %1495 = vmatprep.subr.bf16.mxu0 0
      %1496 = vmatpush2.bf16.msra.mxu0 0
      %1497 = vmatprep.subr.bf16.mxu0 0
      %1498 = vmatpush2.bf16.msra.mxu0 0
      %1499 = vmatprep.subr.bf16.mxu0 0
      %1500 = vmatpush2.bf16.msra.mxu0 0
      %1501 = vmatprep.subr.bf16.mxu0 0
      %1502 = vmatpush2.bf16.msra.mxu0 0
      %1503 = vmatprep.subr.bf16.mxu0 0
      %1504 = vmatpush2.bf16.msra.mxu0 0
      %1505 = vmatprep.subr.bf16.mxu0 0
      %1506 = vmatpush2.bf16.msra.mxu0 0
      %1507 = vmatprep.mubr.bf16.mxu0 0
      %1508 = vmatmul.mubr.bf16.gmra.mxu0 %v1213
      %v1509 = vpop.f32.mrf.mxu0
      %v1510 = vadd.f32 0.0, %v1509
      %v1511 = vpop.f32.mrf.mxu0
      %v1512 = vadd.f32 0.0, %v1511
      %v1513 = vpop.f32.mrf.mxu0
      %v1514 = vadd.f32 0.0, %v1513
      %v1515 = vpop.f32.mrf.mxu0
      %v1516 = vadd.f32 0.0, %v1515
      %1517 = vdwg.mxu0
      %v1518 = vadd.f32 %v1232, %v1467
      %v1519 = vadd.f32 %v1233, %v1469
      %v1520 = vadd.f32 %v1234, %v1510
      %v1521 = vadd.f32 %v1235, %v1512
      %v1522 = vadd.f32 %v1236, %v1471
      %v1523 = vadd.f32 %v1237, %v1473
      %v1524 = vadd.f32 %v1238, %v1514
      %v1525 = vadd.f32 %v1239, %v1516
      %v1526 = vxor.u32 %v1518, 2147483648
      %v1527 = vxor.u32 %v1519, 2147483648
      %v1528 = vxor.u32 %v1520, 2147483648
      %v1529 = vxor.u32 %v1522, 2147483648
      %v1530 = vxor.u32 %v1523, 2147483648
      %v1531 = vxor.u32 %v1524, 2147483648
      %v1532 = vmul.f32 %v1526, 1.442695
      %v1533 = vpow.pop %v1532
      %v1534 = vmul.f32 %v1527, 1.442695
      %v1535 = vpow.pop %v1534
      %v1536 = vmul.f32 %v1528, 1.442695
      %v1537 = vpow.pop %v1536
      %v1538 = vmul.f32 %v1529, 1.442695
      %v1539 = vpow.pop %v1538
      %v1540 = vmul.f32 %v1530, 1.442695
      %v1541 = vpow.pop %v1540
      %v1542 = vmul.f32 %v1531, 1.442695
      %v1543 = vpow.pop %v1542
      %v1544 = vadd.f32 %v1533, 1.0
      %v1545 = vadd.f32 %v1535, 1.0
      %v1546 = vadd.f32 %v1537, 1.0
      %v1547 = vadd.f32 %v1539, 1.0
      %v1548 = vadd.f32 %v1541, 1.0
      %v1549 = vadd.f32 %v1543, 1.0
      %v1550 = vrcp.pop %v1544
      %v1551 = vmul.f32 1.0, %v1550
      %v1552 = vrcp.pop %v1545
      %v1553 = vmul.f32 1.0, %v1552
      %v1554 = vrcp.pop %v1546
      %v1555 = vmul.f32 1.0, %v1554
      %v1556 = vrcp.pop %v1547
      %v1557 = vmul.f32 1.0, %v1556
      %v1558 = vrcp.pop %v1548
      %v1559 = vmul.f32 1.0, %v1558
      %v1560 = vrcp.pop %v1549
      %v1561 = vmul.f32 1.0, %v1560
      %v1562 = vtanh.pop %v1521
      %v1563 = vtanh.pop %v1525
      %v1564 = vmul.f32 %v1553, %v1207
      %v1565 = vmul.f32 %v1559, %v1208
      %v1566 = vmul.f32 %v1551, %v1562
      %v1567 = vmul.f32 %v1557, %v1563
      %v1568 = vadd.f32 %v1564, %v1566
      %v1569 = vadd.f32 %v1565, %v1567
      %v1570 = vtanh.pop %v1568
      %v1571 = vtanh.pop %v1569
      %v1572 = vmul.f32 %v1555, %v1570
      %v1573 = vmul.f32 %v1561, %v1571
      %v1574 = vpack.c.bf16 %v1573, %v1572
      %v1576 = vunpack.c.l.b16 %v1574
      %v1577 = vunpack.c.h.b16 %v1574
      %v1578 = vpack.c.b16 %v1576, %v1576
      %v1579 = vpack.c.b16 %v1577, %v1577
      %s1582 = smul.addr %s1227, 4
      %s1583 = scalar_lea.vmem [#allocation3], %s1582
      %1584 = vst [vmem:[%s1583] sm:$0xf] %v1578
      %1585 = vst [vmem:[%s1583 + $0x4] sm:$0xf] %v1579
      %s1586 = sadd.s32 %s863, 3
      %s1587 = smul.u32 %s1586, 16
      %s1588 = sshra.s32 %s1587, 3
      %s1589 = sand.u32 %s1587, 7
      %s1590 = smul.u32 %s1588, 4
      %s1591 = smul.addr %s1590, 8
      %s1592 = scalar_lea.vmem [#allocation2], %s1591
      %v1593 = vld [vmem:[%s1592] sm:$0xff]
      %v1594 = vld [vmem:[%s1592 + $0x8] sm:$0xff]
      %v1595 = vld [vmem:[%s1592 + $0x10] sm:$0xff]
      %v1596 = vld [vmem:[%s1592 + $0x18] sm:$0xff]
      %v1597 = vld [vmem:[%s1592 + $0x20] sm:$0xff]
      %v1598 = vld [vmem:[%s1592 + $0x28] sm:$0xff]
      %v1599 = vld [vmem:[%s1592 + $0x30] sm:$0xff]
      %v1600 = vld [vmem:[%s1592 + $0x38] sm:$0xff]
      %v1601 = vld [vmem:[#allocation4] sm:$0xff]
      %v1602 = vld [vmem:[#allocation4 + $0x8] sm:$0xff]
      %v1603 = vld [vmem:[#allocation4 + $0x10] sm:$0xff]
      %v1604 = vld [vmem:[#allocation4 + $0x18] sm:$0xff]
      %v1605 = vld [vmem:[#allocation4 + $0x20] sm:$0xff]
      %v1606 = vld [vmem:[#allocation4 + $0x28] sm:$0xff]
      %v1607 = vld [vmem:[#allocation4 + $0x30] sm:$0xff]
      %v1608 = vld [vmem:[#allocation4 + $0x38] sm:$0xff]
      %v1609 = vld [vmem:[#allocation4 + $0x40] sm:$0xff]
      %v1610 = vld [vmem:[#allocation4 + $0x48] sm:$0xff]
      %v1611 = vld [vmem:[#allocation4 + $0x50] sm:$0xff]
      %v1612 = vld [vmem:[#allocation4 + $0x58] sm:$0xff]
      %v1613 = vld [vmem:[#allocation4 + $0x60] sm:$0xff]
      %v1614 = vld [vmem:[#allocation4 + $0x68] sm:$0xff]
      %v1615 = vld [vmem:[#allocation4 + $0x70] sm:$0xff]
      %v1616 = vld [vmem:[#allocation4 + $0x78] sm:$0xff]
      %v1617 = vld [vmem:[#allocation4 + $0x80] sm:$0xff]
      %v1618 = vld [vmem:[#allocation4 + $0x88] sm:$0xff]
      %v1619 = vld [vmem:[#allocation4 + $0x90] sm:$0xff]
      %v1620 = vld [vmem:[#allocation4 + $0x98] sm:$0xff]
      %v1621 = vld [vmem:[#allocation4 + $0xa0] sm:$0xff]
      %v1622 = vld [vmem:[#allocation4 + $0xa8] sm:$0xff]
      %v1623 = vld [vmem:[#allocation4 + $0xb0] sm:$0xff]
      %v1624 = vld [vmem:[#allocation4 + $0xb8] sm:$0xff]
      %v1625 = vld [vmem:[#allocation4 + $0xc0] sm:$0xff]
      %v1626 = vld [vmem:[#allocation4 + $0xc8] sm:$0xff]
      %v1627 = vld [vmem:[#allocation4 + $0xd0] sm:$0xff]
      %v1628 = vld [vmem:[#allocation4 + $0xd8] sm:$0xff]
      %v1629 = vld [vmem:[#allocation4 + $0xe0] sm:$0xff]
      %v1630 = vld [vmem:[#allocation4 + $0xe8] sm:$0xff]
      %v1631 = vld [vmem:[#allocation4 + $0xf0] sm:$0xff]
      %v1632 = vld [vmem:[#allocation4 + $0xf8] sm:$0xff]
      %v1665 = vunpack.c.l.b16 %v1601
      %v1666 = vunpack.c.h.b16 %v1601
      %v1667 = vunpack.c.l.b16 %v1602
      %v1668 = vunpack.c.h.b16 %v1602
      %v1669 = vunpack.c.l.b16 %v1603
      %v1670 = vunpack.c.h.b16 %v1603
      %v1671 = vunpack.c.l.b16 %v1604
      %v1672 = vunpack.c.h.b16 %v1604
      %v1673 = vunpack.c.l.b16 %v1605
      %v1674 = vunpack.c.h.b16 %v1605
      %v1675 = vunpack.c.l.b16 %v1606
      %v1676 = vunpack.c.h.b16 %v1606
      %v1677 = vunpack.c.l.b16 %v1607
      %v1678 = vunpack.c.h.b16 %v1607
      %v1679 = vunpack.c.l.b16 %v1608
      %v1680 = vunpack.c.h.b16 %v1608
      %v1681 = vunpack.c.l.b16 %v1609
      %v1682 = vunpack.c.h.b16 %v1609
      %v1683 = vunpack.c.l.b16 %v1610
      %v1684 = vunpack.c.h.b16 %v1610
      %v1685 = vunpack.c.l.b16 %v1611
      %v1686 = vunpack.c.h.b16 %v1611
      %v1687 = vunpack.c.l.b16 %v1612
      %v1688 = vunpack.c.h.b16 %v1612
      %v1689 = vunpack.c.l.b16 %v1613
      %v1690 = vunpack.c.h.b16 %v1613
      %v1691 = vunpack.c.l.b16 %v1614
      %v1692 = vunpack.c.h.b16 %v1614
      %v1693 = vunpack.c.l.b16 %v1615
      %v1694 = vunpack.c.h.b16 %v1615
      %v1695 = vunpack.c.l.b16 %v1616
      %v1696 = vunpack.c.h.b16 %v1616
      %v1697 = vunpack.c.l.b16 %v1617
      %v1698 = vunpack.c.h.b16 %v1617
      %v1699 = vunpack.c.l.b16 %v1618
      %v1700 = vunpack.c.h.b16 %v1618
      %v1701 = vunpack.c.l.b16 %v1619
      %v1702 = vunpack.c.h.b16 %v1619
      %v1703 = vunpack.c.l.b16 %v1620
      %v1704 = vunpack.c.h.b16 %v1620
      %v1705 = vunpack.c.l.b16 %v1621
      %v1706 = vunpack.c.h.b16 %v1621
      %v1707 = vunpack.c.l.b16 %v1622
      %v1708 = vunpack.c.h.b16 %v1622
      %v1709 = vunpack.c.l.b16 %v1623
      %v1710 = vunpack.c.h.b16 %v1623
      %v1711 = vunpack.c.l.b16 %v1624
      %v1712 = vunpack.c.h.b16 %v1624
      %v1713 = vunpack.c.l.b16 %v1625
      %v1714 = vunpack.c.h.b16 %v1625
      %v1715 = vunpack.c.l.b16 %v1626
      %v1716 = vunpack.c.h.b16 %v1626
      %v1717 = vunpack.c.l.b16 %v1627
      %v1718 = vunpack.c.h.b16 %v1627
      %v1719 = vunpack.c.l.b16 %v1628
      %v1720 = vunpack.c.h.b16 %v1628
      %v1721 = vunpack.c.l.b16 %v1629
      %v1722 = vunpack.c.h.b16 %v1629
      %v1723 = vunpack.c.l.b16 %v1630
      %v1724 = vunpack.c.h.b16 %v1630
      %v1725 = vunpack.c.l.b16 %v1631
      %v1726 = vunpack.c.h.b16 %v1631
      %v1727 = vunpack.c.l.b16 %v1632
      %v1728 = vunpack.c.h.b16 %v1632
      %v1729 = vpack.c.b16 %v1669, %v1665
      %v1730 = vpack.c.b16 %v1670, %v1666
      %v1731 = vpack.c.b16 %v1671, %v1667
      %v1732 = vpack.c.b16 %v1672, %v1668
      %v1733 = vpack.c.b16 %v1677, %v1673
      %v1734 = vpack.c.b16 %v1678, %v1674
      %v1735 = vpack.c.b16 %v1679, %v1675
      %v1736 = vpack.c.b16 %v1680, %v1676
      %v1737 = vpack.c.b16 %v1685, %v1681
      %v1738 = vpack.c.b16 %v1686, %v1682
      %v1739 = vpack.c.b16 %v1687, %v1683
      %v1740 = vpack.c.b16 %v1688, %v1684
      %v1741 = vpack.c.b16 %v1693, %v1689
      %v1742 = vpack.c.b16 %v1694, %v1690
      %v1743 = vpack.c.b16 %v1695, %v1691
      %v1744 = vpack.c.b16 %v1696, %v1692
      %v1745 = vpack.c.b16 %v1701, %v1697
      %v1746 = vpack.c.b16 %v1702, %v1698
      %v1747 = vpack.c.b16 %v1703, %v1699
      %v1748 = vpack.c.b16 %v1704, %v1700
      %v1749 = vpack.c.b16 %v1709, %v1705
      %v1750 = vpack.c.b16 %v1710, %v1706
      %v1751 = vpack.c.b16 %v1711, %v1707
      %v1752 = vpack.c.b16 %v1712, %v1708
      %v1753 = vpack.c.b16 %v1717, %v1713
      %v1754 = vpack.c.b16 %v1718, %v1714
      %v1755 = vpack.c.b16 %v1719, %v1715
      %v1756 = vpack.c.b16 %v1720, %v1716
      %v1757 = vpack.c.b16 %v1725, %v1721
      %v1758 = vpack.c.b16 %v1726, %v1722
      %v1759 = vpack.c.b16 %v1727, %v1723
      %v1760 = vpack.c.b16 %v1728, %v1724
      %1793 = vmatprep.subr.bf16.mxu0 %v1758
      %1794 = vmatpush1.bf16.msra.mxu0 %v1757
      %1795 = vmatprep.subr.bf16.mxu0 %v1754
      %1796 = vmatpush1.bf16.msra.mxu0 %v1753
      %1797 = vmatprep.subr.bf16.mxu0 %v1750
      %1798 = vmatpush1.bf16.msra.mxu0 %v1749
      %1799 = vmatprep.subr.bf16.mxu0 %v1746
      %1800 = vmatpush1.bf16.msra.mxu0 %v1745
      %1801 = vmatprep.subr.bf16.mxu0 %v1742
      %1802 = vmatpush1.bf16.msra.mxu0 %v1741
      %1803 = vmatprep.subr.bf16.mxu0 %v1738
      %1804 = vmatpush1.bf16.msra.mxu0 %v1737
      %1805 = vmatprep.subr.bf16.mxu0 %v1734
      %1806 = vmatpush1.bf16.msra.mxu0 %v1733
      %1807 = vmatprep.subr.bf16.mxu0 %v1730
      %1808 = vmatpush1.bf16.msra.mxu0 %v1729
      %1809 = vmatprep.subr.bf16.mxu0 0
      %1810 = vmatpush2.bf16.msra.mxu0 0
      %1811 = vmatprep.subr.bf16.mxu0 0
      %1812 = vmatpush2.bf16.msra.mxu0 0
      %1813 = vmatprep.subr.bf16.mxu0 0
      %1814 = vmatpush2.bf16.msra.mxu0 0
      %1815 = vmatprep.subr.bf16.mxu0 0
      %1816 = vmatpush2.bf16.msra.mxu0 0
      %1817 = vmatprep.subr.bf16.mxu0 0
      %1818 = vmatpush2.bf16.msra.mxu0 0
      %1819 = vmatprep.subr.bf16.mxu0 0
      %1820 = vmatpush2.bf16.msra.mxu0 0
      %1821 = vmatprep.subr.bf16.mxu0 0
      %1822 = vmatpush2.bf16.msra.mxu0 0
      %1823 = vmatprep.subr.bf16.mxu0 0
      %1824 = vmatpush2.bf16.msra.mxu0 0
      %1825 = vmatprep.mubr.bf16.mxu0 0
      %1826 = vmatmul.mubr.bf16.gmra.mxu0 %v1574
      %v1827 = vpop.f32.mrf.mxu0
      %v1828 = vadd.f32 0.0, %v1827
      %v1829 = vpop.f32.mrf.mxu0
      %v1830 = vadd.f32 0.0, %v1829
      %v1831 = vpop.f32.mrf.mxu0
      %v1832 = vadd.f32 0.0, %v1831
      %v1833 = vpop.f32.mrf.mxu0
      %v1834 = vadd.f32 0.0, %v1833
      %1835 = vdwg.mxu0
      %1836 = vmatprep.subr.bf16.mxu0 %v1760
      %1837 = vmatpush1.bf16.msra.mxu0 %v1759
      %1838 = vmatprep.subr.bf16.mxu0 %v1756
      %1839 = vmatpush1.bf16.msra.mxu0 %v1755
      %1840 = vmatprep.subr.bf16.mxu0 %v1752
      %1841 = vmatpush1.bf16.msra.mxu0 %v1751
      %1842 = vmatprep.subr.bf16.mxu0 %v1748
      %1843 = vmatpush1.bf16.msra.mxu0 %v1747
      %1844 = vmatprep.subr.bf16.mxu0 %v1744
      %1845 = vmatpush1.bf16.msra.mxu0 %v1743
      %1846 = vmatprep.subr.bf16.mxu0 %v1740
      %1847 = vmatpush1.bf16.msra.mxu0 %v1739
      %1848 = vmatprep.subr.bf16.mxu0 %v1736
      %1849 = vmatpush1.bf16.msra.mxu0 %v1735
      %1850 = vmatprep.subr.bf16.mxu0 %v1732
      %1851 = vmatpush1.bf16.msra.mxu0 %v1731
      %1852 = vmatprep.subr.bf16.mxu0 0
      %1853 = vmatpush2.bf16.msra.mxu0 0
      %1854 = vmatprep.subr.bf16.mxu0 0
      %1855 = vmatpush2.bf16.msra.mxu0 0
      %1856 = vmatprep.subr.bf16.mxu0 0
      %1857 = vmatpush2.bf16.msra.mxu0 0
      %1858 = vmatprep.subr.bf16.mxu0 0
      %1859 = vmatpush2.bf16.msra.mxu0 0
      %1860 = vmatprep.subr.bf16.mxu0 0
      %1861 = vmatpush2.bf16.msra.mxu0 0
      %1862 = vmatprep.subr.bf16.mxu0 0
      %1863 = vmatpush2.bf16.msra.mxu0 0
      %1864 = vmatprep.subr.bf16.mxu0 0
      %1865 = vmatpush2.bf16.msra.mxu0 0
      %1866 = vmatprep.subr.bf16.mxu0 0
      %1867 = vmatpush2.bf16.msra.mxu0 0
      %1868 = vmatprep.mubr.bf16.mxu0 0
      %1869 = vmatmul.mubr.bf16.gmra.mxu0 %v1574
      %v1870 = vpop.f32.mrf.mxu0
      %v1871 = vadd.f32 0.0, %v1870
      %v1872 = vpop.f32.mrf.mxu0
      %v1873 = vadd.f32 0.0, %v1872
      %v1874 = vpop.f32.mrf.mxu0
      %v1875 = vadd.f32 0.0, %v1874
      %v1876 = vpop.f32.mrf.mxu0
      %v1877 = vadd.f32 0.0, %v1876
      %1878 = vdwg.mxu0
      %v1879 = vadd.f32 %v1593, %v1828
      %v1880 = vadd.f32 %v1594, %v1830
      %v1881 = vadd.f32 %v1595, %v1871
      %v1882 = vadd.f32 %v1596, %v1873
      %v1883 = vadd.f32 %v1597, %v1832
      %v1884 = vadd.f32 %v1598, %v1834
      %v1885 = vadd.f32 %v1599, %v1875
      %v1886 = vadd.f32 %v1600, %v1877
      %v1887 = vxor.u32 %v1879, 2147483648
      %v1888 = vxor.u32 %v1880, 2147483648
      %v1889 = vxor.u32 %v1881, 2147483648
      %v1890 = vxor.u32 %v1883, 2147483648
      %v1891 = vxor.u32 %v1884, 2147483648
      %v1892 = vxor.u32 %v1885, 2147483648
      %v1893 = vmul.f32 %v1887, 1.442695
      %v1894 = vpow.pop %v1893
      %v1895 = vmul.f32 %v1888, 1.442695
      %v1896 = vpow.pop %v1895
      %v1897 = vmul.f32 %v1889, 1.442695
      %v1898 = vpow.pop %v1897
      %v1899 = vmul.f32 %v1890, 1.442695
      %v1900 = vpow.pop %v1899
      %v1901 = vmul.f32 %v1891, 1.442695
      %v1902 = vpow.pop %v1901
      %v1903 = vmul.f32 %v1892, 1.442695
      %v1904 = vpow.pop %v1903
      %v1905 = vadd.f32 %v1894, 1.0
      %v1906 = vadd.f32 %v1896, 1.0
      %v1907 = vadd.f32 %v1898, 1.0
      %v1908 = vadd.f32 %v1900, 1.0
      %v1909 = vadd.f32 %v1902, 1.0
      %v1910 = vadd.f32 %v1904, 1.0
      %v1911 = vrcp.pop %v1905
      %v1912 = vmul.f32 1.0, %v1911
      %v1913 = vrcp.pop %v1906
      %v1914 = vmul.f32 1.0, %v1913
      %v1915 = vrcp.pop %v1907
      %v1916 = vmul.f32 1.0, %v1915
      %v1917 = vrcp.pop %v1908
      %v1918 = vmul.f32 1.0, %v1917
      %v1919 = vrcp.pop %v1909
      %v1920 = vmul.f32 1.0, %v1919
      %v1921 = vrcp.pop %v1910
      %v1922 = vmul.f32 1.0, %v1921
      %v1923 = vtanh.pop %v1882
      %v1924 = vtanh.pop %v1886
      %v1925 = vmul.f32 %v1914, %v1568
      %v1926 = vmul.f32 %v1920, %v1569
      %v1927 = vmul.f32 %v1912, %v1923
      %v1928 = vmul.f32 %v1918, %v1924
      %v1929 = vadd.f32 %v1925, %v1927
      %v1930 = vadd.f32 %v1926, %v1928
      %v1931 = vtanh.pop %v1929
      %v1932 = vtanh.pop %v1930
      %v1933 = vmul.f32 %v1916, %v1931
      %v1934 = vmul.f32 %v1922, %v1932
      %v1935 = vpack.c.bf16 %v1934, %v1933
      %v1937 = vunpack.c.l.b16 %v1935
      %v1938 = vunpack.c.h.b16 %v1935
      %v1939 = vpack.c.b16 %v1937, %v1937
      %v1940 = vpack.c.b16 %v1938, %v1938
      %s1943 = smul.addr %s1588, 4
      %s1944 = scalar_lea.vmem [#allocation3], %s1943
      %1945 = vst [vmem:[%s1944] sm:$0xf] %v1939
      %1946 = vst [vmem:[%s1944 + $0x4] sm:$0xf] %v1940
    $region54: #{lstm_forward.1} parent=1 // loop_footer
      %s497 = sadd.s32 1, %s493
    $region55: #{lstm_forward.1} parent=1 // loop_footer_branch
      %492 = sbr.rel target = $region51
    $region56: #{lstm_forward.1} parent=1 // loop_exit
      _
    %v1947 = vld [vmem:[#allocation3] sm:$0xf]
    %v1948 = vld [vmem:[#allocation3 + $0x4] sm:$0xf]
    %v1949 = vld [vmem:[#allocation3 + $0x8] sm:$0xf]
    %v1950 = vld [vmem:[#allocation3 + $0xc] sm:$0xf]
    %v1951 = vld [vmem:[#allocation3 + $0x10] sm:$0xf]
    %v1952 = vld [vmem:[#allocation3 + $0x14] sm:$0xf]
    %v1953 = vld [vmem:[#allocation3 + $0x18] sm:$0xf]
    %v1954 = vld [vmem:[#allocation3 + $0x1c] sm:$0xf]
    %v1955 = vld [vmem:[#allocation3 + $0x20] sm:$0xf]
    %v1956 = vld [vmem:[#allocation3 + $0x24] sm:$0xf]
    %v1957 = vld [vmem:[#allocation3 + $0x28] sm:$0xf]
    %v1958 = vld [vmem:[#allocation3 + $0x2c] sm:$0xf]
    %v1959 = vld [vmem:[#allocation3 + $0x30] sm:$0xf]
    %v1960 = vld [vmem:[#allocation3 + $0x34] sm:$0xf]
    %v1961 = vld [vmem:[#allocation3 + $0x38] sm:$0xf]
    %v1962 = vld [vmem:[#allocation3 + $0x3c] sm:$0xf]
    %v1963 = vld [vmem:[#allocation6] sm:$0xff]
    %v1964 = vld [vmem:[#allocation6 + $0x8] sm:$0xff]
    %v1965 = vld [vmem:[#allocation6 + $0x10] sm:$0xff]
    %v1966 = vld [vmem:[#allocation6 + $0x18] sm:$0xff]
    %v1967 = vld [vmem:[#allocation6 + $0x20] sm:$0xff]
    %v1968 = vld [vmem:[#allocation6 + $0x28] sm:$0xff]
    %v1969 = vld [vmem:[#allocation6 + $0x30] sm:$0xff]
    %v1970 = vld [vmem:[#allocation6 + $0x38] sm:$0xff]
    %v1971 = vld [vmem:[#allocation6 + $0x40] sm:$0xff]
    %v1972 = vld [vmem:[#allocation6 + $0x48] sm:$0xff]
    %v1973 = vld [vmem:[#allocation6 + $0x50] sm:$0xff]
    %v1974 = vld [vmem:[#allocation6 + $0x58] sm:$0xff]
    %v1975 = vld [vmem:[#allocation6 + $0x60] sm:$0xff]
    %v1976 = vld [vmem:[#allocation6 + $0x68] sm:$0xff]
    %v1977 = vld [vmem:[#allocation6 + $0x70] sm:$0xff]
    %v1978 = vld [vmem:[#allocation6 + $0x78] sm:$0xff]
    %v1979 = vld [vmem:[#allocation6 + $0x80] sm:$0xff]
    %v1980 = vld [vmem:[#allocation6 + $0x88] sm:$0xff]
    %v1981 = vld [vmem:[#allocation6 + $0x90] sm:$0xff]
    %v1982 = vld [vmem:[#allocation6 + $0x98] sm:$0xff]
    %v1983 = vld [vmem:[#allocation6 + $0xa0] sm:$0xff]
    %v1984 = vld [vmem:[#allocation6 + $0xa8] sm:$0xff]
    %v1985 = vld [vmem:[#allocation6 + $0xb0] sm:$0xff]
    %v1986 = vld [vmem:[#allocation6 + $0xb8] sm:$0xff]
    %v1987 = vld [vmem:[#allocation6 + $0xc0] sm:$0xff]
    %v1988 = vld [vmem:[#allocation6 + $0xc8] sm:$0xff]
    %v1989 = vld [vmem:[#allocation6 + $0xd0] sm:$0xff]
    %v1990 = vld [vmem:[#allocation6 + $0xd8] sm:$0xff]
    %v1991 = vld [vmem:[#allocation6 + $0xe0] sm:$0xff]
    %v1992 = vld [vmem:[#allocation6 + $0xe8] sm:$0xff]
    %v1993 = vld [vmem:[#allocation6 + $0xf0] sm:$0xff]
    %v1994 = vld [vmem:[#allocation6 + $0xf8] sm:$0xff]
    %v1995 = vld [vmem:[%s6] sm:$0xf]
    %v1997 = vlaneseq
    %v1998 = vshrl.u32 %v1997, 7
    %v1999 = vsub.s32 0, %v1998
    %v2000 = vrot.slane %v1995, %v1999
    %v2001 = vlaneseq
    %v2002 = vshrl.u32 %v2001, 7
    %v2003 = vsub.s32 1, %v2002
    %v2004 = vrot.slane %v1995, %v2003
    %v2005 = vlaneseq
    %v2006 = vshrl.u32 %v2005, 7
    %v2007 = vsub.s32 2, %v2006
    %v2008 = vrot.slane %v1995, %v2007
    %v2009 = vlaneseq
    %v2010 = vshrl.u32 %v2009, 7
    %v2011 = vsub.s32 3, %v2010
    %v2012 = vrot.slane %v1995, %v2011
    %v2033 = vunpack.c.l.b16 %v1947
    %v2034 = vunpack.c.l.b16 %v1948
    %v2035 = vunpack.c.l.b16 %v1949
    %v2036 = vunpack.c.l.b16 %v1950
    %v2037 = vunpack.c.l.b16 %v1951
    %v2038 = vunpack.c.l.b16 %v1952
    %v2039 = vunpack.c.l.b16 %v1953
    %v2040 = vunpack.c.l.b16 %v1954
    %v2041 = vunpack.c.l.b16 %v1955
    %v2042 = vunpack.c.l.b16 %v1956
    %v2043 = vunpack.c.l.b16 %v1957
    %v2044 = vunpack.c.l.b16 %v1958
    %v2045 = vunpack.c.l.b16 %v1959
    %v2046 = vunpack.c.l.b16 %v1960
    %v2047 = vunpack.c.l.b16 %v1961
    %v2048 = vunpack.c.l.b16 %v1962
    %v2049 = vpack.c.b16 %v2034, %v2033
    %v2050 = vpack.c.b16 %v2036, %v2035
    %v2051 = vpack.c.b16 %v2038, %v2037
    %v2052 = vpack.c.b16 %v2040, %v2039
    %v2053 = vpack.c.b16 %v2042, %v2041
    %v2054 = vpack.c.b16 %v2044, %v2043
    %v2055 = vpack.c.b16 %v2046, %v2045
    %v2056 = vpack.c.b16 %v2048, %v2047
    %v2097 = vunpack.c.l.b16 %v1963
    %v2098 = vunpack.c.h.b16 %v1963
    %v2099 = vunpack.c.l.b16 %v1964
    %v2100 = vunpack.c.h.b16 %v1964
    %v2101 = vunpack.c.l.b16 %v1965
    %v2102 = vunpack.c.h.b16 %v1965
    %v2103 = vunpack.c.l.b16 %v1966
    %v2104 = vunpack.c.h.b16 %v1966
    %v2105 = vunpack.c.l.b16 %v1967
    %v2106 = vunpack.c.h.b16 %v1967
    %v2107 = vunpack.c.l.b16 %v1968
    %v2108 = vunpack.c.h.b16 %v1968
    %v2109 = vunpack.c.l.b16 %v1969
    %v2110 = vunpack.c.h.b16 %v1969
    %v2111 = vunpack.c.l.b16 %v1970
    %v2112 = vunpack.c.h.b16 %v1970
    %v2113 = vunpack.c.l.b16 %v1971
    %v2114 = vunpack.c.h.b16 %v1971
    %v2115 = vunpack.c.l.b16 %v1972
    %v2116 = vunpack.c.h.b16 %v1972
    %v2117 = vunpack.c.l.b16 %v1973
    %v2118 = vunpack.c.h.b16 %v1973
    %v2119 = vunpack.c.l.b16 %v1974
    %v2120 = vunpack.c.h.b16 %v1974
    %v2121 = vunpack.c.l.b16 %v1975
    %v2122 = vunpack.c.h.b16 %v1975
    %v2123 = vunpack.c.l.b16 %v1976
    %v2124 = vunpack.c.h.b16 %v1976
    %v2125 = vunpack.c.l.b16 %v1977
    %v2126 = vunpack.c.h.b16 %v1977
    %v2127 = vunpack.c.l.b16 %v1978
    %v2128 = vunpack.c.h.b16 %v1978
    %v2129 = vunpack.c.l.b16 %v1979
    %v2130 = vunpack.c.h.b16 %v1979
    %v2131 = vunpack.c.l.b16 %v1980
    %v2132 = vunpack.c.h.b16 %v1980
    %v2133 = vunpack.c.l.b16 %v1981
    %v2134 = vunpack.c.h.b16 %v1981
    %v2135 = vunpack.c.l.b16 %v1982
    %v2136 = vunpack.c.h.b16 %v1982
    %v2137 = vunpack.c.l.b16 %v1983
    %v2138 = vunpack.c.h.b16 %v1983
    %v2139 = vunpack.c.l.b16 %v1984
    %v2140 = vunpack.c.h.b16 %v1984
    %v2141 = vunpack.c.l.b16 %v1985
    %v2142 = vunpack.c.h.b16 %v1985
    %v2143 = vunpack.c.l.b16 %v1986
    %v2144 = vunpack.c.h.b16 %v1986
    %v2145 = vunpack.c.l.b16 %v1987
    %v2146 = vunpack.c.h.b16 %v1987
    %v2147 = vunpack.c.l.b16 %v1988
    %v2148 = vunpack.c.h.b16 %v1988
    %v2149 = vunpack.c.l.b16 %v1989
    %v2150 = vunpack.c.h.b16 %v1989
    %v2151 = vunpack.c.l.b16 %v1990
    %v2152 = vunpack.c.h.b16 %v1990
    %v2153 = vunpack.c.l.b16 %v1991
    %v2154 = vunpack.c.h.b16 %v1991
    %v2155 = vunpack.c.l.b16 %v1992
    %v2156 = vunpack.c.h.b16 %v1992
    %v2157 = vunpack.c.l.b16 %v1993
    %v2158 = vunpack.c.h.b16 %v1993
    %v2159 = vunpack.c.l.b16 %v1994
    %v2160 = vunpack.c.h.b16 %v1994
    %v2161 = vpack.c.b16 %v2101, %v2097
    %v2162 = vpack.c.b16 %v2102, %v2098
    %v2163 = vpack.c.b16 %v2103, %v2099
    %v2164 = vpack.c.b16 %v2104, %v2100
    %v2165 = vpack.c.b16 %v2109, %v2105
    %v2166 = vpack.c.b16 %v2110, %v2106
    %v2167 = vpack.c.b16 %v2111, %v2107
    %v2168 = vpack.c.b16 %v2112, %v2108
    %v2169 = vpack.c.b16 %v2117, %v2113
    %v2170 = vpack.c.b16 %v2118, %v2114
    %v2171 = vpack.c.b16 %v2119, %v2115
    %v2172 = vpack.c.b16 %v2120, %v2116
    %v2173 = vpack.c.b16 %v2125, %v2121
    %v2174 = vpack.c.b16 %v2126, %v2122
    %v2175 = vpack.c.b16 %v2127, %v2123
    %v2176 = vpack.c.b16 %v2128, %v2124
    %v2177 = vpack.c.b16 %v2133, %v2129
    %v2178 = vpack.c.b16 %v2134, %v2130
    %v2179 = vpack.c.b16 %v2135, %v2131
    %v2180 = vpack.c.b16 %v2136, %v2132
    %v2181 = vpack.c.b16 %v2141, %v2137
    %v2182 = vpack.c.b16 %v2142, %v2138
    %v2183 = vpack.c.b16 %v2143, %v2139
    %v2184 = vpack.c.b16 %v2144, %v2140
    %v2185 = vpack.c.b16 %v2149, %v2145
    %v2186 = vpack.c.b16 %v2150, %v2146
    %v2187 = vpack.c.b16 %v2151, %v2147
    %v2188 = vpack.c.b16 %v2152, %v2148
    %v2189 = vpack.c.b16 %v2157, %v2153
    %v2190 = vpack.c.b16 %v2158, %v2154
    %v2191 = vpack.c.b16 %v2159, %v2155
    %v2192 = vpack.c.b16 %v2160, %v2156
    %2225 = vmatprep.subr.bf16.mxu0 %v2190
    %2226 = vmatpush1.bf16.msra.mxu0 %v2189
    %2227 = vmatprep.subr.bf16.mxu0 %v2186
    %2228 = vmatpush1.bf16.msra.mxu0 %v2185
    %2229 = vmatprep.subr.bf16.mxu0 %v2182
    %2230 = vmatpush1.bf16.msra.mxu0 %v2181
    %2231 = vmatprep.subr.bf16.mxu0 %v2178
    %2232 = vmatpush1.bf16.msra.mxu0 %v2177
    %2233 = vmatprep.subr.bf16.mxu0 %v2174
    %2234 = vmatpush1.bf16.msra.mxu0 %v2173
    %2235 = vmatprep.subr.bf16.mxu0 %v2170
    %2236 = vmatpush1.bf16.msra.mxu0 %v2169
    %2237 = vmatprep.subr.bf16.mxu0 %v2166
    %2238 = vmatpush1.bf16.msra.mxu0 %v2165
    %2239 = vmatprep.subr.bf16.mxu0 %v2162
    %2240 = vmatpush1.bf16.msra.mxu0 %v2161
    %2241 = vmatprep.subr.bf16.mxu0 0
    %2242 = vmatpush2.bf16.msra.mxu0 0
    %2243 = vmatprep.subr.bf16.mxu0 0
    %2244 = vmatpush2.bf16.msra.mxu0 0
    %2245 = vmatprep.subr.bf16.mxu0 0
    %2246 = vmatpush2.bf16.msra.mxu0 0
    %2247 = vmatprep.subr.bf16.mxu0 0
    %2248 = vmatpush2.bf16.msra.mxu0 0
    %2249 = vmatprep.subr.bf16.mxu0 0
    %2250 = vmatpush2.bf16.msra.mxu0 0
    %2251 = vmatprep.subr.bf16.mxu0 0
    %2252 = vmatpush2.bf16.msra.mxu0 0
    %2253 = vmatprep.subr.bf16.mxu0 0
    %2254 = vmatpush2.bf16.msra.mxu0 0
    %2255 = vmatprep.subr.bf16.mxu0 0
    %2256 = vmatpush2.bf16.msra.mxu0 0
    %2257 = vmatprep.mubr.bf16.mxu0 0
    %2258 = vmatmul.mubr.bf16.gmra.mxu0 %v2049
    %v2259 = vpop.f32.mrf.mxu0
    %v2260 = vadd.f32 %v2000, %v2259
    %v2261 = vpop.f32.mrf.mxu0
    %v2262 = vadd.f32 %v2004, %v2261
    %v2263 = vpop.f32.mrf.mxu0
    %v2264 = vadd.f32 %v2000, %v2263
    %v2265 = vpop.f32.mrf.mxu0
    %v2266 = vadd.f32 %v2004, %v2265
    %2267 = vmatprep.mubr.bf16.mxu0 0
    %2268 = vmatmul.mubr.bf16.gmra.mxu0 %v2050
    %v2269 = vpop.f32.mrf.mxu0
    %v2270 = vadd.f32 %v2000, %v2269
    %v2271 = vpop.f32.mrf.mxu0
    %v2272 = vadd.f32 %v2004, %v2271
    %v2273 = vpop.f32.mrf.mxu0
    %v2274 = vadd.f32 %v2000, %v2273
    %v2275 = vpop.f32.mrf.mxu0
    %v2276 = vadd.f32 %v2004, %v2275
    %2277 = vmatprep.mubr.bf16.mxu0 0
    %2278 = vmatmul.mubr.bf16.gmra.mxu0 %v2051
    %v2279 = vpop.f32.mrf.mxu0
    %v2280 = vadd.f32 %v2000, %v2279
    %v2281 = vpop.f32.mrf.mxu0
    %v2282 = vadd.f32 %v2004, %v2281
    %v2283 = vpop.f32.mrf.mxu0
    %v2284 = vadd.f32 %v2000, %v2283
    %v2285 = vpop.f32.mrf.mxu0
    %v2286 = vadd.f32 %v2004, %v2285
    %2287 = vmatprep.mubr.bf16.mxu0 0
    %2288 = vmatmul.mubr.bf16.gmra.mxu0 %v2052
    %v2289 = vpop.f32.mrf.mxu0
    %v2290 = vadd.f32 %v2000, %v2289
    %v2291 = vpop.f32.mrf.mxu0
    %v2292 = vadd.f32 %v2004, %v2291
    %v2293 = vpop.f32.mrf.mxu0
    %v2294 = vadd.f32 %v2000, %v2293
    %v2295 = vpop.f32.mrf.mxu0
    %v2296 = vadd.f32 %v2004, %v2295
    %2297 = vmatprep.mubr.bf16.mxu0 0
    %2298 = vmatmul.mubr.bf16.gmra.mxu0 %v2053
    %v2299 = vpop.f32.mrf.mxu0
    %v2300 = vadd.f32 %v2000, %v2299
    %v2301 = vpop.f32.mrf.mxu0
    %v2302 = vadd.f32 %v2004, %v2301
    %v2303 = vpop.f32.mrf.mxu0
    %v2304 = vadd.f32 %v2000, %v2303
    %v2305 = vpop.f32.mrf.mxu0
    %v2306 = vadd.f32 %v2004, %v2305
    %2307 = vmatprep.mubr.bf16.mxu0 0
    %2308 = vmatmul.mubr.bf16.gmra.mxu0 %v2054
    %v2309 = vpop.f32.mrf.mxu0
    %v2310 = vadd.f32 %v2000, %v2309
    %v2311 = vpop.f32.mrf.mxu0
    %v2312 = vadd.f32 %v2004, %v2311
    %v2313 = vpop.f32.mrf.mxu0
    %v2314 = vadd.f32 %v2000, %v2313
    %v2315 = vpop.f32.mrf.mxu0
    %v2316 = vadd.f32 %v2004, %v2315
    %2317 = vmatprep.mubr.bf16.mxu0 0
    %2318 = vmatmul.mubr.bf16.gmra.mxu0 %v2055
    %v2319 = vpop.f32.mrf.mxu0
    %v2320 = vadd.f32 %v2000, %v2319
    %v2321 = vpop.f32.mrf.mxu0
    %v2322 = vadd.f32 %v2004, %v2321
    %v2323 = vpop.f32.mrf.mxu0
    %v2324 = vadd.f32 %v2000, %v2323
    %v2325 = vpop.f32.mrf.mxu0
    %v2326 = vadd.f32 %v2004, %v2325
    %2327 = vmatprep.mubr.bf16.mxu0 0
    %2328 = vmatmul.mubr.bf16.gmra.mxu0 %v2056
    %v2329 = vpop.f32.mrf.mxu0
    %v2330 = vadd.f32 %v2000, %v2329
    %v2331 = vpop.f32.mrf.mxu0
    %v2332 = vadd.f32 %v2004, %v2331
    %v2333 = vpop.f32.mrf.mxu0
    %v2334 = vadd.f32 %v2000, %v2333
    %v2335 = vpop.f32.mrf.mxu0
    %v2336 = vadd.f32 %v2004, %v2335
    %2337 = vdwg.mxu0
    %2338 = vmatprep.subr.bf16.mxu0 %v2192
    %2339 = vmatpush1.bf16.msra.mxu0 %v2191
    %2340 = vmatprep.subr.bf16.mxu0 %v2188
    %2341 = vmatpush1.bf16.msra.mxu0 %v2187
    %2342 = vmatprep.subr.bf16.mxu0 %v2184
    %2343 = vmatpush1.bf16.msra.mxu0 %v2183
    %2344 = vmatprep.subr.bf16.mxu0 %v2180
    %2345 = vmatpush1.bf16.msra.mxu0 %v2179
    %2346 = vmatprep.subr.bf16.mxu0 %v2176
    %2347 = vmatpush1.bf16.msra.mxu0 %v2175
    %2348 = vmatprep.subr.bf16.mxu0 %v2172
    %2349 = vmatpush1.bf16.msra.mxu0 %v2171
    %2350 = vmatprep.subr.bf16.mxu0 %v2168
    %2351 = vmatpush1.bf16.msra.mxu0 %v2167
    %2352 = vmatprep.subr.bf16.mxu0 %v2164
    %2353 = vmatpush1.bf16.msra.mxu0 %v2163
    %2354 = vmatprep.subr.bf16.mxu0 0
    %2355 = vmatpush2.bf16.msra.mxu0 0
    %2356 = vmatprep.subr.bf16.mxu0 0
    %2357 = vmatpush2.bf16.msra.mxu0 0
    %2358 = vmatprep.subr.bf16.mxu0 0
    %2359 = vmatpush2.bf16.msra.mxu0 0
    %2360 = vmatprep.subr.bf16.mxu0 0
    %2361 = vmatpush2.bf16.msra.mxu0 0
    %2362 = vmatprep.subr.bf16.mxu0 0
    %2363 = vmatpush2.bf16.msra.mxu0 0
    %2364 = vmatprep.subr.bf16.mxu0 0
    %2365 = vmatpush2.bf16.msra.mxu0 0
    %2366 = vmatprep.subr.bf16.mxu0 0
    %2367 = vmatpush2.bf16.msra.mxu0 0
    %2368 = vmatprep.subr.bf16.mxu0 0
    %2369 = vmatpush2.bf16.msra.mxu0 0
    %2370 = vmatprep.mubr.bf16.mxu0 0
    %2371 = vmatmul.mubr.bf16.gmra.mxu0 %v2049
    %v2372 = vpop.f32.mrf.mxu0
    %v2373 = vadd.f32 %v2008, %v2372
    %v2374 = vpop.f32.mrf.mxu0
    %v2375 = vadd.f32 %v2012, %v2374
    %v2376 = vpop.f32.mrf.mxu0
    %v2377 = vadd.f32 %v2008, %v2376
    %v2378 = vpop.f32.mrf.mxu0
    %v2379 = vadd.f32 %v2012, %v2378
    %2380 = vmatprep.mubr.bf16.mxu0 0
    %2381 = vmatmul.mubr.bf16.gmra.mxu0 %v2050
    %v2382 = vpop.f32.mrf.mxu0
    %v2383 = vadd.f32 %v2008, %v2382
    %v2384 = vpop.f32.mrf.mxu0
    %v2385 = vadd.f32 %v2012, %v2384
    %v2386 = vpop.f32.mrf.mxu0
    %v2387 = vadd.f32 %v2008, %v2386
    %v2388 = vpop.f32.mrf.mxu0
    %v2389 = vadd.f32 %v2012, %v2388
    %2390 = vmatprep.mubr.bf16.mxu0 0
    %2391 = vmatmul.mubr.bf16.gmra.mxu0 %v2051
    %v2392 = vpop.f32.mrf.mxu0
    %v2393 = vadd.f32 %v2008, %v2392
    %v2394 = vpop.f32.mrf.mxu0
    %v2395 = vadd.f32 %v2012, %v2394
    %v2396 = vpop.f32.mrf.mxu0
    %v2397 = vadd.f32 %v2008, %v2396
    %v2398 = vpop.f32.mrf.mxu0
    %v2399 = vadd.f32 %v2012, %v2398
    %2400 = vmatprep.mubr.bf16.mxu0 0
    %2401 = vmatmul.mubr.bf16.gmra.mxu0 %v2052
    %v2402 = vpop.f32.mrf.mxu0
    %v2403 = vadd.f32 %v2008, %v2402
    %v2404 = vpop.f32.mrf.mxu0
    %v2405 = vadd.f32 %v2012, %v2404
    %v2406 = vpop.f32.mrf.mxu0
    %v2407 = vadd.f32 %v2008, %v2406
    %v2408 = vpop.f32.mrf.mxu0
    %v2409 = vadd.f32 %v2012, %v2408
    %2410 = vmatprep.mubr.bf16.mxu0 0
    %2411 = vmatmul.mubr.bf16.gmra.mxu0 %v2053
    %v2412 = vpop.f32.mrf.mxu0
    %v2413 = vadd.f32 %v2008, %v2412
    %v2414 = vpop.f32.mrf.mxu0
    %v2415 = vadd.f32 %v2012, %v2414
    %v2416 = vpop.f32.mrf.mxu0
    %v2417 = vadd.f32 %v2008, %v2416
    %v2418 = vpop.f32.mrf.mxu0
    %v2419 = vadd.f32 %v2012, %v2418
    %2420 = vmatprep.mubr.bf16.mxu0 0
    %2421 = vmatmul.mubr.bf16.gmra.mxu0 %v2054
    %v2422 = vpop.f32.mrf.mxu0
    %v2423 = vadd.f32 %v2008, %v2422
    %v2424 = vpop.f32.mrf.mxu0
    %v2425 = vadd.f32 %v2012, %v2424
    %v2426 = vpop.f32.mrf.mxu0
    %v2427 = vadd.f32 %v2008, %v2426
    %v2428 = vpop.f32.mrf.mxu0
    %v2429 = vadd.f32 %v2012, %v2428
    %2430 = vmatprep.mubr.bf16.mxu0 0
    %2431 = vmatmul.mubr.bf16.gmra.mxu0 %v2055
    %v2432 = vpop.f32.mrf.mxu0
    %v2433 = vadd.f32 %v2008, %v2432
    %v2434 = vpop.f32.mrf.mxu0
    %v2435 = vadd.f32 %v2012, %v2434
    %v2436 = vpop.f32.mrf.mxu0
    %v2437 = vadd.f32 %v2008, %v2436
    %v2438 = vpop.f32.mrf.mxu0
    %v2439 = vadd.f32 %v2012, %v2438
    %2440 = vmatprep.mubr.bf16.mxu0 0
    %2441 = vmatmul.mubr.bf16.gmra.mxu0 %v2056
    %v2442 = vpop.f32.mrf.mxu0
    %v2443 = vadd.f32 %v2008, %v2442
    %v2444 = vpop.f32.mrf.mxu0
    %v2445 = vadd.f32 %v2012, %v2444
    %v2446 = vpop.f32.mrf.mxu0
    %v2447 = vadd.f32 %v2008, %v2446
    %v2448 = vpop.f32.mrf.mxu0
    %v2449 = vadd.f32 %v2012, %v2448
    %2450 = vdwg.mxu0
    %2451 = vst [vmem:[#allocation2] sm:$0xff] %v2260
    %2452 = vst [vmem:[#allocation2 + $0x8] sm:$0xff] %v2262
    %2453 = vst [vmem:[#allocation2 + $0x10] sm:$0xff] %v2373
    %2454 = vst [vmem:[#allocation2 + $0x18] sm:$0xff] %v2375
    %2455 = vst [vmem:[#allocation2 + $0x20] sm:$0xff] %v2264
    %2456 = vst [vmem:[#allocation2 + $0x28] sm:$0xff] %v2266
    %2457 = vst [vmem:[#allocation2 + $0x30] sm:$0xff] %v2377
    %2458 = vst [vmem:[#allocation2 + $0x38] sm:$0xff] %v2379
    %2459 = vst [vmem:[#allocation2 + $0x40] sm:$0xff] %v2270
    %2460 = vst [vmem:[#allocation2 + $0x48] sm:$0xff] %v2272
    %2461 = vst [vmem:[#allocation2 + $0x50] sm:$0xff] %v2383
    %2462 = vst [vmem:[#allocation2 + $0x58] sm:$0xff] %v2385
    %2463 = vst [vmem:[#allocation2 + $0x60] sm:$0xff] %v2274
    %2464 = vst [vmem:[#allocation2 + $0x68] sm:$0xff] %v2276
    %2465 = vst [vmem:[#allocation2 + $0x70] sm:$0xff] %v2387
    %2466 = vst [vmem:[#allocation2 + $0x78] sm:$0xff] %v2389
    %2467 = vst [vmem:[#allocation2 + $0x80] sm:$0xff] %v2280
    %2468 = vst [vmem:[#allocation2 + $0x88] sm:$0xff] %v2282
    %2469 = vst [vmem:[#allocation2 + $0x90] sm:$0xff] %v2393
    %2470 = vst [vmem:[#allocation2 + $0x98] sm:$0xff] %v2395
    %2471 = vst [vmem:[#allocation2 + $0xa0] sm:$0xff] %v2284
    %2472 = vst [vmem:[#allocation2 + $0xa8] sm:$0xff] %v2286
    %2473 = vst [vmem:[#allocation2 + $0xb0] sm:$0xff] %v2397
    %2474 = vst [vmem:[#allocation2 + $0xb8] sm:$0xff] %v2399
    %2475 = vst [vmem:[#allocation2 + $0xc0] sm:$0xff] %v2290
    %2476 = vst [vmem:[#allocation2 + $0xc8] sm:$0xff] %v2292
    %2477 = vst [vmem:[#allocation2 + $0xd0] sm:$0xff] %v2403
    %2478 = vst [vmem:[#allocation2 + $0xd8] sm:$0xff] %v2405
    %2479 = vst [vmem:[#allocation2 + $0xe0] sm:$0xff] %v2294
    %2480 = vst [vmem:[#allocation2 + $0xe8] sm:$0xff] %v2296
    %2481 = vst [vmem:[#allocation2 + $0xf0] sm:$0xff] %v2407
    %2482 = vst [vmem:[#allocation2 + $0xf8] sm:$0xff] %v2409
    %2483 = vst [vmem:[#allocation2 + $0x100] sm:$0xff] %v2300
    %2484 = vst [vmem:[#allocation2 + $0x108] sm:$0xff] %v2302
    %2485 = vst [vmem:[#allocation2 + $0x110] sm:$0xff] %v2413
    %2486 = vst [vmem:[#allocation2 + $0x118] sm:$0xff] %v2415
    %2487 = vst [vmem:[#allocation2 + $0x120] sm:$0xff] %v2304
    %2488 = vst [vmem:[#allocation2 + $0x128] sm:$0xff] %v2306
    %2489 = vst [vmem:[#allocation2 + $0x130] sm:$0xff] %v2417
    %2490 = vst [vmem:[#allocation2 + $0x138] sm:$0xff] %v2419
    %2491 = vst [vmem:[#allocation2 + $0x140] sm:$0xff] %v2310
    %2492 = vst [vmem:[#allocation2 + $0x148] sm:$0xff] %v2312
    %2493 = vst [vmem:[#allocation2 + $0x150] sm:$0xff] %v2423
    %2494 = vst [vmem:[#allocation2 + $0x158] sm:$0xff] %v2425
    %2495 = vst [vmem:[#allocation2 + $0x160] sm:$0xff] %v2314
    %2496 = vst [vmem:[#allocation2 + $0x168] sm:$0xff] %v2316
    %2497 = vst [vmem:[#allocation2 + $0x170] sm:$0xff] %v2427
    %2498 = vst [vmem:[#allocation2 + $0x178] sm:$0xff] %v2429
    %2499 = vst [vmem:[#allocation2 + $0x180] sm:$0xff] %v2320
    %2500 = vst [vmem:[#allocation2 + $0x188] sm:$0xff] %v2322
    %2501 = vst [vmem:[#allocation2 + $0x190] sm:$0xff] %v2433
    %2502 = vst [vmem:[#allocation2 + $0x198] sm:$0xff] %v2435
    %2503 = vst [vmem:[#allocation2 + $0x1a0] sm:$0xff] %v2324
    %2504 = vst [vmem:[#allocation2 + $0x1a8] sm:$0xff] %v2326
    %2505 = vst [vmem:[#allocation2 + $0x1b0] sm:$0xff] %v2437
    %2506 = vst [vmem:[#allocation2 + $0x1b8] sm:$0xff] %v2439
    %2507 = vst [vmem:[#allocation2 + $0x1c0] sm:$0xff] %v2330
    %2508 = vst [vmem:[#allocation2 + $0x1c8] sm:$0xff] %v2332
    %2509 = vst [vmem:[#allocation2 + $0x1d0] sm:$0xff] %v2443
    %2510 = vst [vmem:[#allocation2 + $0x1d8] sm:$0xff] %v2445
    %2511 = vst [vmem:[#allocation2 + $0x1e0] sm:$0xff] %v2334
    %2512 = vst [vmem:[#allocation2 + $0x1e8] sm:$0xff] %v2336
    %2513 = vst [vmem:[#allocation2 + $0x1f0] sm:$0xff] %v2447
    %2514 = vst [vmem:[#allocation2 + $0x1f8] sm:$0xff] %v2449
    loop: start=0, step=1, limit=2
    $region57: #{lstm_forward.1} parent=1 // loop_pre_header
      _
    $region58: #{lstm_forward.1} parent=1 // loop_header
      %s2516 = sphi 0, %s2520
      %p2517 = scmp.ge.s32.totalorder %s2516, 2
      %v2521 = vphi 0.0, %v3347
      %v2522 = vphi 0.0, %v3348
      %v2523 = vphi 0.0, %v3343
      %v2524 = vphi 0.0, %v3344
    $region59: #{lstm_forward.1} parent=1 // loop_header_branch
      %2519 = sbr.rel (%p2517) target = $region63
    $region60: #{lstm_forward.1} parent=1 // loop_body
      %s2525 = smul.u32 %s2516, 64
      %s2526 = sshra.s32 %s2525, 3
      %s2527 = sand.u32 %s2525, 7
      %s2528 = smul.u32 %s2526, 4
      %s2529 = smul.addr %s2528, 8
      %s2530 = scalar_lea.vmem [#allocation2], %s2529
      %v2531 = vld [vmem:[%s2530] sm:$0xff]
      %v2532 = vld [vmem:[%s2530 + $0x8] sm:$0xff]
      %v2533 = vld [vmem:[%s2530 + $0x10] sm:$0xff]
      %v2534 = vld [vmem:[%s2530 + $0x18] sm:$0xff]
      %v2535 = vld [vmem:[%s2530 + $0x20] sm:$0xff]
      %v2536 = vld [vmem:[%s2530 + $0x28] sm:$0xff]
      %v2537 = vld [vmem:[%s2530 + $0x30] sm:$0xff]
      %v2538 = vld [vmem:[%s2530 + $0x38] sm:$0xff]
      %v2539 = vpack.c.bf16 %v2522, %v2521
      %v2540 = vld [vmem:[#allocation8] sm:$0xff]
      %v2541 = vld [vmem:[#allocation8 + $0x8] sm:$0xff]
      %v2542 = vld [vmem:[#allocation8 + $0x10] sm:$0xff]
      %v2543 = vld [vmem:[#allocation8 + $0x18] sm:$0xff]
      %v2544 = vld [vmem:[#allocation8 + $0x20] sm:$0xff]
      %v2545 = vld [vmem:[#allocation8 + $0x28] sm:$0xff]
      %v2546 = vld [vmem:[#allocation8 + $0x30] sm:$0xff]
      %v2547 = vld [vmem:[#allocation8 + $0x38] sm:$0xff]
      %v2548 = vld [vmem:[#allocation8 + $0x40] sm:$0xff]
      %v2549 = vld [vmem:[#allocation8 + $0x48] sm:$0xff]
      %v2550 = vld [vmem:[#allocation8 + $0x50] sm:$0xff]
      %v2551 = vld [vmem:[#allocation8 + $0x58] sm:$0xff]
      %v2552 = vld [vmem:[#allocation8 + $0x60] sm:$0xff]
      %v2553 = vld [vmem:[#allocation8 + $0x68] sm:$0xff]
      %v2554 = vld [vmem:[#allocation8 + $0x70] sm:$0xff]
      %v2555 = vld [vmem:[#allocation8 + $0x78] sm:$0xff]
      %v2556 = vld [vmem:[#allocation8 + $0x80] sm:$0xff]
      %v2557 = vld [vmem:[#allocation8 + $0x88] sm:$0xff]
      %v2558 = vld [vmem:[#allocation8 + $0x90] sm:$0xff]
      %v2559 = vld [vmem:[#allocation8 + $0x98] sm:$0xff]
      %v2560 = vld [vmem:[#allocation8 + $0xa0] sm:$0xff]
      %v2561 = vld [vmem:[#allocation8 + $0xa8] sm:$0xff]
      %v2562 = vld [vmem:[#allocation8 + $0xb0] sm:$0xff]
      %v2563 = vld [vmem:[#allocation8 + $0xb8] sm:$0xff]
      %v2564 = vld [vmem:[#allocation8 + $0xc0] sm:$0xff]
      %v2565 = vld [vmem:[#allocation8 + $0xc8] sm:$0xff]
      %v2566 = vld [vmem:[#allocation8 + $0xd0] sm:$0xff]
      %v2567 = vld [vmem:[#allocation8 + $0xd8] sm:$0xff]
      %v2568 = vld [vmem:[#allocation8 + $0xe0] sm:$0xff]
      %v2569 = vld [vmem:[#allocation8 + $0xe8] sm:$0xff]
      %v2570 = vld [vmem:[#allocation8 + $0xf0] sm:$0xff]
      %v2571 = vld [vmem:[#allocation8 + $0xf8] sm:$0xff]
      %v2604 = vunpack.c.l.b16 %v2540
      %v2605 = vunpack.c.h.b16 %v2540
      %v2606 = vunpack.c.l.b16 %v2541
      %v2607 = vunpack.c.h.b16 %v2541
      %v2608 = vunpack.c.l.b16 %v2542
      %v2609 = vunpack.c.h.b16 %v2542
      %v2610 = vunpack.c.l.b16 %v2543
      %v2611 = vunpack.c.h.b16 %v2543
      %v2612 = vunpack.c.l.b16 %v2544
      %v2613 = vunpack.c.h.b16 %v2544
      %v2614 = vunpack.c.l.b16 %v2545
      %v2615 = vunpack.c.h.b16 %v2545
      %v2616 = vunpack.c.l.b16 %v2546
      %v2617 = vunpack.c.h.b16 %v2546
      %v2618 = vunpack.c.l.b16 %v2547
      %v2619 = vunpack.c.h.b16 %v2547
      %v2620 = vunpack.c.l.b16 %v2548
      %v2621 = vunpack.c.h.b16 %v2548
      %v2622 = vunpack.c.l.b16 %v2549
      %v2623 = vunpack.c.h.b16 %v2549
      %v2624 = vunpack.c.l.b16 %v2550
      %v2625 = vunpack.c.h.b16 %v2550
      %v2626 = vunpack.c.l.b16 %v2551
      %v2627 = vunpack.c.h.b16 %v2551
      %v2628 = vunpack.c.l.b16 %v2552
      %v2629 = vunpack.c.h.b16 %v2552
      %v2630 = vunpack.c.l.b16 %v2553
      %v2631 = vunpack.c.h.b16 %v2553
      %v2632 = vunpack.c.l.b16 %v2554
      %v2633 = vunpack.c.h.b16 %v2554
      %v2634 = vunpack.c.l.b16 %v2555
      %v2635 = vunpack.c.h.b16 %v2555
      %v2636 = vunpack.c.l.b16 %v2556
      %v2637 = vunpack.c.h.b16 %v2556
      %v2638 = vunpack.c.l.b16 %v2557
      %v2639 = vunpack.c.h.b16 %v2557
      %v2640 = vunpack.c.l.b16 %v2558
      %v2641 = vunpack.c.h.b16 %v2558
      %v2642 = vunpack.c.l.b16 %v2559
      %v2643 = vunpack.c.h.b16 %v2559
      %v2644 = vunpack.c.l.b16 %v2560
      %v2645 = vunpack.c.h.b16 %v2560
      %v2646 = vunpack.c.l.b16 %v2561
      %v2647 = vunpack.c.h.b16 %v2561
      %v2648 = vunpack.c.l.b16 %v2562
      %v2649 = vunpack.c.h.b16 %v2562
      %v2650 = vunpack.c.l.b16 %v2563
      %v2651 = vunpack.c.h.b16 %v2563
      %v2652 = vunpack.c.l.b16 %v2564
      %v2653 = vunpack.c.h.b16 %v2564
      %v2654 = vunpack.c.l.b16 %v2565
      %v2655 = vunpack.c.h.b16 %v2565
      %v2656 = vunpack.c.l.b16 %v2566
      %v2657 = vunpack.c.h.b16 %v2566
      %v2658 = vunpack.c.l.b16 %v2567
      %v2659 = vunpack.c.h.b16 %v2567
      %v2660 = vunpack.c.l.b16 %v2568
      %v2661 = vunpack.c.h.b16 %v2568
      %v2662 = vunpack.c.l.b16 %v2569
      %v2663 = vunpack.c.h.b16 %v2569
      %v2664 = vunpack.c.l.b16 %v2570
      %v2665 = vunpack.c.h.b16 %v2570
      %v2666 = vunpack.c.l.b16 %v2571
      %v2667 = vunpack.c.h.b16 %v2571
      %v2668 = vpack.c.b16 %v2608, %v2604
      %v2669 = vpack.c.b16 %v2609, %v2605
      %v2670 = vpack.c.b16 %v2610, %v2606
      %v2671 = vpack.c.b16 %v2611, %v2607
      %v2672 = vpack.c.b16 %v2616, %v2612
      %v2673 = vpack.c.b16 %v2617, %v2613
      %v2674 = vpack.c.b16 %v2618, %v2614
      %v2675 = vpack.c.b16 %v2619, %v2615
      %v2676 = vpack.c.b16 %v2624, %v2620
      %v2677 = vpack.c.b16 %v2625, %v2621
      %v2678 = vpack.c.b16 %v2626, %v2622
      %v2679 = vpack.c.b16 %v2627, %v2623
      %v2680 = vpack.c.b16 %v2632, %v2628
      %v2681 = vpack.c.b16 %v2633, %v2629
      %v2682 = vpack.c.b16 %v2634, %v2630
      %v2683 = vpack.c.b16 %v2635, %v2631
      %v2684 = vpack.c.b16 %v2640, %v2636
      %v2685 = vpack.c.b16 %v2641, %v2637
      %v2686 = vpack.c.b16 %v2642, %v2638
      %v2687 = vpack.c.b16 %v2643, %v2639
      %v2688 = vpack.c.b16 %v2648, %v2644
      %v2689 = vpack.c.b16 %v2649, %v2645
      %v2690 = vpack.c.b16 %v2650, %v2646
      %v2691 = vpack.c.b16 %v2651, %v2647
      %v2692 = vpack.c.b16 %v2656, %v2652
      %v2693 = vpack.c.b16 %v2657, %v2653
      %v2694 = vpack.c.b16 %v2658, %v2654
      %v2695 = vpack.c.b16 %v2659, %v2655
      %v2696 = vpack.c.b16 %v2664, %v2660
      %v2697 = vpack.c.b16 %v2665, %v2661
      %v2698 = vpack.c.b16 %v2666, %v2662
      %v2699 = vpack.c.b16 %v2667, %v2663
      %2732 = vmatprep.subr.bf16.mxu0 %v2697
      %2733 = vmatpush1.bf16.msra.mxu0 %v2696
      %2734 = vmatprep.subr.bf16.mxu0 %v2693
      %2735 = vmatpush1.bf16.msra.mxu0 %v2692
      %2736 = vmatprep.subr.bf16.mxu0 %v2689
      %2737 = vmatpush1.bf16.msra.mxu0 %v2688
      %2738 = vmatprep.subr.bf16.mxu0 %v2685
      %2739 = vmatpush1.bf16.msra.mxu0 %v2684
      %2740 = vmatprep.subr.bf16.mxu0 %v2681
      %2741 = vmatpush1.bf16.msra.mxu0 %v2680
      %2742 = vmatprep.subr.bf16.mxu0 %v2677
      %2743 = vmatpush1.bf16.msra.mxu0 %v2676
      %2744 = vmatprep.subr.bf16.mxu0 %v2673
      %2745 = vmatpush1.bf16.msra.mxu0 %v2672
      %2746 = vmatprep.subr.bf16.mxu0 %v2669
      %2747 = vmatpush1.bf16.msra.mxu0 %v2668
      %2748 = vmatprep.subr.bf16.mxu0 0
      %2749 = vmatpush2.bf16.msra.mxu0 0
      %2750 = vmatprep.subr.bf16.mxu0 0
      %2751 = vmatpush2.bf16.msra.mxu0 0
      %2752 = vmatprep.subr.bf16.mxu0 0
      %2753 = vmatpush2.bf16.msra.mxu0 0
      %2754 = vmatprep.subr.bf16.mxu0 0
      %2755 = vmatpush2.bf16.msra.mxu0 0
      %2756 = vmatprep.subr.bf16.mxu0 0
      %2757 = vmatpush2.bf16.msra.mxu0 0
      %2758 = vmatprep.subr.bf16.mxu0 0
      %2759 = vmatpush2.bf16.msra.mxu0 0
      %2760 = vmatprep.subr.bf16.mxu0 0
      %2761 = vmatpush2.bf16.msra.mxu0 0
      %2762 = vmatprep.subr.bf16.mxu0 0
      %2763 = vmatpush2.bf16.msra.mxu0 0
      %2764 = vmatprep.mubr.bf16.mxu0 0
      %2765 = vmatmul.mubr.bf16.gmra.mxu0 %v2539
      %v2766 = vpop.f32.mrf.mxu0
      %v2767 = vadd.f32 0.0, %v2766
      %v2768 = vpop.f32.mrf.mxu0
      %v2769 = vadd.f32 0.0, %v2768
      %v2770 = vpop.f32.mrf.mxu0
      %v2771 = vadd.f32 0.0, %v2770
      %v2772 = vpop.f32.mrf.mxu0
      %v2773 = vadd.f32 0.0, %v2772
      %2774 = vdwg.mxu0
      %2775 = vmatprep.subr.bf16.mxu0 %v2699
      %2776 = vmatpush1.bf16.msra.mxu0 %v2698
      %2777 = vmatprep.subr.bf16.mxu0 %v2695
      %2778 = vmatpush1.bf16.msra.mxu0 %v2694
      %2779 = vmatprep.subr.bf16.mxu0 %v2691
      %2780 = vmatpush1.bf16.msra.mxu0 %v2690
      %2781 = vmatprep.subr.bf16.mxu0 %v2687
      %2782 = vmatpush1.bf16.msra.mxu0 %v2686
      %2783 = vmatprep.subr.bf16.mxu0 %v2683
      %2784 = vmatpush1.bf16.msra.mxu0 %v2682
      %2785 = vmatprep.subr.bf16.mxu0 %v2679
      %2786 = vmatpush1.bf16.msra.mxu0 %v2678
      %2787 = vmatprep.subr.bf16.mxu0 %v2675
      %2788 = vmatpush1.bf16.msra.mxu0 %v2674
      %2789 = vmatprep.subr.bf16.mxu0 %v2671
      %2790 = vmatpush1.bf16.msra.mxu0 %v2670
      %2791 = vmatprep.subr.bf16.mxu0 0
      %2792 = vmatpush2.bf16.msra.mxu0 0
      %2793 = vmatprep.subr.bf16.mxu0 0
      %2794 = vmatpush2.bf16.msra.mxu0 0
      %2795 = vmatprep.subr.bf16.mxu0 0
      %2796 = vmatpush2.bf16.msra.mxu0 0
      %2797 = vmatprep.subr.bf16.mxu0 0
      %2798 = vmatpush2.bf16.msra.mxu0 0
      %2799 = vmatprep.subr.bf16.mxu0 0
      %2800 = vmatpush2.bf16.msra.mxu0 0
      %2801 = vmatprep.subr.bf16.mxu0 0
      %2802 = vmatpush2.bf16.msra.mxu0 0
      %2803 = vmatprep.subr.bf16.mxu0 0
      %2804 = vmatpush2.bf16.msra.mxu0 0
      %2805 = vmatprep.subr.bf16.mxu0 0
      %2806 = vmatpush2.bf16.msra.mxu0 0
      %2807 = vmatprep.mubr.bf16.mxu0 0
      %2808 = vmatmul.mubr.bf16.gmra.mxu0 %v2539
      %v2809 = vpop.f32.mrf.mxu0
      %v2810 = vadd.f32 0.0, %v2809
      %v2811 = vpop.f32.mrf.mxu0
      %v2812 = vadd.f32 0.0, %v2811
      %v2813 = vpop.f32.mrf.mxu0
      %v2814 = vadd.f32 0.0, %v2813
      %v2815 = vpop.f32.mrf.mxu0
      %v2816 = vadd.f32 0.0, %v2815
      %2817 = vdwg.mxu0
      %v2818 = vadd.f32 %v2531, %v2767
      %v2819 = vadd.f32 %v2532, %v2769
      %v2820 = vadd.f32 %v2533, %v2810
      %v2821 = vadd.f32 %v2534, %v2812
      %v2822 = vadd.f32 %v2535, %v2771
      %v2823 = vadd.f32 %v2536, %v2773
      %v2824 = vadd.f32 %v2537, %v2814
      %v2825 = vadd.f32 %v2538, %v2816
      %v2826 = vxor.u32 %v2818, 2147483648
      %v2827 = vxor.u32 %v2819, 2147483648
      %v2828 = vxor.u32 %v2820, 2147483648
      %v2829 = vxor.u32 %v2822, 2147483648
      %v2830 = vxor.u32 %v2823, 2147483648
      %v2831 = vxor.u32 %v2824, 2147483648
      %v2832 = vmul.f32 %v2826, 1.442695
      %v2833 = vpow.pop %v2832
      %v2834 = vmul.f32 %v2827, 1.442695
      %v2835 = vpow.pop %v2834
      %v2836 = vmul.f32 %v2828, 1.442695
      %v2837 = vpow.pop %v2836
      %v2838 = vmul.f32 %v2829, 1.442695
      %v2839 = vpow.pop %v2838
      %v2840 = vmul.f32 %v2830, 1.442695
      %v2841 = vpow.pop %v2840
      %v2842 = vmul.f32 %v2831, 1.442695
      %v2843 = vpow.pop %v2842
      %v2844 = vadd.f32 %v2833, 1.0
      %v2845 = vadd.f32 %v2835, 1.0
      %v2846 = vadd.f32 %v2837, 1.0
      %v2847 = vadd.f32 %v2839, 1.0
      %v2848 = vadd.f32 %v2841, 1.0
      %v2849 = vadd.f32 %v2843, 1.0
      %v2850 = vrcp.pop %v2844
      %v2851 = vmul.f32 1.0, %v2850
      %v2852 = vrcp.pop %v2845
      %v2853 = vmul.f32 1.0, %v2852
      %v2854 = vrcp.pop %v2846
      %v2855 = vmul.f32 1.0, %v2854
      %v2856 = vrcp.pop %v2847
      %v2857 = vmul.f32 1.0, %v2856
      %v2858 = vrcp.pop %v2848
      %v2859 = vmul.f32 1.0, %v2858
      %v2860 = vrcp.pop %v2849
      %v2861 = vmul.f32 1.0, %v2860
      %v2862 = vtanh.pop %v2821
      %v2863 = vtanh.pop %v2825
      %v2864 = vmul.f32 %v2853, %v2523
      %v2865 = vmul.f32 %v2859, %v2524
      %v2866 = vmul.f32 %v2851, %v2862
      %v2867 = vmul.f32 %v2857, %v2863
      %v2868 = vadd.f32 %v2864, %v2866
      %v2869 = vadd.f32 %v2865, %v2867
      %v2870 = vtanh.pop %v2868
      %v2871 = vtanh.pop %v2869
      %v2872 = vmul.f32 %v2855, %v2870
      %v2873 = vmul.f32 %v2861, %v2871
      %s2874 = smul.u32 %s2516, 4
      %s2875 = sadd.s32 %s2874, 1
      %s2876 = smul.u32 %s2875, 16
      %s2877 = sshra.s32 %s2876, 3
      %s2878 = sand.u32 %s2876, 7
      %s2879 = smul.u32 %s2877, 4
      %s2880 = smul.addr %s2879, 8
      %s2881 = scalar_lea.vmem [#allocation2], %s2880
      %v2882 = vld [vmem:[%s2881] sm:$0xff]
      %v2883 = vld [vmem:[%s2881 + $0x8] sm:$0xff]
      %v2884 = vld [vmem:[%s2881 + $0x10] sm:$0xff]
      %v2885 = vld [vmem:[%s2881 + $0x18] sm:$0xff]
      %v2886 = vld [vmem:[%s2881 + $0x20] sm:$0xff]
      %v2887 = vld [vmem:[%s2881 + $0x28] sm:$0xff]
      %v2888 = vld [vmem:[%s2881 + $0x30] sm:$0xff]
      %v2889 = vld [vmem:[%s2881 + $0x38] sm:$0xff]
      %v2890 = vpack.c.bf16 %v2873, %v2872
      %2891 = vmatprep.subr.bf16.mxu0 %v2697
      %2892 = vmatpush1.bf16.msra.mxu0 %v2696
      %2893 = vmatprep.subr.bf16.mxu0 %v2693
      %2894 = vmatpush1.bf16.msra.mxu0 %v2692
      %2895 = vmatprep.subr.bf16.mxu0 %v2689
      %2896 = vmatpush1.bf16.msra.mxu0 %v2688
      %2897 = vmatprep.subr.bf16.mxu0 %v2685
      %2898 = vmatpush1.bf16.msra.mxu0 %v2684
      %2899 = vmatprep.subr.bf16.mxu0 %v2681
      %2900 = vmatpush1.bf16.msra.mxu0 %v2680
      %2901 = vmatprep.subr.bf16.mxu0 %v2677
      %2902 = vmatpush1.bf16.msra.mxu0 %v2676
      %2903 = vmatprep.subr.bf16.mxu0 %v2673
      %2904 = vmatpush1.bf16.msra.mxu0 %v2672
      %2905 = vmatprep.subr.bf16.mxu0 %v2669
      %2906 = vmatpush1.bf16.msra.mxu0 %v2668
      %2907 = vmatprep.subr.bf16.mxu0 0
      %2908 = vmatpush2.bf16.msra.mxu0 0
      %2909 = vmatprep.subr.bf16.mxu0 0
      %2910 = vmatpush2.bf16.msra.mxu0 0
      %2911 = vmatprep.subr.bf16.mxu0 0
      %2912 = vmatpush2.bf16.msra.mxu0 0
      %2913 = vmatprep.subr.bf16.mxu0 0
      %2914 = vmatpush2.bf16.msra.mxu0 0
      %2915 = vmatprep.subr.bf16.mxu0 0
      %2916 = vmatpush2.bf16.msra.mxu0 0
      %2917 = vmatprep.subr.bf16.mxu0 0
      %2918 = vmatpush2.bf16.msra.mxu0 0
      %2919 = vmatprep.subr.bf16.mxu0 0
      %2920 = vmatpush2.bf16.msra.mxu0 0
      %2921 = vmatprep.subr.bf16.mxu0 0
      %2922 = vmatpush2.bf16.msra.mxu0 0
      %2923 = vmatprep.mubr.bf16.mxu0 0
      %2924 = vmatmul.mubr.bf16.gmra.mxu0 %v2890
      %v2925 = vpop.f32.mrf.mxu0
      %v2926 = vadd.f32 0.0, %v2925
      %v2927 = vpop.f32.mrf.mxu0
      %v2928 = vadd.f32 0.0, %v2927
      %v2929 = vpop.f32.mrf.mxu0
      %v2930 = vadd.f32 0.0, %v2929
      %v2931 = vpop.f32.mrf.mxu0
      %v2932 = vadd.f32 0.0, %v2931
      %2933 = vdwg.mxu0
      %2934 = vmatprep.subr.bf16.mxu0 %v2699
      %2935 = vmatpush1.bf16.msra.mxu0 %v2698
      %2936 = vmatprep.subr.bf16.mxu0 %v2695
      %2937 = vmatpush1.bf16.msra.mxu0 %v2694
      %2938 = vmatprep.subr.bf16.mxu0 %v2691
      %2939 = vmatpush1.bf16.msra.mxu0 %v2690
      %2940 = vmatprep.subr.bf16.mxu0 %v2687
      %2941 = vmatpush1.bf16.msra.mxu0 %v2686
      %2942 = vmatprep.subr.bf16.mxu0 %v2683
      %2943 = vmatpush1.bf16.msra.mxu0 %v2682
      %2944 = vmatprep.subr.bf16.mxu0 %v2679
      %2945 = vmatpush1.bf16.msra.mxu0 %v2678
      %2946 = vmatprep.subr.bf16.mxu0 %v2675
      %2947 = vmatpush1.bf16.msra.mxu0 %v2674
      %2948 = vmatprep.subr.bf16.mxu0 %v2671
      %2949 = vmatpush1.bf16.msra.mxu0 %v2670
      %2950 = vmatprep.subr.bf16.mxu0 0
      %2951 = vmatpush2.bf16.msra.mxu0 0
      %2952 = vmatprep.subr.bf16.mxu0 0
      %2953 = vmatpush2.bf16.msra.mxu0 0
      %2954 = vmatprep.subr.bf16.mxu0 0
      %2955 = vmatpush2.bf16.msra.mxu0 0
      %2956 = vmatprep.subr.bf16.mxu0 0
      %2957 = vmatpush2.bf16.msra.mxu0 0
      %2958 = vmatprep.subr.bf16.mxu0 0
      %2959 = vmatpush2.bf16.msra.mxu0 0
      %2960 = vmatprep.subr.bf16.mxu0 0
      %2961 = vmatpush2.bf16.msra.mxu0 0
      %2962 = vmatprep.subr.bf16.mxu0 0
      %2963 = vmatpush2.bf16.msra.mxu0 0
      %2964 = vmatprep.subr.bf16.mxu0 0
      %2965 = vmatpush2.bf16.msra.mxu0 0
      %2966 = vmatprep.mubr.bf16.mxu0 0
      %2967 = vmatmul.mubr.bf16.gmra.mxu0 %v2890
      %v2968 = vpop.f32.mrf.mxu0
      %v2969 = vadd.f32 0.0, %v2968
      %v2970 = vpop.f32.mrf.mxu0
      %v2971 = vadd.f32 0.0, %v2970
      %v2972 = vpop.f32.mrf.mxu0
      %v2973 = vadd.f32 0.0, %v2972
      %v2974 = vpop.f32.mrf.mxu0
      %v2975 = vadd.f32 0.0, %v2974
      %2976 = vdwg.mxu0
      %v2977 = vadd.f32 %v2882, %v2926
      %v2978 = vadd.f32 %v2883, %v2928
      %v2979 = vadd.f32 %v2884, %v2969
      %v2980 = vadd.f32 %v2885, %v2971
      %v2981 = vadd.f32 %v2886, %v2930
      %v2982 = vadd.f32 %v2887, %v2932
      %v2983 = vadd.f32 %v2888, %v2973
      %v2984 = vadd.f32 %v2889, %v2975
      %v2985 = vxor.u32 %v2977, 2147483648
      %v2986 = vxor.u32 %v2978, 2147483648
      %v2987 = vxor.u32 %v2979, 2147483648
      %v2988 = vxor.u32 %v2981, 2147483648
      %v2989 = vxor.u32 %v2982, 2147483648
      %v2990 = vxor.u32 %v2983, 2147483648
      %v2991 = vmul.f32 %v2985, 1.442695
      %v2992 = vpow.pop %v2991
      %v2993 = vmul.f32 %v2986, 1.442695
      %v2994 = vpow.pop %v2993
      %v2995 = vmul.f32 %v2987, 1.442695
      %v2996 = vpow.pop %v2995
      %v2997 = vmul.f32 %v2988, 1.442695
      %v2998 = vpow.pop %v2997
      %v2999 = vmul.f32 %v2989, 1.442695
      %v3000 = vpow.pop %v2999
      %v3001 = vmul.f32 %v2990, 1.442695
      %v3002 = vpow.pop %v3001
      %v3003 = vadd.f32 %v2992, 1.0
      %v3004 = vadd.f32 %v2994, 1.0
      %v3005 = vadd.f32 %v2996, 1.0
      %v3006 = vadd.f32 %v2998, 1.0
      %v3007 = vadd.f32 %v3000, 1.0
      %v3008 = vadd.f32 %v3002, 1.0
      %v3009 = vrcp.pop %v3003
      %v3010 = vmul.f32 1.0, %v3009
      %v3011 = vrcp.pop %v3004
      %v3012 = vmul.f32 1.0, %v3011
      %v3013 = vrcp.pop %v3005
      %v3014 = vmul.f32 1.0, %v3013
      %v3015 = vrcp.pop %v3006
      %v3016 = vmul.f32 1.0, %v3015
      %v3017 = vrcp.pop %v3007
      %v3018 = vmul.f32 1.0, %v3017
      %v3019 = vrcp.pop %v3008
      %v3020 = vmul.f32 1.0, %v3019
      %v3021 = vtanh.pop %v2980
      %v3022 = vtanh.pop %v2984
      %v3023 = vmul.f32 %v3012, %v2868
      %v3024 = vmul.f32 %v3018, %v2869
      %v3025 = vmul.f32 %v3010, %v3021
      %v3026 = vmul.f32 %v3016, %v3022
      %v3027 = vadd.f32 %v3023, %v3025
      %v3028 = vadd.f32 %v3024, %v3026
      %v3029 = vtanh.pop %v3027
      %v3030 = vtanh.pop %v3028
      %v3031 = vmul.f32 %v3014, %v3029
      %v3032 = vmul.f32 %v3020, %v3030
      %s3033 = sadd.s32 %s2874, 2
      %s3034 = smul.u32 %s3033, 16
      %s3035 = sshra.s32 %s3034, 3
      %s3036 = sand.u32 %s3034, 7
      %s3037 = smul.u32 %s3035, 4
      %s3038 = smul.addr %s3037, 8
      %s3039 = scalar_lea.vmem [#allocation2], %s3038
      %v3040 = vld [vmem:[%s3039] sm:$0xff]
      %v3041 = vld [vmem:[%s3039 + $0x8] sm:$0xff]
      %v3042 = vld [vmem:[%s3039 + $0x10] sm:$0xff]
      %v3043 = vld [vmem:[%s3039 + $0x18] sm:$0xff]
      %v3044 = vld [vmem:[%s3039 + $0x20] sm:$0xff]
      %v3045 = vld [vmem:[%s3039 + $0x28] sm:$0xff]
      %v3046 = vld [vmem:[%s3039 + $0x30] sm:$0xff]
      %v3047 = vld [vmem:[%s3039 + $0x38] sm:$0xff]
      %v3048 = vpack.c.bf16 %v3032, %v3031
      %3049 = vmatprep.subr.bf16.mxu0 %v2697
      %3050 = vmatpush1.bf16.msra.mxu0 %v2696
      %3051 = vmatprep.subr.bf16.mxu0 %v2693
      %3052 = vmatpush1.bf16.msra.mxu0 %v2692
      %3053 = vmatprep.subr.bf16.mxu0 %v2689
      %3054 = vmatpush1.bf16.msra.mxu0 %v2688
      %3055 = vmatprep.subr.bf16.mxu0 %v2685
      %3056 = vmatpush1.bf16.msra.mxu0 %v2684
      %3057 = vmatprep.subr.bf16.mxu0 %v2681
      %3058 = vmatpush1.bf16.msra.mxu0 %v2680
      %3059 = vmatprep.subr.bf16.mxu0 %v2677
      %3060 = vmatpush1.bf16.msra.mxu0 %v2676
      %3061 = vmatprep.subr.bf16.mxu0 %v2673
      %3062 = vmatpush1.bf16.msra.mxu0 %v2672
      %3063 = vmatprep.subr.bf16.mxu0 %v2669
      %3064 = vmatpush1.bf16.msra.mxu0 %v2668
      %3065 = vmatprep.subr.bf16.mxu0 0
      %3066 = vmatpush2.bf16.msra.mxu0 0
      %3067 = vmatprep.subr.bf16.mxu0 0
      %3068 = vmatpush2.bf16.msra.mxu0 0
      %3069 = vmatprep.subr.bf16.mxu0 0
      %3070 = vmatpush2.bf16.msra.mxu0 0
      %3071 = vmatprep.subr.bf16.mxu0 0
      %3072 = vmatpush2.bf16.msra.mxu0 0
      %3073 = vmatprep.subr.bf16.mxu0 0
      %3074 = vmatpush2.bf16.msra.mxu0 0
      %3075 = vmatprep.subr.bf16.mxu0 0
      %3076 = vmatpush2.bf16.msra.mxu0 0
      %3077 = vmatprep.subr.bf16.mxu0 0
      %3078 = vmatpush2.bf16.msra.mxu0 0
      %3079 = vmatprep.subr.bf16.mxu0 0
      %3080 = vmatpush2.bf16.msra.mxu0 0
      %3081 = vmatprep.mubr.bf16.mxu0 0
      %3082 = vmatmul.mubr.bf16.gmra.mxu0 %v3048
      %v3083 = vpop.f32.mrf.mxu0
      %v3084 = vadd.f32 0.0, %v3083
      %v3085 = vpop.f32.mrf.mxu0
      %v3086 = vadd.f32 0.0, %v3085
      %v3087 = vpop.f32.mrf.mxu0
      %v3088 = vadd.f32 0.0, %v3087
      %v3089 = vpop.f32.mrf.mxu0
      %v3090 = vadd.f32 0.0, %v3089
      %3091 = vdwg.mxu0
      %3092 = vmatprep.subr.bf16.mxu0 %v2699
      %3093 = vmatpush1.bf16.msra.mxu0 %v2698
      %3094 = vmatprep.subr.bf16.mxu0 %v2695
      %3095 = vmatpush1.bf16.msra.mxu0 %v2694
      %3096 = vmatprep.subr.bf16.mxu0 %v2691
      %3097 = vmatpush1.bf16.msra.mxu0 %v2690
      %3098 = vmatprep.subr.bf16.mxu0 %v2687
      %3099 = vmatpush1.bf16.msra.mxu0 %v2686
      %3100 = vmatprep.subr.bf16.mxu0 %v2683
      %3101 = vmatpush1.bf16.msra.mxu0 %v2682
      %3102 = vmatprep.subr.bf16.mxu0 %v2679
      %3103 = vmatpush1.bf16.msra.mxu0 %v2678
      %3104 = vmatprep.subr.bf16.mxu0 %v2675
      %3105 = vmatpush1.bf16.msra.mxu0 %v2674
      %3106 = vmatprep.subr.bf16.mxu0 %v2671
      %3107 = vmatpush1.bf16.msra.mxu0 %v2670
      %3108 = vmatprep.subr.bf16.mxu0 0
      %3109 = vmatpush2.bf16.msra.mxu0 0
      %3110 = vmatprep.subr.bf16.mxu0 0
      %3111 = vmatpush2.bf16.msra.mxu0 0
      %3112 = vmatprep.subr.bf16.mxu0 0
      %3113 = vmatpush2.bf16.msra.mxu0 0
      %3114 = vmatprep.subr.bf16.mxu0 0
      %3115 = vmatpush2.bf16.msra.mxu0 0
      %3116 = vmatprep.subr.bf16.mxu0 0
      %3117 = vmatpush2.bf16.msra.mxu0 0
      %3118 = vmatprep.subr.bf16.mxu0 0
      %3119 = vmatpush2.bf16.msra.mxu0 0
      %3120 = vmatprep.subr.bf16.mxu0 0
      %3121 = vmatpush2.bf16.msra.mxu0 0
      %3122 = vmatprep.subr.bf16.mxu0 0
      %3123 = vmatpush2.bf16.msra.mxu0 0
      %3124 = vmatprep.mubr.bf16.mxu0 0
      %3125 = vmatmul.mubr.bf16.gmra.mxu0 %v3048
      %v3126 = vpop.f32.mrf.mxu0
      %v3127 = vadd.f32 0.0, %v3126
      %v3128 = vpop.f32.mrf.mxu0
      %v3129 = vadd.f32 0.0, %v3128
      %v3130 = vpop.f32.mrf.mxu0
      %v3131 = vadd.f32 0.0, %v3130
      %v3132 = vpop.f32.mrf.mxu0
      %v3133 = vadd.f32 0.0, %v3132
      %3134 = vdwg.mxu0
      %v3135 = vadd.f32 %v3040, %v3084
      %v3136 = vadd.f32 %v3041, %v3086
      %v3137 = vadd.f32 %v3042, %v3127
      %v3138 = vadd.f32 %v3043, %v3129
      %v3139 = vadd.f32 %v3044, %v3088
      %v3140 = vadd.f32 %v3045, %v3090
      %v3141 = vadd.f32 %v3046, %v3131
      %v3142 = vadd.f32 %v3047, %v3133
      %v3143 = vxor.u32 %v3135, 2147483648
      %v3144 = vxor.u32 %v3136, 2147483648
      %v3145 = vxor.u32 %v3137, 2147483648
      %v3146 = vxor.u32 %v3139, 2147483648
      %v3147 = vxor.u32 %v3140, 2147483648
      %v3148 = vxor.u32 %v3141, 2147483648
      %v3149 = vmul.f32 %v3143, 1.442695
      %v3150 = vpow.pop %v3149
      %v3151 = vmul.f32 %v3144, 1.442695
      %v3152 = vpow.pop %v3151
      %v3153 = vmul.f32 %v3145, 1.442695
      %v3154 = vpow.pop %v3153
      %v3155 = vmul.f32 %v3146, 1.442695
      %v3156 = vpow.pop %v3155
      %v3157 = vmul.f32 %v3147, 1.442695
      %v3158 = vpow.pop %v3157
      %v3159 = vmul.f32 %v3148, 1.442695
      %v3160 = vpow.pop %v3159
      %v3161 = vadd.f32 %v3150, 1.0
      %v3162 = vadd.f32 %v3152, 1.0
      %v3163 = vadd.f32 %v3154, 1.0
      %v3164 = vadd.f32 %v3156, 1.0
      %v3165 = vadd.f32 %v3158, 1.0
      %v3166 = vadd.f32 %v3160, 1.0
      %v3167 = vrcp.pop %v3161
      %v3168 = vmul.f32 1.0, %v3167
      %v3169 = vrcp.pop %v3162
      %v3170 = vmul.f32 1.0, %v3169
      %v3171 = vrcp.pop %v3163
      %v3172 = vmul.f32 1.0, %v3171
      %v3173 = vrcp.pop %v3164
      %v3174 = vmul.f32 1.0, %v3173
      %v3175 = vrcp.pop %v3165
      %v3176 = vmul.f32 1.0, %v3175
      %v3177 = vrcp.pop %v3166
      %v3178 = vmul.f32 1.0, %v3177
      %v3179 = vtanh.pop %v3138
      %v3180 = vtanh.pop %v3142
      %v3181 = vmul.f32 %v3170, %v3027
      %v3182 = vmul.f32 %v3176, %v3028
      %v3183 = vmul.f32 %v3168, %v3179
      %v3184 = vmul.f32 %v3174, %v3180
      %v3185 = vadd.f32 %v3181, %v3183
      %v3186 = vadd.f32 %v3182, %v3184
      %v3187 = vtanh.pop %v3185
      %v3188 = vtanh.pop %v3186
      %v3189 = vmul.f32 %v3172, %v3187
      %v3190 = vmul.f32 %v3178, %v3188
      %s3191 = sadd.s32 %s2874, 3
      %s3192 = smul.u32 %s3191, 16
      %s3193 = sshra.s32 %s3192, 3
      %s3194 = sand.u32 %s3192, 7
      %s3195 = smul.u32 %s3193, 4
      %s3196 = smul.addr %s3195, 8
      %s3197 = scalar_lea.vmem [#allocation2], %s3196
      %v3198 = vld [vmem:[%s3197] sm:$0xff]
      %v3199 = vld [vmem:[%s3197 + $0x8] sm:$0xff]
      %v3200 = vld [vmem:[%s3197 + $0x10] sm:$0xff]
      %v3201 = vld [vmem:[%s3197 + $0x18] sm:$0xff]
      %v3202 = vld [vmem:[%s3197 + $0x20] sm:$0xff]
      %v3203 = vld [vmem:[%s3197 + $0x28] sm:$0xff]
      %v3204 = vld [vmem:[%s3197 + $0x30] sm:$0xff]
      %v3205 = vld [vmem:[%s3197 + $0x38] sm:$0xff]
      %v3206 = vpack.c.bf16 %v3190, %v3189
      %3207 = vmatprep.subr.bf16.mxu0 %v2697
      %3208 = vmatpush1.bf16.msra.mxu0 %v2696
      %3209 = vmatprep.subr.bf16.mxu0 %v2693
      %3210 = vmatpush1.bf16.msra.mxu0 %v2692
      %3211 = vmatprep.subr.bf16.mxu0 %v2689
      %3212 = vmatpush1.bf16.msra.mxu0 %v2688
      %3213 = vmatprep.subr.bf16.mxu0 %v2685
      %3214 = vmatpush1.bf16.msra.mxu0 %v2684
      %3215 = vmatprep.subr.bf16.mxu0 %v2681
      %3216 = vmatpush1.bf16.msra.mxu0 %v2680
      %3217 = vmatprep.subr.bf16.mxu0 %v2677
      %3218 = vmatpush1.bf16.msra.mxu0 %v2676
      %3219 = vmatprep.subr.bf16.mxu0 %v2673
      %3220 = vmatpush1.bf16.msra.mxu0 %v2672
      %3221 = vmatprep.subr.bf16.mxu0 %v2669
      %3222 = vmatpush1.bf16.msra.mxu0 %v2668
      %3223 = vmatprep.subr.bf16.mxu0 0
      %3224 = vmatpush2.bf16.msra.mxu0 0
      %3225 = vmatprep.subr.bf16.mxu0 0
      %3226 = vmatpush2.bf16.msra.mxu0 0
      %3227 = vmatprep.subr.bf16.mxu0 0
      %3228 = vmatpush2.bf16.msra.mxu0 0
      %3229 = vmatprep.subr.bf16.mxu0 0
      %3230 = vmatpush2.bf16.msra.mxu0 0
      %3231 = vmatprep.subr.bf16.mxu0 0
      %3232 = vmatpush2.bf16.msra.mxu0 0
      %3233 = vmatprep.subr.bf16.mxu0 0
      %3234 = vmatpush2.bf16.msra.mxu0 0
      %3235 = vmatprep.subr.bf16.mxu0 0
      %3236 = vmatpush2.bf16.msra.mxu0 0
      %3237 = vmatprep.subr.bf16.mxu0 0
      %3238 = vmatpush2.bf16.msra.mxu0 0
      %3239 = vmatprep.mubr.bf16.mxu0 0
      %3240 = vmatmul.mubr.bf16.gmra.mxu0 %v3206
      %v3241 = vpop.f32.mrf.mxu0
      %v3242 = vadd.f32 0.0, %v3241
      %v3243 = vpop.f32.mrf.mxu0
      %v3244 = vadd.f32 0.0, %v3243
      %v3245 = vpop.f32.mrf.mxu0
      %v3246 = vadd.f32 0.0, %v3245
      %v3247 = vpop.f32.mrf.mxu0
      %v3248 = vadd.f32 0.0, %v3247
      %3249 = vdwg.mxu0
      %3250 = vmatprep.subr.bf16.mxu0 %v2699
      %3251 = vmatpush1.bf16.msra.mxu0 %v2698
      %3252 = vmatprep.subr.bf16.mxu0 %v2695
      %3253 = vmatpush1.bf16.msra.mxu0 %v2694
      %3254 = vmatprep.subr.bf16.mxu0 %v2691
      %3255 = vmatpush1.bf16.msra.mxu0 %v2690
      %3256 = vmatprep.subr.bf16.mxu0 %v2687
      %3257 = vmatpush1.bf16.msra.mxu0 %v2686
      %3258 = vmatprep.subr.bf16.mxu0 %v2683
      %3259 = vmatpush1.bf16.msra.mxu0 %v2682
      %3260 = vmatprep.subr.bf16.mxu0 %v2679
      %3261 = vmatpush1.bf16.msra.mxu0 %v2678
      %3262 = vmatprep.subr.bf16.mxu0 %v2675
      %3263 = vmatpush1.bf16.msra.mxu0 %v2674
      %3264 = vmatprep.subr.bf16.mxu0 %v2671
      %3265 = vmatpush1.bf16.msra.mxu0 %v2670
      %3266 = vmatprep.subr.bf16.mxu0 0
      %3267 = vmatpush2.bf16.msra.mxu0 0
      %3268 = vmatprep.subr.bf16.mxu0 0
      %3269 = vmatpush2.bf16.msra.mxu0 0
      %3270 = vmatprep.subr.bf16.mxu0 0
      %3271 = vmatpush2.bf16.msra.mxu0 0
      %3272 = vmatprep.subr.bf16.mxu0 0
      %3273 = vmatpush2.bf16.msra.mxu0 0
      %3274 = vmatprep.subr.bf16.mxu0 0
      %3275 = vmatpush2.bf16.msra.mxu0 0
      %3276 = vmatprep.subr.bf16.mxu0 0
      %3277 = vmatpush2.bf16.msra.mxu0 0
      %3278 = vmatprep.subr.bf16.mxu0 0
      %3279 = vmatpush2.bf16.msra.mxu0 0
      %3280 = vmatprep.subr.bf16.mxu0 0
      %3281 = vmatpush2.bf16.msra.mxu0 0
      %3282 = vmatprep.mubr.bf16.mxu0 0
      %3283 = vmatmul.mubr.bf16.gmra.mxu0 %v3206
      %v3284 = vpop.f32.mrf.mxu0
      %v3285 = vadd.f32 0.0, %v3284
      %v3286 = vpop.f32.mrf.mxu0
      %v3287 = vadd.f32 0.0, %v3286
      %v3288 = vpop.f32.mrf.mxu0
      %v3289 = vadd.f32 0.0, %v3288
      %v3290 = vpop.f32.mrf.mxu0
      %v3291 = vadd.f32 0.0, %v3290
      %3292 = vdwg.mxu0
      %v3293 = vadd.f32 %v3198, %v3242
      %v3294 = vadd.f32 %v3199, %v3244
      %v3295 = vadd.f32 %v3200, %v3285
      %v3296 = vadd.f32 %v3201, %v3287
      %v3297 = vadd.f32 %v3202, %v3246
      %v3298 = vadd.f32 %v3203, %v3248
      %v3299 = vadd.f32 %v3204, %v3289
      %v3300 = vadd.f32 %v3205, %v3291
      %v3301 = vxor.u32 %v3293, 2147483648
      %v3302 = vxor.u32 %v3294, 2147483648
      %v3303 = vxor.u32 %v3295, 2147483648
      %v3304 = vxor.u32 %v3297, 2147483648
      %v3305 = vxor.u32 %v3298, 2147483648
      %v3306 = vxor.u32 %v3299, 2147483648
      %v3307 = vmul.f32 %v3301, 1.442695
      %v3308 = vpow.pop %v3307
      %v3309 = vmul.f32 %v3302, 1.442695
      %v3310 = vpow.pop %v3309
      %v3311 = vmul.f32 %v3303, 1.442695
      %v3312 = vpow.pop %v3311
      %v3313 = vmul.f32 %v3304, 1.442695
      %v3314 = vpow.pop %v3313
      %v3315 = vmul.f32 %v3305, 1.442695
      %v3316 = vpow.pop %v3315
      %v3317 = vmul.f32 %v3306, 1.442695
      %v3318 = vpow.pop %v3317
      %v3319 = vadd.f32 %v3308, 1.0
      %v3320 = vadd.f32 %v3310, 1.0
      %v3321 = vadd.f32 %v3312, 1.0
      %v3322 = vadd.f32 %v3314, 1.0
      %v3323 = vadd.f32 %v3316, 1.0
      %v3324 = vadd.f32 %v3318, 1.0
      %v3325 = vrcp.pop %v3319
      %v3326 = vmul.f32 1.0, %v3325
      %v3327 = vrcp.pop %v3320
      %v3328 = vmul.f32 1.0, %v3327
      %v3329 = vrcp.pop %v3321
      %v3330 = vmul.f32 1.0, %v3329
      %v3331 = vrcp.pop %v3322
      %v3332 = vmul.f32 1.0, %v3331
      %v3333 = vrcp.pop %v3323
      %v3334 = vmul.f32 1.0, %v3333
      %v3335 = vrcp.pop %v3324
      %v3336 = vmul.f32 1.0, %v3335
      %v3337 = vtanh.pop %v3296
      %v3338 = vtanh.pop %v3300
      %v3339 = vmul.f32 %v3328, %v3185
      %v3340 = vmul.f32 %v3334, %v3186
      %v3341 = vmul.f32 %v3326, %v3337
      %v3342 = vmul.f32 %v3332, %v3338
      %v3343 = vadd.f32 %v3339, %v3341
      %v3344 = vadd.f32 %v3340, %v3342
      %v3345 = vtanh.pop %v3343
      %v3346 = vtanh.pop %v3344
      %v3347 = vmul.f32 %v3330, %v3345
      %v3348 = vmul.f32 %v3336, %v3346
    $region61: #{lstm_forward.1} parent=1 // loop_footer
      %s2520 = sadd.s32 1, %s2516
    $region62: #{lstm_forward.1} parent=1 // loop_footer_branch
      %2515 = sbr.rel target = $region58
    $region63: #{lstm_forward.1} parent=1 // loop_exit
      _
    %v3349 = vld [vmem:[%s7] sm:$0xff]
    %v3350 = vld [vmem:[%s7 + $0x8] sm:$0xff]
    %v3351 = vld [vmem:[%s7 + $0x10] sm:$0xff]
    %v3352 = vld [vmem:[%s7 + $0x18] sm:$0xff]
    %v3353 = vld [vmem:[%s7 + $0x20] sm:$0xff]
    %v3354 = vld [vmem:[%s7 + $0x28] sm:$0xff]
    %v3355 = vld [vmem:[%s7 + $0x30] sm:$0xff]
    %v3356 = vld [vmem:[%s7 + $0x38] sm:$0xff]
    %v3357 = vld [vmem:[%s7 + $0x40] sm:$0xff]
    %v3358 = vld [vmem:[%s7 + $0x48] sm:$0xff]
    %v3359 = vld [vmem:[%s7 + $0x50] sm:$0xff]
    %v3360 = vld [vmem:[%s7 + $0x58] sm:$0xff]
    %v3361 = vld [vmem:[%s7 + $0x60] sm:$0xff]
    %v3362 = vld [vmem:[%s7 + $0x68] sm:$0xff]
    %v3363 = vld [vmem:[%s7 + $0x70] sm:$0xff]
    %v3364 = vld [vmem:[%s7 + $0x78] sm:$0xff]
    %v3365 = vld [vmem:[%s8] sm:$0x1]
    %v3367 = vlaneseq
    %v3368 = vshrl.u32 %v3367, 7
    %v3369 = vsub.s32 0, %v3368
    %v3370 = vrot.slane %v3365, %v3369
    %3372 = vmatprep.subr.mxu0 0.0
    %3373 = vmatpush1.msra.mxu0 %v3364
    %3374 = vmatprep.subr.mxu0 0.0
    %3375 = vmatpush1.msra.mxu0 %v3363
    %3376 = vmatprep.subr.mxu0 0.0
    %3377 = vmatpush1.msra.mxu0 %v3362
    %3378 = vmatprep.subr.mxu0 0.0
    %3379 = vmatpush1.msra.mxu0 %v3361
    %3380 = vmatprep.subr.mxu0 0.0
    %3381 = vmatpush1.msra.mxu0 %v3360
    %3382 = vmatprep.subr.mxu0 0.0
    %3383 = vmatpush1.msra.mxu0 %v3359
    %3384 = vmatprep.subr.mxu0 0.0
    %3385 = vmatpush1.msra.mxu0 %v3358
    %3386 = vmatprep.subr.mxu0 0.0
    %3387 = vmatpush1.msra.mxu0 %v3357
    %3388 = vmatprep.subr.mxu0 0.0
    %3389 = vmatpush1.msra.mxu0 %v3356
    %3390 = vmatprep.subr.mxu0 0.0
    %3391 = vmatpush1.msra.mxu0 %v3355
    %3392 = vmatprep.subr.mxu0 0.0
    %3393 = vmatpush1.msra.mxu0 %v3354
    %3394 = vmatprep.subr.mxu0 0.0
    %3395 = vmatpush1.msra.mxu0 %v3353
    %3396 = vmatprep.subr.mxu0 0.0
    %3397 = vmatpush1.msra.mxu0 %v3352
    %3398 = vmatprep.subr.mxu0 0.0
    %3399 = vmatpush1.msra.mxu0 %v3351
    %3400 = vmatprep.subr.mxu0 0.0
    %3401 = vmatpush1.msra.mxu0 %v3350
    %3402 = vmatprep.subr.mxu0 0.0
    %3403 = vmatpush1.msra.mxu0 %v3349
    %3404 = vmatprep.subr.mxu0 0.0
    %3405 = vmatpush2.msra.mxu0 0.0
    %3406 = vmatprep.subr.mxu0 0.0
    %3407 = vmatpush2.msra.mxu0 0.0
    %3408 = vmatprep.subr.mxu0 0.0
    %3409 = vmatpush2.msra.mxu0 0.0
    %3410 = vmatprep.subr.mxu0 0.0
    %3411 = vmatpush2.msra.mxu0 0.0
    %3412 = vmatprep.subr.mxu0 0.0
    %3413 = vmatpush2.msra.mxu0 0.0
    %3414 = vmatprep.subr.mxu0 0.0
    %3415 = vmatpush2.msra.mxu0 0.0
    %3416 = vmatprep.subr.mxu0 0.0
    %3417 = vmatpush2.msra.mxu0 0.0
    %3418 = vmatprep.subr.mxu0 0.0
    %3419 = vmatpush2.msra.mxu0 0.0
    %3420 = vmatprep.subr.mxu0 0.0
    %3421 = vmatpush2.msra.mxu0 0.0
    %3422 = vmatprep.subr.mxu0 0.0
    %3423 = vmatpush2.msra.mxu0 0.0
    %3424 = vmatprep.subr.mxu0 0.0
    %3425 = vmatpush2.msra.mxu0 0.0
    %3426 = vmatprep.subr.mxu0 0.0
    %3427 = vmatpush2.msra.mxu0 0.0
    %3428 = vmatprep.subr.mxu0 0.0
    %3429 = vmatpush2.msra.mxu0 0.0
    %3430 = vmatprep.subr.mxu0 0.0
    %3431 = vmatpush2.msra.mxu0 0.0
    %3432 = vmatprep.subr.mxu0 0.0
    %3433 = vmatpush2.msra.mxu0 0.0
    %3434 = vmatprep.subr.mxu0 0.0
    %3435 = vmatpush2.msra.mxu0 0.0
    %3436 = vmatprep.mubr.f32.mxu0 0.0
    %3437 = vmatmul.mubr.f32.gmra.mxu0 %v2521
    %v3438 = vpop.f32.mrf.mxu0
    %v3439 = vadd.f32 %v3370, %v3438
    %v3440 = vpop.f32.mrf.mxu0
    %3441 = vmatprep.mubr.f32.mxu0 0.0
    %3442 = vmatmul.mubr.f32.gmra.mxu0 %v2522
    %v3443 = vpop.f32.mrf.mxu0
    %v3444 = vadd.f32 %v3370, %v3443
    %v3445 = vpop.f32.mrf.mxu0
    %3446 = vdwg.mxu0
    %vm3447 = vcmask 31744
    %3448 = vst.msk [vmem:[%s9] sm:$0xff] %vm3447, %v3439
    %3449 = vst.msk [vmem:[%s9 + $0x8] sm:$0xff] %vm3447, %v3444
    // Predicated region
    $region64: #{lstm_forward.1} parent=1 // pred_check
      _
    $region65: #{lstm_forward.1} parent=1 // pred_check_branch
      %3451 = sbr.rel (0) target = $region67
    $region66: #{lstm_forward.1} parent=1 // pred_region
      _
    $region67: #{lstm_forward.1} parent=1 // pred_fallthru
      _
    // Predicated region
    $region68: #{lstm_forward.1} parent=1 // pred_check
      _
    $region69: #{lstm_forward.1} parent=1 // pred_check_branch
      %3453 = sbr.rel (0) target = $region71
    $region70: #{lstm_forward.1} parent=1 // pred_region
      _
    $region71: #{lstm_forward.1} parent=1 // pred_fallthru
      _
    %3454 = vsyncpa [#allocation5], 1
    %3455 = vsyncpa [#allocation7], 1

</llo_original>
